<compile_context>
chip_gen: v5e
topology: v5e:2x2
jax: 0.10.0
libtpu: 0.0.40
codegen_flags: <defaults>
</compile_context>

<pallas_src>
import functools

import jax
import jax.numpy as jnp
from jax import lax
from jax.experimental import pallas as pl
from jax.experimental.pallas import tpu as pltpu

_EPS = 1e-5
_FDIM = 256  # f_dim of FeatureToAdjacencyMatrix


# --------------------------------------------------------------------------- #
# Tiling helper: rows of the (B*P, F) patch-feature view are tiled in whole
# batch elements (Bt*P rows per grid step) so the per-batch pp() reduction in
# the selector kernel stays tile-local.  Prefer sublane-aligned tiles, >=2 grid
# steps (v7x has 2 TensorCores), and ~256 rows per step (MXU M occupancy).
# --------------------------------------------------------------------------- #
def _pick_batch_tile(batch, patch_num, target_rows=256, min_steps=2):
    cands = [bt for bt in range(1, batch + 1)
             if batch % bt == 0 and bt * patch_num <= max(target_rows, patch_num)]

    def score(bt):
        rows = bt * patch_num
        aligned = (rows % 8 == 0) or (bt == batch)          # legal/efficient block
        steps_ok = (batch // bt) >= min_steps or batch < min_steps
        return (aligned, steps_ok, bt)

    return max(cands, key=score)


# --------------------------------------------------------------------------- #
# Kernel 1: BatchNorm1d(F) partial statistics of the LayerNorm(F) rows.
#   Input block : (Bt*P, F) rows of the patch-feature view (F on lanes).
#   Outputs     : per-step partial sum / sum-of-squares of the LN output, (1, F).
# --------------------------------------------------------------------------- #
def bn_stats_kernel(x_ref, psum_ref, psq_ref):
    x2 = x_ref[...]                                         # (Rt, F)
    mu = jnp.mean(x2, axis=1, keepdims=True)                # LayerNorm(F), biased var
    var = jnp.mean((x2 - mu) ** 2, axis=1, keepdims=True)
    ln = (x2 - mu) * lax.rsqrt(var + _EPS)
    psum_ref[0] = jnp.sum(ln, axis=0, keepdims=True)        # (1, F)
    psq_ref[0] = jnp.sum(ln * ln, axis=0, keepdims=True)    # (1, F)


def run_bn_stats(x_pf, rows_per_step):
    n_rows, feat = x_pf.shape
    nsteps = n_rows // rows_per_step
    return pl.pallas_call(
        bn_stats_kernel,
        out_shape=(jax.ShapeDtypeStruct((nsteps, 1, feat), jnp.float32),
                   jax.ShapeDtypeStruct((nsteps, 1, feat), jnp.float32)),
        grid=(nsteps,),
        in_specs=[pl.BlockSpec((rows_per_step, feat), lambda i: (i, 0))],
        out_specs=(pl.BlockSpec((1, 1, feat), lambda i: (i, 0, 0)),
                   pl.BlockSpec((1, 1, feat), lambda i: (i, 0, 0))),
        compiler_params=pltpu.CompilerParams(dimension_semantics=("parallel",)),
    )(x_pf)


# --------------------------------------------------------------------------- #
# Kernel 2: fused visual + semantic selectors, M-batched over Bt*P rows.
#   LN is recomputed in-register per row (2 lane reductions); BN(F) is already
#   folded into wecat/becat; the q/k/pp chain is reassociated into per-batch
#   (1,256) vectors so only one big matmul remains.
# --------------------------------------------------------------------------- #
def selector_kernel(x_ref, wecat_ref, becat_ref,
                    v_pool_ref, v_wkq_ref, v_bkq_ref, v_vkb_ref, v_c0_ref,
                    s_pool_ref, s_wkq_ref, s_bkq_ref, s_vkb_ref, s_c0_ref,
                    vadj_ref, sadj_ref, *, patch_num):
    x2 = x_ref[...]                                         # (Bt*P, F)
    mu = jnp.mean(x2, axis=1, keepdims=True)
    var = jnp.mean((x2 - mu) ** 2, axis=1, keepdims=True)
    ln = (x2 - mu) * lax.rsqrt(var + _EPS)                  # LayerNorm(F)

    # One M-batched matmul for BOTH heads: (Bt*P, F) @ (F, 512).
    # TODO(synk): cast operands to bf16 (f32 accumulation) on v6e/v7x once tolerance
    # vs. the torch reference is validated; all MXU generations are bf16-native.
    h = jnp.dot(ln, wecat_ref[...], preferred_element_type=jnp.float32) + becat_ref[...]
    h = jnp.maximum(h, 0.0)                                 # (Bt*P, 512)

    def head(lane_off, pool_ref, wkq_ref, bkq_ref, vkb_ref, c0_ref, out_ref):
        hh = h[:, lane_off:lane_off + _FDIM]                # (Bt*P, 256) static lane slice
        bt = pool_ref.shape[0]
        # hw[b] = sum_p wpp[p] * h[b, p, :]  (block-diagonal pooling matmul).
        hw = jnp.dot(pool_ref[...], hh, preferred_element_type=jnp.float32)       # (Bt, 256)
        # adj[b, p] = hh[b*P+p, :] . m[b, :] + cst[b]   (exact reassociation of pp(q@k^T)).
        m = jnp.dot(hw, wkq_ref[...], preferred_element_type=jnp.float32) + bkq_ref[...]
        cst = jnp.sum(hw * vkb_ref[...], axis=1, keepdims=True) + c0_ref[...]     # (Bt, 1)
        for b in range(bt):                                 # static, Bt is small
            lo = b * patch_num
            chunk = hh[lo:lo + patch_num, :]                # (P, 256)
            adj = jnp.sum(chunk * m[b:b + 1, :], axis=1, keepdims=True) + cst[b:b + 1, :]
            out_ref[lo:lo + patch_num, :] = adj

    head(0, v_pool_ref, v_wkq_ref, v_bkq_ref, v_vkb_ref, v_c0_ref, vadj_ref)
    head(_FDIM, s_pool_ref, s_wkq_ref, s_bkq_ref, s_vkb_ref, s_c0_ref, sadj_ref)


def _const_spec(a):
    nd = a.ndim

    def idx(i):
        return (0,) * nd                                    # resident across grid steps

    return pl.BlockSpec(a.shape, idx)


def run_selectors(x_pf, we_cat, be_cat, vhead, shead, patch_num, rows_per_step):
    n_rows, feat = x_pf.shape
    nsteps = n_rows // rows_per_step
    kern = functools.partial(selector_kernel, patch_num=patch_num)
    weights = [we_cat, be_cat, *vhead, *shead]
    return pl.pallas_call(
        kern,
        out_shape=(jax.ShapeDtypeStruct((n_rows, 1), jnp.float32),
                   jax.ShapeDtypeStruct((n_rows, 1), jnp.float32)),
        grid=(nsteps,),
        in_specs=([pl.BlockSpec((rows_per_step, feat), lambda i: (i, 0))]
                  + [_const_spec(w) for w in weights]),
        out_specs=(pl.BlockSpec((rows_per_step, 1), lambda i: (i, 0)),
                   pl.BlockSpec((rows_per_step, 1), lambda i: (i, 0))),
        compiler_params=pltpu.CompilerParams(dimension_semantics=("parallel",)),
    )(x_pf, *weights)


# --------------------------------------------------------------------------- #
# Kernel 3: masked patch replacement + output LayerNorm(T), lane-dense (C, T).
#   Per-patch sums/means via the resident one-hot membership matmul; two-pass LN.
# --------------------------------------------------------------------------- #
def restore_kernel(x_ref, vb_ref, sb_ref, a_ref, vo_ref, so_ref, *, patch_size):
    HI = lax.Precision.HIGHEST
    xc = x_ref[0]                                           # (Ct, T)
    A = a_ref[...]                                          # (T, P) one-hot, resident

    psum = jnp.dot(xc, A, preferred_element_type=jnp.float32, precision=HI)        # (Ct, P)
    pmean = psum * (1.0 / patch_size)
    pmean_t = lax.dot_general(pmean, A, (((1,), (1,)), ((), ())),
                              preferred_element_type=jnp.float32, precision=HI)    # (Ct, T)

    def head(bin_row):                                      # (1, P) soft sigmoid scores
        keep = (bin_row > 0.5).astype(jnp.float32)          # 0/1 -> exact at any precision
        keep_t = lax.dot_general(keep, A, (((1,), (1,)), ((), ())),
                                 preferred_element_type=jnp.float32) > 0.5          # (1, T)
        sel = jnp.where(keep_t, xc, pmean_t)                # (Ct, T)
        mu = jnp.mean(sel, axis=1, keepdims=True)           # two-pass LayerNorm(T)
        var = jnp.mean((sel - mu) ** 2, axis=1, keepdims=True)
        return (sel - mu) * lax.rsqrt(var + _EPS)

    vo_ref[0] = head(vb_ref[0])
    so_ref[0] = head(sb_ref[0])


def run_restore(x, vb_b1p, sb_b1p, onehot_tp, patch_size, channel_tile=None):
    B, C, T = x.shape
    P = onehot_tp.shape[1]
    ct = C if channel_tile is None else channel_tile        # v7x VMEM knob for long T
    kern = functools.partial(restore_kernel, patch_size=patch_size)
    return pl.pallas_call(
        kern,
        out_shape=(jax.ShapeDtypeStruct((B, C, T), jnp.float32),
                   jax.ShapeDtypeStruct((B, C, T), jnp.float32)),
        grid=(B, C // ct),
        in_specs=[pl.BlockSpec((1, ct, T), lambda b, c: (b, c, 0)),
                  pl.BlockSpec((1, 1, P), lambda b, c: (b, 0, 0)),
                  pl.BlockSpec((1, 1, P), lambda b, c: (b, 0, 0)),
                  pl.BlockSpec((T, P), lambda b, c: (0, 0))],
        out_specs=(pl.BlockSpec((1, ct, T), lambda b, c: (b, c, 0)),
                   pl.BlockSpec((1, ct, T), lambda b, c: (b, c, 0))),
        compiler_params=pltpu.CompilerParams(
            dimension_semantics=("parallel", "parallel")),
    )(x, vb_b1p, sb_b1p, onehot_tp)


# --------------------------------------------------------------------------- #
# Plain-JAX glue (tiny tensors / global stat combines between pallas_calls).
# --------------------------------------------------------------------------- #
def _bn_scale_shift(psum, psq, count):
    s1 = jnp.sum(psum, axis=(0, 1))
    s2 = jnp.sum(psq, axis=(0, 1))
    mean = s1 / count
    var = jnp.maximum(s2 / count - mean * mean, 0.0)        # biased, training mode
    scale = lax.rsqrt(var + _EPS)
    return scale, -mean * scale


def _fold_selector_params(p, scale, shift):
    """Fold BatchNorm1d(F) into the embedding and compose query/key/pp linears."""
    hi = lax.Precision.HIGHEST
    we_f = p["we"] * scale[:, None]                                       # (F, 256)
    be_f = p["be"] + jnp.dot(shift[None, :], p["we"], precision=hi)       # (1, 256)
    wpp = p["wpp"]                                                        # (1, P)
    swpp = jnp.sum(wpp)
    wkq = jnp.dot(p["wk"], p["wq"].T, precision=hi)                       # (256, 256) = Wk Wq^T
    bkq = swpp * jnp.dot(p["bk"], p["wq"].T, precision=hi)                # (1, 256)
    vkb = jnp.dot(p["bq"], p["wk"].T, precision=hi)                       # (1, 256) = bq Wk^T
    c0 = (swpp * jnp.sum(p["bk"] * p["bq"]) + p["bpp"][0, 0]).reshape(1, 1)
    return we_f, be_f, wpp, wkq, bkq, vkb, c0


def _bn2_sigmoid(adj_bp):
    # BatchNorm1d(P) on a (B, P) adjacency (stats per patch over batch), then sigmoid.
    m = jnp.mean(adj_bp, axis=0, keepdims=True)
    v = jnp.mean((adj_bp - m) ** 2, axis=0, keepdims=True)
    return jax.nn.sigmoid((adj_bp - m) * lax.rsqrt(v + _EPS))


def _time_loss(vb, sb, target_coverage=0.8):
    patch_num = vb.shape[1]
    target = target_coverage * patch_num
    cross = jnp.sum(vb * sb)
    cov = jnp.abs(jnp.sum(vb) - target) + jnp.abs(jnp.sum(sb) - target)
    return (cov + cross) / vb.shape[0]


@functools.partial(jax.jit, static_argnames=("patch_size",))
def time_disentangle_forward(x, vparams, sparams, patch_size):
    B, C, T = x.shape
    S = patch_size
    P = T // S
    F = C * S

    # Patch-feature view (torch: unfold + permute + flatten(2)) -> (B*P, F) rows.
    x_pf = jnp.transpose(x.reshape(B, C, P, S), (0, 2, 1, 3)).reshape(B * P, F)

    bt = _pick_batch_tile(B, P)
    rows_per_step = bt * P

    # Kernel 1: BatchNorm1d(F) partial statistics of the LayerNorm(F) rows.
    psum, psq = run_bn_stats(x_pf, rows_per_step)
    scale, shift = _bn_scale_shift(psum, psq, B * P)

    # Tiny per-call weight folding / reassociation (all O(F*256) or smaller).
    vfold = _fold_selector_params(vparams, scale, shift)
    sfold = _fold_selector_params(sparams, scale, shift)
    we_cat = jnp.concatenate([vfold[0], sfold[0]], axis=1)   # (F, 512)
    be_cat = jnp.concatenate([vfold[1], sfold[1]], axis=1)   # (1, 512)
    eye_bt = jnp.eye(bt, dtype=jnp.float32)
    vhead = (jnp.kron(eye_bt, vfold[2]),) + vfold[3:]        # (pool, wkq, bkq, vkb, c0)
    shead = (jnp.kron(eye_bt, sfold[2]),) + sfold[3:]

    # Kernel 2: fused visual + semantic selectors (single M-batched MXU matmul).
    v_adj, s_adj = run_selectors(x_pf, we_cat, be_cat, vhead, shead, P, rows_per_step)

    # BatchNorm1d(P) + sigmoid + loss on the tiny (B, P) adjacency.
    v_bin = _bn2_sigmoid(v_adj.reshape(B, P))
    s_bin = _bn2_sigmoid(s_adj.reshape(B, P))
    loss_time = _time_loss(v_bin, s_bin)

    # Kernel 3: masked patch replacement + output LayerNorm(T).
    onehot_tp = (jnp.arange(T, dtype=jnp.int32)[:, None] // S
                 == jnp.arange(P, dtype=jnp.int32)[None, :]).astype(jnp.float32)
    visual_restored, semantic_restored = run_restore(
        x, v_bin.reshape(B, 1, P), s_bin.reshape(B, 1, P), onehot_tp, S)

    return (visual_restored, semantic_restored,
            v_bin.reshape(B, P, 1), s_bin.reshape(B, P, 1), loss_time)


# --------------------------------------------------------------------------- #
# Deterministic parameter setup (nn.Linear shapes; matmul weights stored
# pre-transposed as (in, out); the `pp` weight kept in torch (1, P) layout).
# The `value` Linear of FeatureToAdjacencyMatrix is unused in forward.
# --------------------------------------------------------------------------- #
def init_selector_params(key, feature_size, patch_num, f_dim=_FDIM):
    keys = jax.random.split(key, 8)

    def lin(k, fan_in, shape):
        bound = 1.0 / jnp.sqrt(jnp.float32(fan_in))
        return jax.random.uniform(k, shape, jnp.float32, -bound, bound)

    return dict(
        we=lin(keys[0], feature_size, (feature_size, f_dim)),
        be=lin(keys[1], feature_size, (1, f_dim)),
        wq=lin(keys[2], f_dim, (f_dim, f_dim)),
        bq=lin(keys[3], f_dim, (1, f_dim)),
        wk=lin(keys[4], f_dim, (f_dim, f_dim)),
        bk=lin(keys[5], f_dim, (1, f_dim)),
        wpp=lin(keys[6], patch_num, (1, patch_num)),
        bpp=lin(keys[7], patch_num, (1, 1)),
    )


if __name__ == "__main__":
    # Small shapes consistent with the module: (B, n_channel, time_length),
    # timePatch_size divides time_length.
    B, C, T, S = 2, 16, 64, 8
    P = T // S
    F = C * S

    key = jax.random.PRNGKey(0)
    kx, kv, ks = jax.random.split(key, 3)
    x = jax.random.normal(kx, (B, C, T), dtype=jnp.float32)
    vparams = init_selector_params(kv, F, P)
    sparams = init_selector_params(ks, F, P)

    outs = time_disentangle_forward(x, vparams, sparams, S)
    jax.block_until_ready(outs)

    vr, sr, vb, sb, loss = outs
    assert vr.shape == (B, C, T) and sr.shape == (B, C, T)
    assert vb.shape == (B, P, 1) and sb.shape == (B, P, 1)
    assert loss.shape == ()
    for o in (vr, sr, vb, sb):
        assert bool(jnp.all(jnp.isfinite(o)))
    assert bool(jnp.isfinite(loss))
    print("KERNEL_OK")
</pallas_src>

<mosaic_0001>
module attributes {stable_mosaic.version = 11 : i64} {
  func.func @bn_stats_kernel(%arg0: i32, %arg1: memref<8x128xf32, #tpu.memory_space<vmem>>, %arg2: memref<1x1x128xf32, #tpu.memory_space<vmem>>, %arg3: memref<1x1x128xf32, #tpu.memory_space<vmem>>) attributes {dimension_semantics = [#tpu.dimension_semantics<parallel>], iteration_bounds = array<i64: 2>, scalar_prefetch = 0 : i64, scratch_operands = 0 : i64, tpu.core_type = #tpu.core_type<tc>, window_params = [{transform_indices = @transform_0, window_bounds = array<i64: 8, 128>}, {transform_indices = @transform_1, window_bounds = array<i64: 1, 1, 128>}, {transform_indices = @transform_2, window_bounds = array<i64: 1, 1, 128>}]} {
    %c0 = arith.constant 0 : index
    %c0_0 = arith.constant 0 : index
    %0 = vector.load %arg1[%c0, %c0_0] : memref<8x128xf32, #tpu.memory_space<vmem>>, vector<8x128xf32>
    %cst = arith.constant dense<0.000000e+00> : vector<8xf32>
    %1 = vector.multi_reduction <add>, %0, %cst [1] : vector<8x128xf32> to vector<8xf32>
    %2 = vector.shape_cast %1 : vector<8xf32> to vector<8x1xf32>
    %cst_1 = arith.constant 1.280000e+02 : f32
    %3 = vector.broadcast %cst_1 : f32 to vector<8x1xf32>
    %4 = arith.divf %2, %3 : vector<8x1xf32>
    %5 = vector.broadcast %4 : vector<8x1xf32> to vector<8x128xf32>
    %6 = arith.subf %0, %5 : vector<8x128xf32>
    %7 = arith.mulf %6, %6 : vector<8x128xf32>
    %cst_2 = arith.constant dense<0.000000e+00> : vector<8xf32>
    %8 = vector.multi_reduction <add>, %7, %cst_2 [1] : vector<8x128xf32> to vector<8xf32>
    %9 = vector.shape_cast %8 : vector<8xf32> to vector<8x1xf32>
    %cst_3 = arith.constant 1.280000e+02 : f32
    %10 = vector.broadcast %cst_3 : f32 to vector<8x1xf32>
    %11 = arith.divf %9, %10 : vector<8x1xf32>
    %12 = vector.broadcast %4 : vector<8x1xf32> to vector<8x128xf32>
    %13 = arith.subf %0, %12 : vector<8x128xf32>
    %cst_4 = arith.constant 9.99999974E-6 : f32
    %14 = vector.broadcast %cst_4 : f32 to vector<8x1xf32>
    %15 = arith.addf %11, %14 : vector<8x1xf32>
    %16 = math.rsqrt %15 : vector<8x1xf32>
    %17 = vector.broadcast %16 : vector<8x1xf32> to vector<8x128xf32>
    %18 = arith.mulf %13, %17 : vector<8x128xf32>
    %cst_5 = arith.constant dense<0.000000e+00> : vector<128xf32>
    %19 = vector.multi_reduction <add>, %18, %cst_5 [0] : vector<8x128xf32> to vector<128xf32>
    %20 = vector.shape_cast %19 : vector<128xf32> to vector<1x128xf32>
    %c0_6 = arith.constant 0 : index
    %c0_7 = arith.constant 0 : index
    %c0_8 = arith.constant 0 : index
    %21 = vector.load %arg2[%c0_6, %c0_7, %c0_8] : memref<1x1x128xf32, #tpu.memory_space<vmem>>, vector<1x1x128xf32>
    %22 = vector.shape_cast %21 : vector<1x1x128xf32> to vector<1x128xf32>
    %23 = vector.shape_cast %20 : vector<1x128xf32> to vector<1x1x128xf32>
    tpu.vector_store %arg2[%c0_6, %c0_7, %c0_8], %23 {strides = array<i32>} : memref<1x1x128xf32, #tpu.memory_space<vmem>>, vector<1x1x128xf32>,
    %24 = arith.mulf %18, %18 : vector<8x128xf32>
    %cst_9 = arith.constant dense<0.000000e+00> : vector<128xf32>
    %25 = vector.multi_reduction <add>, %24, %cst_9 [0] : vector<8x128xf32> to vector<128xf32>
    %26 = vector.shape_cast %25 : vector<128xf32> to vector<1x128xf32>
    %c0_10 = arith.constant 0 : index
    %c0_11 = arith.constant 0 : index
    %c0_12 = arith.constant 0 : index
    %27 = vector.load %arg3[%c0_10, %c0_11, %c0_12] : memref<1x1x128xf32, #tpu.memory_space<vmem>>, vector<1x1x128xf32>
    %28 = vector.shape_cast %27 : vector<1x1x128xf32> to vector<1x128xf32>
    %29 = vector.shape_cast %26 : vector<1x128xf32> to vector<1x1x128xf32>
    tpu.vector_store %arg3[%c0_10, %c0_11, %c0_12], %29 {strides = array<i32>} : memref<1x1x128xf32, #tpu.memory_space<vmem>>, vector<1x1x128xf32>,
    return
  }
  func.func @transform_0(%arg0: i32) -> (i32, i32) {
    %c0_i32 = arith.constant 0 : i32
    %c0_i32_0 = arith.constant 0 : i32
    return %arg0, %c0_i32 : i32, i32
  }
  func.func @transform_1(%arg0: i32) -> (i32, i32, i32) {
    %c0_i32 = arith.constant 0 : i32
    %c0_i32_0 = arith.constant 0 : i32
    %c0_i32_1 = arith.constant 0 : i32
    return %arg0, %c0_i32, %c0_i32_0 : i32, i32, i32
  }
  func.func @transform_2(%arg0: i32) -> (i32, i32, i32) {
    %c0_i32 = arith.constant 0 : i32
    %c0_i32_0 = arith.constant 0 : i32
    %c0_i32_1 = arith.constant 0 : i32
    return %arg0, %c0_i32, %c0_i32_0 : i32, i32, i32
  }
}

module attributes {stable_mosaic.version = 11 : i64} {
  func.func @selector_kernel(%arg0: i32, %arg1: memref<8x128xf32, #tpu.memory_space<vmem>>, %arg2: memref<128x512xf32, #tpu.memory_space<vmem>>, %arg3: memref<1x512xf32, #tpu.memory_space<vmem>>, %arg4: memref<1x8xf32, #tpu.memory_space<vmem>>, %arg5: memref<256x256xf32, #tpu.memory_space<vmem>>, %arg6: memref<1x256xf32, #tpu.memory_space<vmem>>, %arg7: memref<1x256xf32, #tpu.memory_space<vmem>>, %arg8: memref<1x1xf32, #tpu.memory_space<vmem>>, %arg9: memref<1x8xf32, #tpu.memory_space<vmem>>, %arg10: memref<256x256xf32, #tpu.memory_space<vmem>>, %arg11: memref<1x256xf32, #tpu.memory_space<vmem>>, %arg12: memref<1x256xf32, #tpu.memory_space<vmem>>, %arg13: memref<1x1xf32, #tpu.memory_space<vmem>>, %arg14: memref<8x1xf32, #tpu.memory_space<vmem>>, %arg15: memref<8x1xf32, #tpu.memory_space<vmem>>) attributes {dimension_semantics = [#tpu.dimension_semantics<parallel>], iteration_bounds = array<i64: 2>, scalar_prefetch = 0 : i64, scratch_operands = 0 : i64, tpu.core_type = #tpu.core_type<tc>, window_params = [{transform_indices = @transform_0, window_bounds = array<i64: 8, 128>}, {pipeline_mode = #tpu.pipeline_mode<synchronous>, transform_indices = @transform_1, window_bounds = array<i64: 128, 512>}, {pipeline_mode = #tpu.pipeline_mode<synchronous>, transform_indices = @transform_2, window_bounds = array<i64: 1, 512>}, {pipeline_mode = #tpu.pipeline_mode<synchronous>, transform_indices = @transform_3, window_bounds = array<i64: 1, 8>}, {pipeline_mode = #tpu.pipeline_mode<synchronous>, transform_indices = @transform_4, window_bounds = array<i64: 256, 256>}, {pipeline_mode = #tpu.pipeline_mode<synchronous>, transform_indices = @transform_5, window_bounds = array<i64: 1, 256>}, {pipeline_mode = #tpu.pipeline_mode<synchronous>, transform_indices = @transform_6, window_bounds = array<i64: 1, 256>}, {pipeline_mode = #tpu.pipeline_mode<synchronous>, transform_indices = @transform_7, window_bounds = array<i64: 1, 1>}, {pipeline_mode = #tpu.pipeline_mode<synchronous>, transform_indices = @transform_8, window_bounds = array<i64: 1, 8>}, {pipeline_mode = #tpu.pipeline_mode<synchronous>, transform_indices = @transform_9, window_bounds = array<i64: 256, 256>}, {pipeline_mode = #tpu.pipeline_mode<synchronous>, transform_indices = @transform_10, window_bounds = array<i64: 1, 256>}, {pipeline_mode = #tpu.pipeline_mode<synchronous>, transform_indices = @transform_11, window_bounds = array<i64: 1, 256>}, {pipeline_mode = #tpu.pipeline_mode<synchronous>, transform_indices = @transform_12, window_bounds = array<i64: 1, 1>}, {transform_indices = @transform_13, window_bounds = array<i64: 8, 1>}, {transform_indices = @transform_14, window_bounds = array<i64: 8, 1>}]} {
    %c0 = arith.constant 0 : index
    %c0_0 = arith.constant 0 : index
    %0 = vector.load %arg1[%c0, %c0_0] : memref<8x128xf32, #tpu.memory_space<vmem>>, vector<8x128xf32>
    %cst = arith.constant dense<0.000000e+00> : vector<8xf32>
    %1 = vector.multi_reduction <add>, %0, %cst [1] : vector<8x128xf32> to vector<8xf32>
    %2 = vector.shape_cast %1 : vector<8xf32> to vector<8x1xf32>
    %cst_1 = arith.constant 1.280000e+02 : f32
    %3 = vector.broadcast %cst_1 : f32 to vector<8x1xf32>
    %4 = arith.divf %2, %3 : vector<8x1xf32>
    %5 = vector.broadcast %4 : vector<8x1xf32> to vector<8x128xf32>
    %6 = arith.subf %0, %5 : vector<8x128xf32>
    %7 = arith.mulf %6, %6 : vector<8x128xf32>
    %cst_2 = arith.constant dense<0.000000e+00> : vector<8xf32>
    %8 = vector.multi_reduction <add>, %7, %cst_2 [1] : vector<8x128xf32> to vector<8xf32>
    %9 = vector.shape_cast %8 : vector<8xf32> to vector<8x1xf32>
    %cst_3 = arith.constant 1.280000e+02 : f32
    %10 = vector.broadcast %cst_3 : f32 to vector<8x1xf32>
    %11 = arith.divf %9, %10 : vector<8x1xf32>
    %12 = vector.broadcast %4 : vector<8x1xf32> to vector<8x128xf32>
    %13 = arith.subf %0, %12 : vector<8x128xf32>
    %cst_4 = arith.constant 9.99999974E-6 : f32
    %14 = vector.broadcast %cst_4 : f32 to vector<8x1xf32>
    %15 = arith.addf %11, %14 : vector<8x1xf32>
    %16 = math.rsqrt %15 : vector<8x1xf32>
    %17 = vector.broadcast %16 : vector<8x1xf32> to vector<8x128xf32>
    %18 = arith.mulf %13, %17 : vector<8x128xf32>
    %c0_5 = arith.constant 0 : index
    %c0_6 = arith.constant 0 : index
    %19 = vector.load %arg2[%c0_5, %c0_6] : memref<128x512xf32, #tpu.memory_space<vmem>>, vector<128x512xf32>
    %cst_7 = arith.constant dense<0.000000e+00> : vector<8x512xf32>
    %20 = tpu.matmul %18, %19, %cst_7 {dimension_numbers = #tpu.dot_dimension_numbers<[1], [0], [0], [1], [0, 0, 1, 1], [], []>} : vector<8x128xf32>, vector<128x512xf32>, vector<8x512xf32> -> vector<8x512xf32>
    %c0_8 = arith.constant 0 : index
    %c0_9 = arith.constant 0 : index
    %21 = vector.load %arg3[%c0_8, %c0_9] : memref<1x512xf32, #tpu.memory_space<vmem>>, vector<1x512xf32>
    %22 = vector.broadcast %21 : vector<1x512xf32> to vector<8x512xf32>
    %23 = arith.addf %20, %22 : vector<8x512xf32>
    %cst_10 = arith.constant 0.000000e+00 : f32
    %24 = vector.broadcast %cst_10 : f32 to vector<8x512xf32>
    %25 = arith.maximumf %23, %24 : vector<8x512xf32>
    %26 = vector.extract_strided_slice %25 {offsets = [0, 0], sizes = [8, 256], strides = [1, 1]} : vector<8x512xf32> to vector<8x256xf32>
    %c0_11 = arith.constant 0 : index
    %c0_12 = arith.constant 0 : index
    %27 = vector.load %arg4[%c0_11, %c0_12] : memref<1x8xf32, #tpu.memory_space<vmem>>, vector<1x8xf32>
    %cst_13 = arith.constant dense<0.000000e+00> : vector<1x256xf32>
    %28 = tpu.matmul %27, %26, %cst_13 {dimension_numbers = #tpu.dot_dimension_numbers<[1], [0], [0], [1], [0, 0, 1, 1], [], []>} : vector<1x8xf32>, vector<8x256xf32>, vector<1x256xf32> -> vector<1x256xf32>
    %c0_14 = arith.constant 0 : index
    %c0_15 = arith.constant 0 : index
    %29 = vector.load %arg5[%c0_14, %c0_15] : memref<256x256xf32, #tpu.memory_space<vmem>>, vector<256x256xf32>
    %cst_16 = arith.constant dense<0.000000e+00> : vector<1x256xf32>
    %30 = tpu.matmul %28, %29, %cst_16 {dimension_numbers = #tpu.dot_dimension_numbers<[1], [0], [0], [1], [0, 0, 1, 1], [], []>} : vector<1x256xf32>, vector<256x256xf32>, vector<1x256xf32> -> vector<1x256xf32>
    %c0_17 = arith.constant 0 : index
    %c0_18 = arith.constant 0 : index
    %31 = vector.load %arg6[%c0_17, %c0_18] : memref<1x256xf32, #tpu.memory_space<vmem>>, vector<1x256xf32>
    %32 = arith.addf %30, %31 : vector<1x256xf32>
    %c0_19 = arith.constant 0 : index
    %c0_20 = arith.constant 0 : index
    %33 = vector.load %arg7[%c0_19, %c0_20] : memref<1x256xf32, #tpu.memory_space<vmem>>, vector<1x256xf32>
    %34 = arith.mulf %28, %33 : vector<1x256xf32>
    %cst_21 = arith.constant dense<0.000000e+00> : vector<1xf32>
    %35 = vector.multi_reduction <add>, %34, %cst_21 [1] : vector<1x256xf32> to vector<1xf32>
    %36 = vector.shape_cast %35 : vector<1xf32> to vector<1x1xf32>
    %c0_22 = arith.constant 0 : index
    %c0_23 = arith.constant 0 : index
    %37 = vector.load %arg8[%c0_22, %c0_23] : memref<1x1xf32, #tpu.memory_space<vmem>>, vector<1x1xf32>
    %38 = arith.addf %36, %37 : vector<1x1xf32>
    %39 = vector.broadcast %32 : vector<1x256xf32> to vector<8x256xf32>
    %40 = arith.mulf %26, %39 : vector<8x256xf32>
    %cst_24 = arith.constant dense<0.000000e+00> : vector<8xf32>
    %41 = vector.multi_reduction <add>, %40, %cst_24 [1] : vector<8x256xf32> to vector<8xf32>
    %42 = vector.shape_cast %41 : vector<8xf32> to vector<8x1xf32>
    %43 = vector.broadcast %38 : vector<1x1xf32> to vector<8x1xf32>
    %44 = arith.addf %42, %43 : vector<8x1xf32>
    %c0_25 = arith.constant 0 : index
    %c0_26 = arith.constant 0 : index
    %45 = vector.load %arg14[%c0_25, %c0_26] : memref<8x1xf32, #tpu.memory_space<vmem>>, vector<8x1xf32>
    tpu.vector_store %arg14[%c0_25, %c0_26], %44 {strides = array<i32>} : memref<8x1xf32, #tpu.memory_space<vmem>>, vector<8x1xf32>,
    %46 = vector.extract_strided_slice %25 {offsets = [0, 256], sizes = [8, 256], strides = [1, 1]} : vector<8x512xf32> to vector<8x256xf32>
    %c0_27 = arith.constant 0 : index
    %c0_28 = arith.constant 0 : index
    %47 = vector.load %arg9[%c0_27, %c0_28] : memref<1x8xf32, #tpu.memory_space<vmem>>, vector<1x8xf32>
    %cst_29 = arith.constant dense<0.000000e+00> : vector<1x256xf32>
    %48 = tpu.matmul %47, %46, %cst_29 {dimension_numbers = #tpu.dot_dimension_numbers<[1], [0], [0], [1], [0, 0, 1, 1], [], []>} : vector<1x8xf32>, vector<8x256xf32>, vector<1x256xf32> -> vector<1x256xf32>
    %c0_30 = arith.constant 0 : index
    %c0_31 = arith.constant 0 : index
    %49 = vector.load %arg10[%c0_30, %c0_31] : memref<256x256xf32, #tpu.memory_space<vmem>>, vector<256x256xf32>
    %cst_32 = arith.constant dense<0.000000e+00> : vector<1x256xf32>
    %50 = tpu.matmul %48, %49, %cst_32 {dimension_numbers = #tpu.dot_dimension_numbers<[1], [0], [0], [1], [0, 0, 1, 1], [], []>} : vector<1x256xf32>, vector<256x256xf32>, vector<1x256xf32> -> vector<1x256xf32>
    %c0_33 = arith.constant 0 : index
    %c0_34 = arith.constant 0 : index
    %51 = vector.load %arg11[%c0_33, %c0_34] : memref<1x256xf32, #tpu.memory_space<vmem>>, vector<1x256xf32>
    %52 = arith.addf %50, %51 : vector<1x256xf32>
    %c0_35 = arith.constant 0 : index
    %c0_36 = arith.constant 0 : index
    %53 = vector.load %arg12[%c0_35, %c0_36] : memref<1x256xf32, #tpu.memory_space<vmem>>, vector<1x256xf32>
    %54 = arith.mulf %48, %53 : vector<1x256xf32>
    %cst_37 = arith.constant dense<0.000000e+00> : vector<1xf32>
    %55 = vector.multi_reduction <add>, %54, %cst_37 [1] : vector<1x256xf32> to vector<1xf32>
    %56 = vector.shape_cast %55 : vector<1xf32> to vector<1x1xf32>
    %c0_38 = arith.constant 0 : index
    %c0_39 = arith.constant 0 : index
    %57 = vector.load %arg13[%c0_38, %c0_39] : memref<1x1xf32, #tpu.memory_space<vmem>>, vector<1x1xf32>
    %58 = arith.addf %56, %57 : vector<1x1xf32>
    %59 = vector.broadcast %52 : vector<1x256xf32> to vector<8x256xf32>
    %60 = arith.mulf %46, %59 : vector<8x256xf32>
    %cst_40 = arith.constant dense<0.000000e+00> : vector<8xf32>
    %61 = vector.multi_reduction <add>, %60, %cst_40 [1] : vector<8x256xf32> to vector<8xf32>
    %62 = vector.shape_cast %61 : vector<8xf32> to vector<8x1xf32>
    %63 = vector.broadcast %58 : vector<1x1xf32> to vector<8x1xf32>
    %64 = arith.addf %62, %63 : vector<8x1xf32>
    %c0_41 = arith.constant 0 : index
    %c0_42 = arith.constant 0 : index
    %65 = vector.load %arg15[%c0_41, %c0_42] : memref<8x1xf32, #tpu.memory_space<vmem>>, vector<8x1xf32>
    tpu.vector_store %arg15[%c0_41, %c0_42], %64 {strides = array<i32>} : memref<8x1xf32, #tpu.memory_space<vmem>>, vector<8x1xf32>,
    return
  }
  func.func @transform_0(%arg0: i32) -> (i32, i32) {
    %c0_i32 = arith.constant 0 : i32
    %c0_i32_0 = arith.constant 0 : i32
    return %arg0, %c0_i32 : i32, i32
  }
  func.func @transform_1(%arg0: i32) -> (i32, i32) {
    %c0_i32 = arith.constant 0 : i32
    %c0_i32_0 = arith.constant 0 : i32
    %c0_i32_1 = arith.constant 0 : i32
    return %c0_i32, %c0_i32_0 : i32, i32
  }
  func.func @transform_2(%arg0: i32) -> (i32, i32) {
    %c0_i32 = arith.constant 0 : i32
    %c0_i32_0 = arith.constant 0 : i32
    %c0_i32_1 = arith.constant 0 : i32
    return %c0_i32, %c0_i32_0 : i32, i32
  }
  func.func @transform_3(%arg0: i32) -> (i32, i32) {
    %c0_i32 = arith.constant 0 : i32
    %c0_i32_0 = arith.constant 0 : i32
    %c0_i32_1 = arith.constant 0 : i32
    return %c0_i32, %c0_i32_0 : i32, i32
  }
  func.func @transform_4(%arg0: i32) -> (i32, i32) {
    %c0_i32 = arith.constant 0 : i32
    %c0_i32_0 = arith.constant 0 : i32
    %c0_i32_1 = arith.constant 0 : i32
    return %c0_i32, %c0_i32_0 : i32, i32
  }
  func.func @transform_5(%arg0: i32) -> (i32, i32) {
    %c0_i32 = arith.constant 0 : i32
    %c0_i32_0 = arith.constant 0 : i32
    %c0_i32_1 = arith.constant 0 : i32
    return %c0_i32, %c0_i32_0 : i32, i32
  }
  func.func @transform_6(%arg0: i32) -> (i32, i32) {
    %c0_i32 = arith.constant 0 : i32
    %c0_i32_0 = arith.constant 0 : i32
    %c0_i32_1 = arith.constant 0 : i32
    return %c0_i32, %c0_i32_0 : i32, i32
  }
  func.func @transform_7(%arg0: i32) -> (i32, i32) {
    %c0_i32 = arith.constant 0 : i32
    %c0_i32_0 = arith.constant 0 : i32
    %c0_i32_1 = arith.constant 0 : i32
    return %c0_i32, %c0_i32_0 : i32, i32
  }
  func.func @transform_8(%arg0: i32) -> (i32, i32) {
    %c0_i32 = arith.constant 0 : i32
    %c0_i32_0 = arith.constant 0 : i32
    %c0_i32_1 = arith.constant 0 : i32
    return %c0_i32, %c0_i32_0 : i32, i32
  }
  func.func @transform_9(%arg0: i32) -> (i32, i32) {
    %c0_i32 = arith.constant 0 : i32
    %c0_i32_0 = arith.constant 0 : i32
    %c0_i32_1 = arith.constant 0 : i32
    return %c0_i32, %c0_i32_0 : i32, i32
  }
  func.func @transform_10(%arg0: i32) -> (i32, i32) {
    %c0_i32 = arith.constant 0 : i32
    %c0_i32_0 = arith.constant 0 : i32
    %c0_i32_1 = arith.constant 0 : i32
    return %c0_i32, %c0_i32_0 : i32, i32
  }
  func.func @transform_11(%arg0: i32) -> (i32, i32) {
    %c0_i32 = arith.constant 0 : i32
    %c0_i32_0 = arith.constant 0 : i32
    %c0_i32_1 = arith.constant 0 : i32
    return %c0_i32, %c0_i32_0 : i32, i32
  }
  func.func @transform_12(%arg0: i32) -> (i32, i32) {
    %c0_i32 = arith.constant 0 : i32
    %c0_i32_0 = arith.constant 0 : i32
    %c0_i32_1 = arith.constant 0 : i32
    return %c0_i32, %c0_i32_0 : i32, i32
  }
  func.func @transform_13(%arg0: i32) -> (i32, i32) {
    %c0_i32 = arith.constant 0 : i32
    %c0_i32_0 = arith.constant 0 : i32
    return %arg0, %c0_i32 : i32, i32
  }
  func.func @transform_14(%arg0: i32) -> (i32, i32) {
    %c0_i32 = arith.constant 0 : i32
    %c0_i32_0 = arith.constant 0 : i32
    return %arg0, %c0_i32 : i32, i32
  }
}

module attributes {stable_mosaic.version = 11 : i64} {
  func.func @restore_kernel(%arg0: i32, %arg1: i32, %arg2: memref<1x16x64xf32, #tpu.memory_space<vmem>>, %arg3: memref<1x1x8xf32, #tpu.memory_space<vmem>>, %arg4: memref<1x1x8xf32, #tpu.memory_space<vmem>>, %arg5: memref<64x8xf32, #tpu.memory_space<vmem>>, %arg6: memref<1x16x64xf32, #tpu.memory_space<vmem>>, %arg7: memref<1x16x64xf32, #tpu.memory_space<vmem>>) attributes {dimension_semantics = [#tpu.dimension_semantics<parallel>, #tpu.dimension_semantics<parallel>], iteration_bounds = array<i64: 2, 1>, scalar_prefetch = 0 : i64, scratch_operands = 0 : i64, tpu.core_type = #tpu.core_type<tc>, window_params = [{transform_indices = @transform_0, window_bounds = array<i64: 1, 16, 64>}, {transform_indices = @transform_1, window_bounds = array<i64: 1, 1, 8>}, {transform_indices = @transform_2, window_bounds = array<i64: 1, 1, 8>}, {pipeline_mode = #tpu.pipeline_mode<synchronous>, transform_indices = @transform_3, window_bounds = array<i64: 64, 8>}, {transform_indices = @transform_4, window_bounds = array<i64: 1, 16, 64>}, {transform_indices = @transform_5, window_bounds = array<i64: 1, 16, 64>}]} {
    %c0 = arith.constant 0 : index
    %c0_0 = arith.constant 0 : index
    %c0_1 = arith.constant 0 : index
    %0 = vector.load %arg2[%c0, %c0_0, %c0_1] : memref<1x16x64xf32, #tpu.memory_space<vmem>>, vector<1x16x64xf32>
    %1 = vector.shape_cast %0 : vector<1x16x64xf32> to vector<16x64xf32>
    %c0_2 = arith.constant 0 : index
    %c0_3 = arith.constant 0 : index
    %2 = vector.load %arg5[%c0_2, %c0_3] : memref<64x8xf32, #tpu.memory_space<vmem>>, vector<64x8xf32>
    %cst = arith.constant dense<0.000000e+00> : vector<16x8xf32>
    %3 = tpu.matmul %1, %2, %cst {dimension_numbers = #tpu.dot_dimension_numbers<[1], [0], [0], [1], [0, 0, 1, 1], [], []>, precision = #tpu.contract_precision<fp32>} : vector<16x64xf32>, vector<64x8xf32>, vector<16x8xf32> -> vector<16x8xf32>
    %cst_4 = arith.constant 1.250000e-01 : f32
    %4 = vector.broadcast %cst_4 : f32 to vector<16x8xf32>
    %5 = arith.mulf %3, %4 : vector<16x8xf32>
    %cst_5 = arith.constant dense<0.000000e+00> : vector<16x64xf32>
    %6 = tpu.matmul %5, %2, %cst_5 {dimension_numbers = #tpu.dot_dimension_numbers<[1], [1], [0], [0], [0, 0, 1, 0], [], []>, precision = #tpu.contract_precision<fp32>} : vector<16x8xf32>, vector<64x8xf32>, vector<16x64xf32> -> vector<16x64xf32>
    %c0_6 = arith.constant 0 : index
    %c0_7 = arith.constant 0 : index
    %c0_8 = arith.constant 0 : index
    %7 = vector.load %arg3[%c0_6, %c0_7, %c0_8] : memref<1x1x8xf32, #tpu.memory_space<vmem>>, vector<1x1x8xf32>
    %8 = vector.shape_cast %7 : vector<1x1x8xf32> to vector<1x8xf32>
    %cst_9 = arith.constant 5.000000e-01 : f32
    %9 = vector.broadcast %cst_9 : f32 to vector<1x8xf32>
    %10 = arith.cmpf ogt, %8, %9 : vector<1x8xf32>
    %11 = arith.extui %10 : vector<1x8xi1> to vector<1x8xi32>
    %12 = arith.sitofp %11 : vector<1x8xi32> to vector<1x8xf32>
    %cst_10 = arith.constant dense<0.000000e+00> : vector<1x64xf32>
    %13 = tpu.matmul %12, %2, %cst_10 {dimension_numbers = #tpu.dot_dimension_numbers<[1], [1], [0], [0], [0, 0, 1, 0], [], []>} : vector<1x8xf32>, vector<64x8xf32>, vector<1x64xf32> -> vector<1x64xf32>
    %cst_11 = arith.constant 5.000000e-01 : f32
    %14 = vector.broadcast %cst_11 : f32 to vector<1x64xf32>
    %15 = arith.cmpf ogt, %13, %14 : vector<1x64xf32>
    %16 = vector.shape_cast %15 : vector<1x64xi1> to vector<1x64xi1>
    %17 = vector.broadcast %16 : vector<1x64xi1> to vector<16x64xi1>
    %18 = arith.select %17, %1, %6 : vector<16x64xi1>, vector<16x64xf32>
    %cst_12 = arith.constant dense<0.000000e+00> : vector<16xf32>
    %19 = vector.multi_reduction <add>, %18, %cst_12 [1] : vector<16x64xf32> to vector<16xf32>
    %20 = vector.shape_cast %19 : vector<16xf32> to vector<16x1xf32>
    %cst_13 = arith.constant 6.400000e+01 : f32
    %21 = vector.broadcast %cst_13 : f32 to vector<16x1xf32>
    %22 = arith.divf %20, %21 : vector<16x1xf32>
    %23 = vector.broadcast %22 : vector<16x1xf32> to vector<16x64xf32>
    %24 = arith.subf %18, %23 : vector<16x64xf32>
    %25 = arith.mulf %24, %24 : vector<16x64xf32>
    %cst_14 = arith.constant dense<0.000000e+00> : vector<16xf32>
    %26 = vector.multi_reduction <add>, %25, %cst_14 [1] : vector<16x64xf32> to vector<16xf32>
    %27 = vector.shape_cast %26 : vector<16xf32> to vector<16x1xf32>
    %cst_15 = arith.constant 6.400000e+01 : f32
    %28 = vector.broadcast %cst_15 : f32 to vector<16x1xf32>
    %29 = arith.divf %27, %28 : vector<16x1xf32>
    %30 = vector.broadcast %22 : vector<16x1xf32> to vector<16x64xf32>
    %31 = arith.subf %18, %30 : vector<16x64xf32>
    %cst_16 = arith.constant 9.99999974E-6 : f32
    %32 = vector.broadcast %cst_16 : f32 to vector<16x1xf32>
    %33 = arith.addf %29, %32 : vector<16x1xf32>
    %34 = math.rsqrt %33 : vector<16x1xf32>
    %35 = vector.broadcast %34 : vector<16x1xf32> to vector<16x64xf32>
    %36 = arith.mulf %31, %35 : vector<16x64xf32>
    %c0_17 = arith.constant 0 : index
    %c0_18 = arith.constant 0 : index
    %c0_19 = arith.constant 0 : index
    %37 = vector.load %arg6[%c0_17, %c0_18, %c0_19] : memref<1x16x64xf32, #tpu.memory_space<vmem>>, vector<1x16x64xf32>
    %38 = vector.shape_cast %37 : vector<1x16x64xf32> to vector<16x64xf32>
    %39 = vector.shape_cast %36 : vector<16x64xf32> to vector<1x16x64xf32>
    tpu.vector_store %arg6[%c0_17, %c0_18, %c0_19], %39 {strides = array<i32>} : memref<1x16x64xf32, #tpu.memory_space<vmem>>, vector<1x16x64xf32>,
    %c0_20 = arith.constant 0 : index
    %c0_21 = arith.constant 0 : index
    %c0_22 = arith.constant 0 : index
    %40 = vector.load %arg4[%c0_20, %c0_21, %c0_22] : memref<1x1x8xf32, #tpu.memory_space<vmem>>, vector<1x1x8xf32>
    %41 = vector.shape_cast %40 : vector<1x1x8xf32> to vector<1x8xf32>
    %cst_23 = arith.constant 5.000000e-01 : f32
    %42 = vector.broadcast %cst_23 : f32 to vector<1x8xf32>
    %43 = arith.cmpf ogt, %41, %42 : vector<1x8xf32>
    %44 = arith.extui %43 : vector<1x8xi1> to vector<1x8xi32>
    %45 = arith.sitofp %44 : vector<1x8xi32> to vector<1x8xf32>
    %cst_24 = arith.constant dense<0.000000e+00> : vector<1x64xf32>
    %46 = tpu.matmul %45, %2, %cst_24 {dimension_numbers = #tpu.dot_dimension_numbers<[1], [1], [0], [0], [0, 0, 1, 0], [], []>} : vector<1x8xf32>, vector<64x8xf32>, vector<1x64xf32> -> vector<1x64xf32>
    %cst_25 = arith.constant 5.000000e-01 : f32
    %47 = vector.broadcast %cst_25 : f32 to vector<1x64xf32>
    %48 = arith.cmpf ogt, %46, %47 : vector<1x64xf32>
    %49 = vector.shape_cast %48 : vector<1x64xi1> to vector<1x64xi1>
    %50 = vector.broadcast %49 : vector<1x64xi1> to vector<16x64xi1>
    %51 = arith.select %50, %1, %6 : vector<16x64xi1>, vector<16x64xf32>
    %cst_26 = arith.constant dense<0.000000e+00> : vector<16xf32>
    %52 = vector.multi_reduction <add>, %51, %cst_26 [1] : vector<16x64xf32> to vector<16xf32>
    %53 = vector.shape_cast %52 : vector<16xf32> to vector<16x1xf32>
    %cst_27 = arith.constant 6.400000e+01 : f32
    %54 = vector.broadcast %cst_27 : f32 to vector<16x1xf32>
    %55 = arith.divf %53, %54 : vector<16x1xf32>
    %56 = vector.broadcast %55 : vector<16x1xf32> to vector<16x64xf32>
    %57 = arith.subf %51, %56 : vector<16x64xf32>
    %58 = arith.mulf %57, %57 : vector<16x64xf32>
    %cst_28 = arith.constant dense<0.000000e+00> : vector<16xf32>
    %59 = vector.multi_reduction <add>, %58, %cst_28 [1] : vector<16x64xf32> to vector<16xf32>
    %60 = vector.shape_cast %59 : vector<16xf32> to vector<16x1xf32>
    %cst_29 = arith.constant 6.400000e+01 : f32
    %61 = vector.broadcast %cst_29 : f32 to vector<16x1xf32>
    %62 = arith.divf %60, %61 : vector<16x1xf32>
    %63 = vector.broadcast %55 : vector<16x1xf32> to vector<16x64xf32>
    %64 = arith.subf %51, %63 : vector<16x64xf32>
    %cst_30 = arith.constant 9.99999974E-6 : f32
    %65 = vector.broadcast %cst_30 : f32 to vector<16x1xf32>
    %66 = arith.addf %62, %65 : vector<16x1xf32>
    %67 = math.rsqrt %66 : vector<16x1xf32>
    %68 = vector.broadcast %67 : vector<16x1xf32> to vector<16x64xf32>
    %69 = arith.mulf %64, %68 : vector<16x64xf32>
    %c0_31 = arith.constant 0 : index
    %c0_32 = arith.constant 0 : index
    %c0_33 = arith.constant 0 : index
    %70 = vector.load %arg7[%c0_31, %c0_32, %c0_33] : memref<1x16x64xf32, #tpu.memory_space<vmem>>, vector<1x16x64xf32>
    %71 = vector.shape_cast %70 : vector<1x16x64xf32> to vector<16x64xf32>
    %72 = vector.shape_cast %69 : vector<16x64xf32> to vector<1x16x64xf32>
    tpu.vector_store %arg7[%c0_31, %c0_32, %c0_33], %72 {strides = array<i32>} : memref<1x16x64xf32, #tpu.memory_space<vmem>>, vector<1x16x64xf32>,
    return
  }
  func.func @transform_0(%arg0: i32, %arg1: i32) -> (i32, i32, i32) {
    %c0_i32 = arith.constant 0 : i32
    %c0_i32_0 = arith.constant 0 : i32
    return %arg0, %arg1, %c0_i32 : i32, i32, i32
  }
  func.func @transform_1(%arg0: i32, %arg1: i32) -> (i32, i32, i32) {
    %c0_i32 = arith.constant 0 : i32
    %c0_i32_0 = arith.constant 0 : i32
    %c0_i32_1 = arith.constant 0 : i32
    return %arg0, %c0_i32, %c0_i32_0 : i32, i32, i32
  }
  func.func @transform_2(%arg0: i32, %arg1: i32) -> (i32, i32, i32) {
    %c0_i32 = arith.constant 0 : i32
    %c0_i32_0 = arith.constant 0 : i32
    %c0_i32_1 = arith.constant 0 : i32
    return %arg0, %c0_i32, %c0_i32_0 : i32, i32, i32
  }
  func.func @transform_3(%arg0: i32, %arg1: i32) -> (i32, i32) {
    %c0_i32 = arith.constant 0 : i32
    %c0_i32_0 = arith.constant 0 : i32
    %c0_i32_1 = arith.constant 0 : i32
    return %c0_i32, %c0_i32_0 : i32, i32
  }
  func.func @transform_4(%arg0: i32, %arg1: i32) -> (i32, i32, i32) {
    %c0_i32 = arith.constant 0 : i32
    %c0_i32_0 = arith.constant 0 : i32
    return %arg0, %arg1, %c0_i32 : i32, i32, i32
  }
  func.func @transform_5(%arg0: i32, %arg1: i32) -> (i32, i32, i32) {
    %c0_i32 = arith.constant 0 : i32
    %c0_i32_0 = arith.constant 0 : i32
    return %arg0, %arg1, %c0_i32 : i32, i32, i32
  }
}

</mosaic_0001>

<llo_original>
// kernel: time_disentangle_forward.3
$region0: #{time_disentangle_forward.3}
  #allocation0 [shape = 'u32[]', space=smem, size = 0x4, offset = 0x4, fixed_abs, tag = 'smem constant byte address 0x4 - core index']
  #allocation1 [shape = 'u32[72,128]{1,0:T(1,128)}', space=vmem, size = 0x9000, scoped, tag = 'internal scratch']
  %s0 = inlined_call_operand.vmem [shape: f32[16,128], index: 0, kind: input, shape index: {}]
  %s1 = inlined_call_operand.vmem [shape: f32[2,1,128], index: 1, kind: output, shape index: {0}]
  %s2 = inlined_call_operand.vmem [shape: f32[2,1,128], index: 2, kind: output, shape index: {1}]
  %3 = xla_tuple %s1, %s2
  %s4 = sld [smem:[#allocation0]]
  $region45: #{time_disentangle_forward.3} parent=0
    _
  %s6 = ssub.s32 1, %s4
  %s7 = scalar_select 0, %s6, %s4
  loop: start=0, step=1, limit=4
  $region2: #{time_disentangle_forward.3} parent=0 // loop_pre_header
    _
  $region3: #{time_disentangle_forward.3} parent=0 // loop_header
    %s9 = sphi 0, %s13
    %p10 = scmp.ge.s32.totalorder %s9, 4
    %s19 = sphi 0, %s21
    %s22 = sphi 0, %s19
    %s23 = sphi 0, %s22
    %s39 = sphi 0, %s23
    %s45 = sphi 0, %s47
    %s48 = sphi 0, %s45
    %s49 = sphi 0, %s48
    %s65 = sphi 0, %s49
    %s71 = sphi 0, %s73
    %s74 = sphi 0, %s71
    %s75 = sphi 0, %s74
    %s91 = sphi 0, %s75
  $region4: #{time_disentangle_forward.3} parent=0 // loop_header_branch
    %12 = sbr.rel (%p10) target = $region8
  $region5: #{time_disentangle_forward.3} parent=0 // loop_body
    %s14 = ssub.s32 %s9, 1
    %s15 = ssub.s32 %s9, 2
    %s16 = sadd.s32 %s9, 1
    %s17 = ssub.s32 %s9, %s16
    %p18 = scmp.eq.s32.totalorder %s17, 0
    %s20 = sadd.s32 %s19, 1
    %s21 = scalar_select %p18, %s19, %s20
    %p24 = pneg %p18
    %p25 = scmp.eq.s32.totalorder %s9, 1
    %p26 = por %p24, %p25
    %p27 = scmp.ne.s32.totalorder %s19, %s22
    %p28 = scmp.eq.s32.totalorder %s9, 0
    %p29 = por %p27, %p28
    %p30 = scmp.ne.s32.totalorder %s19, %s22
    %p31 = scmp.eq.s32.totalorder %s14, 1
    %p32 = por %p30, %p31
    %p33 = scmp.ne.s32.totalorder %s22, %s23
    %p34 = scmp.eq.s32.totalorder %s14, 0
    %p35 = por %p33, %p34
    %p36 = scmp.ne.s32.totalorder %s22, %s23
    %p37 = scmp.eq.s32.totalorder %s15, 1
    %p38 = por %p36, %p37
    %p40 = scmp.ne.s32.totalorder %s23, %s39
    %p41 = scmp.eq.s32.totalorder %s15, 0
    %p42 = por %p40, %p41
    %s43 = ssub.s32 %s9, %s16
    %p44 = scmp.eq.s32.totalorder %s43, 0
    %s46 = sadd.s32 %s45, 1
    %s47 = scalar_select %p44, %s45, %s46
    %p50 = pneg %p44
    %p51 = scmp.eq.s32.totalorder %s9, 1
    %p52 = por %p50, %p51
    %p53 = scmp.ne.s32.totalorder %s45, %s48
    %p54 = scmp.eq.s32.totalorder %s9, 0
    %p55 = por %p53, %p54
    %p56 = scmp.ne.s32.totalorder %s45, %s48
    %p57 = scmp.eq.s32.totalorder %s14, 1
    %p58 = por %p56, %p57
    %p59 = scmp.ne.s32.totalorder %s48, %s49
    %p60 = scmp.eq.s32.totalorder %s14, 0
    %p61 = por %p59, %p60
    %p62 = scmp.ne.s32.totalorder %s48, %s49
    %p63 = scmp.eq.s32.totalorder %s15, 1
    %p64 = por %p62, %p63
    %p66 = scmp.ne.s32.totalorder %s49, %s65
    %p67 = scmp.eq.s32.totalorder %s15, 0
    %p68 = por %p66, %p67
    %s69 = ssub.s32 %s9, %s16
    %p70 = scmp.eq.s32.totalorder %s69, 0
    %s72 = sadd.s32 %s71, 1
    %s73 = scalar_select %p70, %s71, %s72
    %p76 = pneg %p70
    %p77 = scmp.eq.s32.totalorder %s9, 1
    %p78 = por %p76, %p77
    %p79 = scmp.ne.s32.totalorder %s71, %s74
    %p80 = scmp.eq.s32.totalorder %s9, 0
    %p81 = por %p79, %p80
    %p82 = scmp.ne.s32.totalorder %s71, %s74
    %p83 = scmp.eq.s32.totalorder %s14, 1
    %p84 = por %p82, %p83
    %p85 = scmp.ne.s32.totalorder %s74, %s75
    %p86 = scmp.eq.s32.totalorder %s14, 0
    %p87 = por %p85, %p86
    %p88 = scmp.ne.s32.totalorder %s74, %s75
    %p89 = scmp.eq.s32.totalorder %s15, 1
    %p90 = por %p88, %p89
    %p92 = scmp.ne.s32.totalorder %s75, %s91
    %p93 = scmp.eq.s32.totalorder %s15, 0
    %p94 = por %p92, %p93
    %p95 = scmp.le.s32.totalorder 1, %s9
    %p96 = scmp.lt.s32.totalorder %s9, 3
    %p97 = pnand %p95, %p96
    %p98 = pneg %p97
    // Predicated region
    $region9: #{time_disentangle_forward.3} parent=5 // pred_check
      _
    $region10: #{time_disentangle_forward.3} parent=5 // pred_check_branch
      %100 = sbr.rel (%p97) target = $region12
    $region11: #{time_disentangle_forward.3} parent=5 // pred_region
      %s101 = ssub.s32 %s9, 1
    $region12: #{time_disentangle_forward.3} parent=5 // pred_fallthru
      _
    %p102 = scmp.lt.s32.totalorder %s9, 2
    // Predicated region
    $region13: #{time_disentangle_forward.3} parent=5 // pred_check
      %p103 = pneg %p102
    $region14: #{time_disentangle_forward.3} parent=5 // pred_check_branch
      %105 = sbr.rel (%p103) target = $region16
    $region15: #{time_disentangle_forward.3} parent=5 // pred_region
      // Predicated region
      $region17: #{time_disentangle_forward.3} parent=15 // pred_check
        %p106 = pneg %p29
      $region18: #{time_disentangle_forward.3} parent=15 // pred_check_branch
        %108 = sbr.rel (%p106) target = $region20
      $region19: #{time_disentangle_forward.3} parent=15 // pred_region
        %p109 = scmp.lt.s32.totalorder %s9, 1
        %s110 = scalar_select %p109, %s9, 1
        %s111 = smul.addr %s110, 8
        %s112 = scalar_lea.vmem %s0, %s111
      $region20: #{time_disentangle_forward.3} parent=15 // pred_fallthru
        _
    $region16: #{time_disentangle_forward.3} parent=5 // pred_fallthru
      _
    %p113 = scmp.le.s32.totalorder 1, %s9
    %p114 = scmp.lt.s32.totalorder %s9, 3
    %p115 = pnand %p113, %p114
    %p116 = pneg %p115
    // Predicated region
    $region21: #{time_disentangle_forward.3} parent=5 // pred_check
      _
    $region22: #{time_disentangle_forward.3} parent=5 // pred_check_branch
      %118 = sbr.rel (%p115) target = $region24
    $region23: #{time_disentangle_forward.3} parent=5 // pred_region
      %s119 = ssub.s32 %s9, 1
      %p120 = scmp.lt.s32.totalorder %s14, 1
      %s121 = scalar_select %p120, %s14, 1
      %s122 = smul.addr %s121, 8
      %s123 = scalar_lea.vmem %s0, %s122
      %p124 = pneg %p35
      %p125 = pneg %p32
      %p126 = pneg %p61
      %p127 = pneg %p58
      %p128 = scmp.lt.s32.totalorder %s14, 1
      %s129 = scalar_select %p128, %s14, 1
      %s130 = scalar_lea.vmem %s1, %s129
      %p131 = pneg %p87
      %p132 = pneg %p84
      %p133 = scmp.lt.s32.totalorder %s14, 1
      %s134 = scalar_select %p133, %s14, 1
      %s135 = scalar_lea.vmem %s2, %s134
      %p136 = scmp.lt.s32.totalorder %s14, 1
      %s137 = scalar_select %p136, %s14, 1
      %s138 = smul.addr %s137, 8
      %s139 = scalar_lea.vmem %s0, %s138
      %p140 = scmp.lt.s32.totalorder %s14, 1
      %s141 = scalar_select %p140, %s14, 1
      %s142 = scalar_lea.vmem %s1, %s141
      %p143 = scmp.lt.s32.totalorder %s14, 1
      %s144 = scalar_select %p143, %s14, 1
      %s145 = scalar_lea.vmem %s2, %s144
      %v146 = vld [vmem:[%s139] sm:$0xff]
      %147 = vadd.xlane.f32.xlu0 %v146
      %v148 = vpop.xlane.xlu0 %147
      %v149 = vrcp.pop 128.0
      %v150 = vmul.f32 128.0, %v149
      %v151 = vsub.f32 1.0, %v150
      %v152 = vmul.f32 %v149, %v151
      %v153 = vadd.f32 %v149, %v152
      %vm154 = vweird.f32 %v149
      %v155 = vsel %vm154, %v149, %v153
      %v156 = vmul.f32 %v148, %v155
      %v157 = vsub.f32 %v146, %v156
      %v158 = vmul.f32 %v157, %v157
      %159 = vadd.xlane.f32.xlu0 %v158
      %v160 = vpop.xlane.xlu0 %159
      %v161 = vmul.f32 %v160, %v155
      %v162 = vadd.f32 %v161, 1e-05
      %v163 = vrsqrt.pop %v162
      %v164 = vmul.f32 %v163, %v162
      %v165 = vmul.f32 %v164, %v163
      %v166 = vmul.f32 0.5, %v165
      %v167 = vsub.f32 1.5, %v166
      %v168 = vmul.f32 %v163, %v167
      %vm169 = vweird.f32 %v162
      %vm170 = vweird.f32 %v163
      %vm171 = vmor %vm169, %vm170
      %v172 = vsel %vm171, %v163, %v168
      %v173 = vmul.f32 %v157, %v172
      %v174 = vrot.slane %v173, 4
      %v175 = vadd.f32 %v173, %v174
      %v176 = vrot.slane %v175, 2
      %v177 = vadd.f32 %v175, %v176
      %v178 = vrot.slane %v177, 1
      %v179 = vadd.f32 %v177, %v178
      %180 = vst [vmem:[%s142] sm:$0x1] %v179
      %v181 = vmul.f32 %v173, %v173
      %v182 = vrot.slane %v181, 4
      %v183 = vadd.f32 %v181, %v182
      %v184 = vrot.slane %v183, 2
      %v185 = vadd.f32 %v183, %v184
      %v186 = vrot.slane %v185, 1
      %v187 = vadd.f32 %v185, %v186
      %188 = vst [vmem:[%s145] sm:$0x1] %v187
      %p189 = scmp.lt.s32.totalorder %s14, 1
      %s190 = scalar_select %p189, %s14, 1
      %s191 = scalar_lea.vmem %s1, %s190
      %p192 = scmp.lt.s32.totalorder %s14, 1
      %s193 = scalar_select %p192, %s14, 1
      %s194 = scalar_lea.vmem %s2, %s193
      // Predicated region
      $region25: #{time_disentangle_forward.3} parent=23 // pred_check
        %p195 = pneg %p58
      $region26: #{time_disentangle_forward.3} parent=23 // pred_check_branch
        %197 = sbr.rel (%p195) target = $region28
      $region27: #{time_disentangle_forward.3} parent=23 // pred_region
        _
      $region28: #{time_disentangle_forward.3} parent=23 // pred_fallthru
        _
      // Predicated region
      $region29: #{time_disentangle_forward.3} parent=23 // pred_check
        %p198 = pneg %p84
      $region30: #{time_disentangle_forward.3} parent=23 // pred_check_branch
        %200 = sbr.rel (%p198) target = $region32
      $region31: #{time_disentangle_forward.3} parent=23 // pred_region
        _
      $region32: #{time_disentangle_forward.3} parent=23 // pred_fallthru
        _
    $region24: #{time_disentangle_forward.3} parent=5 // pred_fallthru
      _
    %p201 = scmp.le.s32.totalorder 2, %s9
    // Predicated region
    $region33: #{time_disentangle_forward.3} parent=5 // pred_check
      %p202 = pneg %p201
    $region34: #{time_disentangle_forward.3} parent=5 // pred_check_branch
      %204 = sbr.rel (%p202) target = $region36
    $region35: #{time_disentangle_forward.3} parent=5 // pred_region
      %s205 = ssub.s32 %s9, 2
      // Predicated region
      $region37: #{time_disentangle_forward.3} parent=35 // pred_check
        %p206 = pneg %p64
      $region38: #{time_disentangle_forward.3} parent=35 // pred_check_branch
        %208 = sbr.rel (%p206) target = $region40
      $region39: #{time_disentangle_forward.3} parent=35 // pred_region
        %p209 = scmp.lt.s32.totalorder %s15, 1
        %s210 = scalar_select %p209, %s15, 1
        %s211 = scalar_lea.vmem %s1, %s210
      $region40: #{time_disentangle_forward.3} parent=35 // pred_fallthru
        _
      // Predicated region
      $region41: #{time_disentangle_forward.3} parent=35 // pred_check
        %p212 = pneg %p90
      $region42: #{time_disentangle_forward.3} parent=35 // pred_check_branch
        %214 = sbr.rel (%p212) target = $region44
      $region43: #{time_disentangle_forward.3} parent=35 // pred_region
        %p215 = scmp.lt.s32.totalorder %s15, 1
        %s216 = scalar_select %p215, %s15, 1
        %s217 = scalar_lea.vmem %s2, %s216
      $region44: #{time_disentangle_forward.3} parent=35 // pred_fallthru
        _
    $region36: #{time_disentangle_forward.3} parent=5 // pred_fallthru
      _
  $region6: #{time_disentangle_forward.3} parent=0 // loop_footer
    %s13 = sadd.s32 1, %s9
  $region7: #{time_disentangle_forward.3} parent=0 // loop_footer_branch
    %8 = sbr.rel target = $region3
  $region8: #{time_disentangle_forward.3} parent=0 // loop_exit
    _

// kernel: time_disentangle_forward.4
$region0: #{time_disentangle_forward.4}
  #allocation0 [shape = 'u32[]', space=smem, size = 0x4, offset = 0x4, fixed_abs, tag = 'smem constant byte address 0x4 - core index']
  #allocation1 [shape = 'u32[72,128]{1,0:T(1,128)}', space=vmem, size = 0x9000, scoped, tag = 'internal scratch']
  #allocation2 [shape = 'f32[1,1]{1,0:T(1,128)S(1)}', space=vmem, size = 0x200, scoped, tag = 'scoped memory for time_disentangle_forward.4']
  #allocation3 [shape = 'f32[1,1]{1,0:T(1,128)S(1)}', space=vmem, size = 0x200, scoped, tag = 'scoped memory for time_disentangle_forward.4']
  %s0 = inlined_call_operand.vmem [shape: f32[16,128], index: 0, kind: input, shape index: {}]
  %s1 = inlined_call_operand.vmem [shape: f32[128,512], index: 1, kind: input, shape index: {}]
  %s2 = inlined_call_operand.vmem [shape: f32[1,512], index: 2, kind: input, shape index: {}]
  %s3 = inlined_call_operand.vmem [shape: f32[1,8], index: 3, kind: input, shape index: {}]
  %s4 = inlined_call_operand.vmem [shape: f32[256,256], index: 4, kind: input, shape index: {}]
  %s5 = inlined_call_operand.vmem [shape: f32[1,256], index: 5, kind: input, shape index: {}]
  %s6 = inlined_call_operand.vmem [shape: f32[1,256], index: 6, kind: input, shape index: {}]
  %s7 = inlined_call_operand.<no memory space> [shape: f32[1,1], index: 7, kind: input, shape index: {}]
  %s8 = inlined_call_operand.vmem [shape: f32[1,8], index: 8, kind: input, shape index: {}]
  %s9 = inlined_call_operand.vmem [shape: f32[256,256], index: 9, kind: input, shape index: {}]
  %s10 = inlined_call_operand.vmem [shape: f32[1,256], index: 10, kind: input, shape index: {}]
  %s11 = inlined_call_operand.vmem [shape: f32[1,256], index: 11, kind: input, shape index: {}]
  %s12 = inlined_call_operand.<no memory space> [shape: f32[1,1], index: 12, kind: input, shape index: {}]
  %s13 = inlined_call_operand.vmem [shape: f32[16,1], index: 13, kind: output, shape index: {0}]
  %s14 = inlined_call_operand.vmem [shape: f32[16,1], index: 14, kind: output, shape index: {1}]
  %15 = xla_tuple %s13, %s14
  %s16 = sld [smem:[#allocation0]]
  $region93: #{time_disentangle_forward.4} parent=0
    _
  %s18 = ssub.s32 1, %s16
  %s19 = scalar_select 0, %s18, %s16
  %v20 = vstv %s7
  %21 = vst [vmem:[#allocation2] sm:$0x1] %v20
  %v22 = vstv %s12
  %23 = vst [vmem:[#allocation3] sm:$0x1] %v22
  loop: start=0, step=1, limit=4
  $region2: #{time_disentangle_forward.4} parent=0 // loop_pre_header
    _
  $region3: #{time_disentangle_forward.4} parent=0 // loop_header
    %s25 = sphi 0, %s29
    %p26 = scmp.ge.s32.totalorder %s25, 4
    %s35 = sphi 0, %s37
    %s38 = sphi 0, %s35
    %s39 = sphi 0, %s38
    %s55 = sphi 0, %s39
    %s59 = sphi 0, %s59
    %s61 = sphi 0, %s59
    %s62 = sphi 0, %s61
    %s76 = sphi 0, %s62
    %s80 = sphi 0, %s80
    %s82 = sphi 0, %s80
    %s83 = sphi 0, %s82
    %s97 = sphi 0, %s83
    %s101 = sphi 0, %s101
    %s103 = sphi 0, %s101
    %s104 = sphi 0, %s103
    %s118 = sphi 0, %s104
    %s122 = sphi 0, %s122
    %s124 = sphi 0, %s122
    %s125 = sphi 0, %s124
    %s139 = sphi 0, %s125
    %s143 = sphi 0, %s143
    %s145 = sphi 0, %s143
    %s146 = sphi 0, %s145
    %s160 = sphi 0, %s146
    %s164 = sphi 0, %s164
    %s166 = sphi 0, %s164
    %s167 = sphi 0, %s166
    %s181 = sphi 0, %s167
    %s185 = sphi 0, %s185
    %s187 = sphi 0, %s185
    %s188 = sphi 0, %s187
    %s202 = sphi 0, %s188
    %s206 = sphi 0, %s206
    %s208 = sphi 0, %s206
    %s209 = sphi 0, %s208
    %s223 = sphi 0, %s209
    %s227 = sphi 0, %s227
    %s229 = sphi 0, %s227
    %s230 = sphi 0, %s229
    %s244 = sphi 0, %s230
    %s248 = sphi 0, %s248
    %s250 = sphi 0, %s248
    %s251 = sphi 0, %s250
    %s265 = sphi 0, %s251
    %s269 = sphi 0, %s269
    %s271 = sphi 0, %s269
    %s272 = sphi 0, %s271
    %s286 = sphi 0, %s272
    %s290 = sphi 0, %s290
    %s292 = sphi 0, %s290
    %s293 = sphi 0, %s292
    %s307 = sphi 0, %s293
    %s313 = sphi 0, %s315
    %s316 = sphi 0, %s313
    %s317 = sphi 0, %s316
    %s333 = sphi 0, %s317
    %s339 = sphi 0, %s341
    %s342 = sphi 0, %s339
    %s343 = sphi 0, %s342
    %s359 = sphi 0, %s343
  $region4: #{time_disentangle_forward.4} parent=0 // loop_header_branch
    %28 = sbr.rel (%p26) target = $region8
  $region5: #{time_disentangle_forward.4} parent=0 // loop_body
    %s30 = ssub.s32 %s25, 1
    %s31 = ssub.s32 %s25, 2
    %s32 = sadd.s32 %s25, 1
    %s33 = ssub.s32 %s25, %s32
    %p34 = scmp.eq.s32.totalorder %s33, 0
    %s36 = sadd.s32 %s35, 1
    %s37 = scalar_select %p34, %s35, %s36
    %p40 = pneg %p34
    %p41 = scmp.eq.s32.totalorder %s25, 1
    %p42 = por %p40, %p41
    %p43 = scmp.ne.s32.totalorder %s35, %s38
    %p44 = scmp.eq.s32.totalorder %s25, 0
    %p45 = por %p43, %p44
    %p46 = scmp.ne.s32.totalorder %s35, %s38
    %p47 = scmp.eq.s32.totalorder %s30, 1
    %p48 = por %p46, %p47
    %p49 = scmp.ne.s32.totalorder %s38, %s39
    %p50 = scmp.eq.s32.totalorder %s30, 0
    %p51 = por %p49, %p50
    %p52 = scmp.ne.s32.totalorder %s38, %s39
    %p53 = scmp.eq.s32.totalorder %s31, 1
    %p54 = por %p52, %p53
    %p56 = scmp.ne.s32.totalorder %s39, %s55
    %p57 = scmp.eq.s32.totalorder %s31, 0
    %p58 = por %p56, %p57
    %s60 = sadd.s32 %s59, 1
    %p63 = scmp.eq.s32.totalorder %s25, 1
    %p64 = scmp.ne.s32.totalorder %s59, %s61
    %p65 = scmp.eq.s32.totalorder %s25, 0
    %p66 = por %p64, %p65
    %p67 = scmp.ne.s32.totalorder %s59, %s61
    %p68 = scmp.eq.s32.totalorder %s30, 1
    %p69 = por %p67, %p68
    %p70 = scmp.ne.s32.totalorder %s61, %s62
    %p71 = scmp.eq.s32.totalorder %s30, 0
    %p72 = por %p70, %p71
    %p73 = scmp.ne.s32.totalorder %s61, %s62
    %p74 = scmp.eq.s32.totalorder %s31, 1
    %p75 = por %p73, %p74
    %p77 = scmp.ne.s32.totalorder %s62, %s76
    %p78 = scmp.eq.s32.totalorder %s31, 0
    %p79 = por %p77, %p78
    %s81 = sadd.s32 %s80, 1
    %p84 = scmp.eq.s32.totalorder %s25, 1
    %p85 = scmp.ne.s32.totalorder %s80, %s82
    %p86 = scmp.eq.s32.totalorder %s25, 0
    %p87 = por %p85, %p86
    %p88 = scmp.ne.s32.totalorder %s80, %s82
    %p89 = scmp.eq.s32.totalorder %s30, 1
    %p90 = por %p88, %p89
    %p91 = scmp.ne.s32.totalorder %s82, %s83
    %p92 = scmp.eq.s32.totalorder %s30, 0
    %p93 = por %p91, %p92
    %p94 = scmp.ne.s32.totalorder %s82, %s83
    %p95 = scmp.eq.s32.totalorder %s31, 1
    %p96 = por %p94, %p95
    %p98 = scmp.ne.s32.totalorder %s83, %s97
    %p99 = scmp.eq.s32.totalorder %s31, 0
    %p100 = por %p98, %p99
    %s102 = sadd.s32 %s101, 1
    %p105 = scmp.eq.s32.totalorder %s25, 1
    %p106 = scmp.ne.s32.totalorder %s101, %s103
    %p107 = scmp.eq.s32.totalorder %s25, 0
    %p108 = por %p106, %p107
    %p109 = scmp.ne.s32.totalorder %s101, %s103
    %p110 = scmp.eq.s32.totalorder %s30, 1
    %p111 = por %p109, %p110
    %p112 = scmp.ne.s32.totalorder %s103, %s104
    %p113 = scmp.eq.s32.totalorder %s30, 0
    %p114 = por %p112, %p113
    %p115 = scmp.ne.s32.totalorder %s103, %s104
    %p116 = scmp.eq.s32.totalorder %s31, 1
    %p117 = por %p115, %p116
    %p119 = scmp.ne.s32.totalorder %s104, %s118
    %p120 = scmp.eq.s32.totalorder %s31, 0
    %p121 = por %p119, %p120
    %s123 = sadd.s32 %s122, 1
    %p126 = scmp.eq.s32.totalorder %s25, 1
    %p127 = scmp.ne.s32.totalorder %s122, %s124
    %p128 = scmp.eq.s32.totalorder %s25, 0
    %p129 = por %p127, %p128
    %p130 = scmp.ne.s32.totalorder %s122, %s124
    %p131 = scmp.eq.s32.totalorder %s30, 1
    %p132 = por %p130, %p131
    %p133 = scmp.ne.s32.totalorder %s124, %s125
    %p134 = scmp.eq.s32.totalorder %s30, 0
    %p135 = por %p133, %p134
    %p136 = scmp.ne.s32.totalorder %s124, %s125
    %p137 = scmp.eq.s32.totalorder %s31, 1
    %p138 = por %p136, %p137
    %p140 = scmp.ne.s32.totalorder %s125, %s139
    %p141 = scmp.eq.s32.totalorder %s31, 0
    %p142 = por %p140, %p141
    %s144 = sadd.s32 %s143, 1
    %p147 = scmp.eq.s32.totalorder %s25, 1
    %p148 = scmp.ne.s32.totalorder %s143, %s145
    %p149 = scmp.eq.s32.totalorder %s25, 0
    %p150 = por %p148, %p149
    %p151 = scmp.ne.s32.totalorder %s143, %s145
    %p152 = scmp.eq.s32.totalorder %s30, 1
    %p153 = por %p151, %p152
    %p154 = scmp.ne.s32.totalorder %s145, %s146
    %p155 = scmp.eq.s32.totalorder %s30, 0
    %p156 = por %p154, %p155
    %p157 = scmp.ne.s32.totalorder %s145, %s146
    %p158 = scmp.eq.s32.totalorder %s31, 1
    %p159 = por %p157, %p158
    %p161 = scmp.ne.s32.totalorder %s146, %s160
    %p162 = scmp.eq.s32.totalorder %s31, 0
    %p163 = por %p161, %p162
    %s165 = sadd.s32 %s164, 1
    %p168 = scmp.eq.s32.totalorder %s25, 1
    %p169 = scmp.ne.s32.totalorder %s164, %s166
    %p170 = scmp.eq.s32.totalorder %s25, 0
    %p171 = por %p169, %p170
    %p172 = scmp.ne.s32.totalorder %s164, %s166
    %p173 = scmp.eq.s32.totalorder %s30, 1
    %p174 = por %p172, %p173
    %p175 = scmp.ne.s32.totalorder %s166, %s167
    %p176 = scmp.eq.s32.totalorder %s30, 0
    %p177 = por %p175, %p176
    %p178 = scmp.ne.s32.totalorder %s166, %s167
    %p179 = scmp.eq.s32.totalorder %s31, 1
    %p180 = por %p178, %p179
    %p182 = scmp.ne.s32.totalorder %s167, %s181
    %p183 = scmp.eq.s32.totalorder %s31, 0
    %p184 = por %p182, %p183
    %s186 = sadd.s32 %s185, 1
    %p189 = scmp.eq.s32.totalorder %s25, 1
    %p190 = scmp.ne.s32.totalorder %s185, %s187
    %p191 = scmp.eq.s32.totalorder %s25, 0
    %p192 = por %p190, %p191
    %p193 = scmp.ne.s32.totalorder %s185, %s187
    %p194 = scmp.eq.s32.totalorder %s30, 1
    %p195 = por %p193, %p194
    %p196 = scmp.ne.s32.totalorder %s187, %s188
    %p197 = scmp.eq.s32.totalorder %s30, 0
    %p198 = por %p196, %p197
    %p199 = scmp.ne.s32.totalorder %s187, %s188
    %p200 = scmp.eq.s32.totalorder %s31, 1
    %p201 = por %p199, %p200
    %p203 = scmp.ne.s32.totalorder %s188, %s202
    %p204 = scmp.eq.s32.totalorder %s31, 0
    %p205 = por %p203, %p204
    %s207 = sadd.s32 %s206, 1
    %p210 = scmp.eq.s32.totalorder %s25, 1
    %p211 = scmp.ne.s32.totalorder %s206, %s208
    %p212 = scmp.eq.s32.totalorder %s25, 0
    %p213 = por %p211, %p212
    %p214 = scmp.ne.s32.totalorder %s206, %s208
    %p215 = scmp.eq.s32.totalorder %s30, 1
    %p216 = por %p214, %p215
    %p217 = scmp.ne.s32.totalorder %s208, %s209
    %p218 = scmp.eq.s32.totalorder %s30, 0
    %p219 = por %p217, %p218
    %p220 = scmp.ne.s32.totalorder %s208, %s209
    %p221 = scmp.eq.s32.totalorder %s31, 1
    %p222 = por %p220, %p221
    %p224 = scmp.ne.s32.totalorder %s209, %s223
    %p225 = scmp.eq.s32.totalorder %s31, 0
    %p226 = por %p224, %p225
    %s228 = sadd.s32 %s227, 1
    %p231 = scmp.eq.s32.totalorder %s25, 1
    %p232 = scmp.ne.s32.totalorder %s227, %s229
    %p233 = scmp.eq.s32.totalorder %s25, 0
    %p234 = por %p232, %p233
    %p235 = scmp.ne.s32.totalorder %s227, %s229
    %p236 = scmp.eq.s32.totalorder %s30, 1
    %p237 = por %p235, %p236
    %p238 = scmp.ne.s32.totalorder %s229, %s230
    %p239 = scmp.eq.s32.totalorder %s30, 0
    %p240 = por %p238, %p239
    %p241 = scmp.ne.s32.totalorder %s229, %s230
    %p242 = scmp.eq.s32.totalorder %s31, 1
    %p243 = por %p241, %p242
    %p245 = scmp.ne.s32.totalorder %s230, %s244
    %p246 = scmp.eq.s32.totalorder %s31, 0
    %p247 = por %p245, %p246
    %s249 = sadd.s32 %s248, 1
    %p252 = scmp.eq.s32.totalorder %s25, 1
    %p253 = scmp.ne.s32.totalorder %s248, %s250
    %p254 = scmp.eq.s32.totalorder %s25, 0
    %p255 = por %p253, %p254
    %p256 = scmp.ne.s32.totalorder %s248, %s250
    %p257 = scmp.eq.s32.totalorder %s30, 1
    %p258 = por %p256, %p257
    %p259 = scmp.ne.s32.totalorder %s250, %s251
    %p260 = scmp.eq.s32.totalorder %s30, 0
    %p261 = por %p259, %p260
    %p262 = scmp.ne.s32.totalorder %s250, %s251
    %p263 = scmp.eq.s32.totalorder %s31, 1
    %p264 = por %p262, %p263
    %p266 = scmp.ne.s32.totalorder %s251, %s265
    %p267 = scmp.eq.s32.totalorder %s31, 0
    %p268 = por %p266, %p267
    %s270 = sadd.s32 %s269, 1
    %p273 = scmp.eq.s32.totalorder %s25, 1
    %p274 = scmp.ne.s32.totalorder %s269, %s271
    %p275 = scmp.eq.s32.totalorder %s25, 0
    %p276 = por %p274, %p275
    %p277 = scmp.ne.s32.totalorder %s269, %s271
    %p278 = scmp.eq.s32.totalorder %s30, 1
    %p279 = por %p277, %p278
    %p280 = scmp.ne.s32.totalorder %s271, %s272
    %p281 = scmp.eq.s32.totalorder %s30, 0
    %p282 = por %p280, %p281
    %p283 = scmp.ne.s32.totalorder %s271, %s272
    %p284 = scmp.eq.s32.totalorder %s31, 1
    %p285 = por %p283, %p284
    %p287 = scmp.ne.s32.totalorder %s272, %s286
    %p288 = scmp.eq.s32.totalorder %s31, 0
    %p289 = por %p287, %p288
    %s291 = sadd.s32 %s290, 1
    %p294 = scmp.eq.s32.totalorder %s25, 1
    %p295 = scmp.ne.s32.totalorder %s290, %s292
    %p296 = scmp.eq.s32.totalorder %s25, 0
    %p297 = por %p295, %p296
    %p298 = scmp.ne.s32.totalorder %s290, %s292
    %p299 = scmp.eq.s32.totalorder %s30, 1
    %p300 = por %p298, %p299
    %p301 = scmp.ne.s32.totalorder %s292, %s293
    %p302 = scmp.eq.s32.totalorder %s30, 0
    %p303 = por %p301, %p302
    %p304 = scmp.ne.s32.totalorder %s292, %s293
    %p305 = scmp.eq.s32.totalorder %s31, 1
    %p306 = por %p304, %p305
    %p308 = scmp.ne.s32.totalorder %s293, %s307
    %p309 = scmp.eq.s32.totalorder %s31, 0
    %p310 = por %p308, %p309
    %s311 = ssub.s32 %s25, %s32
    %p312 = scmp.eq.s32.totalorder %s311, 0
    %s314 = sadd.s32 %s313, 1
    %s315 = scalar_select %p312, %s313, %s314
    %p318 = pneg %p312
    %p319 = scmp.eq.s32.totalorder %s25, 1
    %p320 = por %p318, %p319
    %p321 = scmp.ne.s32.totalorder %s313, %s316
    %p322 = scmp.eq.s32.totalorder %s25, 0
    %p323 = por %p321, %p322
    %p324 = scmp.ne.s32.totalorder %s313, %s316
    %p325 = scmp.eq.s32.totalorder %s30, 1
    %p326 = por %p324, %p325
    %p327 = scmp.ne.s32.totalorder %s316, %s317
    %p328 = scmp.eq.s32.totalorder %s30, 0
    %p329 = por %p327, %p328
    %p330 = scmp.ne.s32.totalorder %s316, %s317
    %p331 = scmp.eq.s32.totalorder %s31, 1
    %p332 = por %p330, %p331
    %p334 = scmp.ne.s32.totalorder %s317, %s333
    %p335 = scmp.eq.s32.totalorder %s31, 0
    %p336 = por %p334, %p335
    %s337 = ssub.s32 %s25, %s32
    %p338 = scmp.eq.s32.totalorder %s337, 0
    %s340 = sadd.s32 %s339, 1
    %s341 = scalar_select %p338, %s339, %s340
    %p344 = pneg %p338
    %p345 = scmp.eq.s32.totalorder %s25, 1
    %p346 = por %p344, %p345
    %p347 = scmp.ne.s32.totalorder %s339, %s342
    %p348 = scmp.eq.s32.totalorder %s25, 0
    %p349 = por %p347, %p348
    %p350 = scmp.ne.s32.totalorder %s339, %s342
    %p351 = scmp.eq.s32.totalorder %s30, 1
    %p352 = por %p350, %p351
    %p353 = scmp.ne.s32.totalorder %s342, %s343
    %p354 = scmp.eq.s32.totalorder %s30, 0
    %p355 = por %p353, %p354
    %p356 = scmp.ne.s32.totalorder %s342, %s343
    %p357 = scmp.eq.s32.totalorder %s31, 1
    %p358 = por %p356, %p357
    %p360 = scmp.ne.s32.totalorder %s343, %s359
    %p361 = scmp.eq.s32.totalorder %s31, 0
    %p362 = por %p360, %p361
    %p363 = scmp.le.s32.totalorder 1, %s25
    %p364 = scmp.lt.s32.totalorder %s25, 3
    %p365 = pnand %p363, %p364
    %p366 = pneg %p365
    // Predicated region
    $region9: #{time_disentangle_forward.4} parent=5 // pred_check
      _
    $region10: #{time_disentangle_forward.4} parent=5 // pred_check_branch
      %368 = sbr.rel (%p365) target = $region12
    $region11: #{time_disentangle_forward.4} parent=5 // pred_region
      %s369 = ssub.s32 %s25, 1
      // Predicated region
      $region13: #{time_disentangle_forward.4} parent=11 // pred_check
        %p370 = pneg %p72
      $region14: #{time_disentangle_forward.4} parent=11 // pred_check_branch
        %372 = sbr.rel (%p370) target = $region16
      $region15: #{time_disentangle_forward.4} parent=11 // pred_region
        _
      $region16: #{time_disentangle_forward.4} parent=11 // pred_fallthru
        _
      // Predicated region
      $region17: #{time_disentangle_forward.4} parent=11 // pred_check
        %p373 = pneg %p93
      $region18: #{time_disentangle_forward.4} parent=11 // pred_check_branch
        %375 = sbr.rel (%p373) target = $region20
      $region19: #{time_disentangle_forward.4} parent=11 // pred_region
        _
      $region20: #{time_disentangle_forward.4} parent=11 // pred_fallthru
        _
      // Predicated region
      $region21: #{time_disentangle_forward.4} parent=11 // pred_check
        %p376 = pneg %p114
      $region22: #{time_disentangle_forward.4} parent=11 // pred_check_branch
        %378 = sbr.rel (%p376) target = $region24
      $region23: #{time_disentangle_forward.4} parent=11 // pred_region
        _
      $region24: #{time_disentangle_forward.4} parent=11 // pred_fallthru
        _
      // Predicated region
      $region25: #{time_disentangle_forward.4} parent=11 // pred_check
        %p379 = pneg %p135
      $region26: #{time_disentangle_forward.4} parent=11 // pred_check_branch
        %381 = sbr.rel (%p379) target = $region28
      $region27: #{time_disentangle_forward.4} parent=11 // pred_region
        _
      $region28: #{time_disentangle_forward.4} parent=11 // pred_fallthru
        _
      // Predicated region
      $region29: #{time_disentangle_forward.4} parent=11 // pred_check
        %p382 = pneg %p156
      $region30: #{time_disentangle_forward.4} parent=11 // pred_check_branch
        %384 = sbr.rel (%p382) target = $region32
      $region31: #{time_disentangle_forward.4} parent=11 // pred_region
        _
      $region32: #{time_disentangle_forward.4} parent=11 // pred_fallthru
        _
      // Predicated region
      $region33: #{time_disentangle_forward.4} parent=11 // pred_check
        %p385 = pneg %p177
      $region34: #{time_disentangle_forward.4} parent=11 // pred_check_branch
        %387 = sbr.rel (%p385) target = $region36
      $region35: #{time_disentangle_forward.4} parent=11 // pred_region
        _
      $region36: #{time_disentangle_forward.4} parent=11 // pred_fallthru
        _
      // Predicated region
      $region37: #{time_disentangle_forward.4} parent=11 // pred_check
        %p388 = pneg %p198
      $region38: #{time_disentangle_forward.4} parent=11 // pred_check_branch
        %390 = sbr.rel (%p388) target = $region40
      $region39: #{time_disentangle_forward.4} parent=11 // pred_region
        _
      $region40: #{time_disentangle_forward.4} parent=11 // pred_fallthru
        _
      // Predicated region
      $region41: #{time_disentangle_forward.4} parent=11 // pred_check
        %p391 = pneg %p219
      $region42: #{time_disentangle_forward.4} parent=11 // pred_check_branch
        %393 = sbr.rel (%p391) target = $region44
      $region43: #{time_disentangle_forward.4} parent=11 // pred_region
        _
      $region44: #{time_disentangle_forward.4} parent=11 // pred_fallthru
        _
      // Predicated region
      $region45: #{time_disentangle_forward.4} parent=11 // pred_check
        %p394 = pneg %p240
      $region46: #{time_disentangle_forward.4} parent=11 // pred_check_branch
        %396 = sbr.rel (%p394) target = $region48
      $region47: #{time_disentangle_forward.4} parent=11 // pred_region
        _
      $region48: #{time_disentangle_forward.4} parent=11 // pred_fallthru
        _
      // Predicated region
      $region49: #{time_disentangle_forward.4} parent=11 // pred_check
        %p397 = pneg %p261
      $region50: #{time_disentangle_forward.4} parent=11 // pred_check_branch
        %399 = sbr.rel (%p397) target = $region52
      $region51: #{time_disentangle_forward.4} parent=11 // pred_region
        _
      $region52: #{time_disentangle_forward.4} parent=11 // pred_fallthru
        _
      // Predicated region
      $region53: #{time_disentangle_forward.4} parent=11 // pred_check
        %p400 = pneg %p282
      $region54: #{time_disentangle_forward.4} parent=11 // pred_check_branch
        %402 = sbr.rel (%p400) target = $region56
      $region55: #{time_disentangle_forward.4} parent=11 // pred_region
        _
      $region56: #{time_disentangle_forward.4} parent=11 // pred_fallthru
        _
      // Predicated region
      $region57: #{time_disentangle_forward.4} parent=11 // pred_check
        %p403 = pneg %p303
      $region58: #{time_disentangle_forward.4} parent=11 // pred_check_branch
        %405 = sbr.rel (%p403) target = $region60
      $region59: #{time_disentangle_forward.4} parent=11 // pred_region
        _
      $region60: #{time_disentangle_forward.4} parent=11 // pred_fallthru
        _
    $region12: #{time_disentangle_forward.4} parent=5 // pred_fallthru
      _
    %p406 = scmp.lt.s32.totalorder %s25, 2
    // Predicated region
    $region61: #{time_disentangle_forward.4} parent=5 // pred_check
      %p407 = pneg %p406
    $region62: #{time_disentangle_forward.4} parent=5 // pred_check_branch
      %409 = sbr.rel (%p407) target = $region64
    $region63: #{time_disentangle_forward.4} parent=5 // pred_region
      // Predicated region
      $region65: #{time_disentangle_forward.4} parent=63 // pred_check
        %p410 = pneg %p45
      $region66: #{time_disentangle_forward.4} parent=63 // pred_check_branch
        %412 = sbr.rel (%p410) target = $region68
      $region67: #{time_disentangle_forward.4} parent=63 // pred_region
        %p413 = scmp.lt.s32.totalorder %s25, 1
        %s414 = scalar_select %p413, %s25, 1
        %s415 = smul.addr %s414, 8
        %s416 = scalar_lea.vmem %s0, %s415
      $region68: #{time_disentangle_forward.4} parent=63 // pred_fallthru
        _
    $region64: #{time_disentangle_forward.4} parent=5 // pred_fallthru
      _
    %p417 = scmp.le.s32.totalorder 1, %s25
    %p418 = scmp.lt.s32.totalorder %s25, 3
    %p419 = pnand %p417, %p418
    %p420 = pneg %p419
    // Predicated region
    $region69: #{time_disentangle_forward.4} parent=5 // pred_check
      _
    $region70: #{time_disentangle_forward.4} parent=5 // pred_check_branch
      %422 = sbr.rel (%p419) target = $region72
    $region71: #{time_disentangle_forward.4} parent=5 // pred_region
      %s423 = ssub.s32 %s25, 1
      %p424 = scmp.lt.s32.totalorder %s30, 1
      %s425 = scalar_select %p424, %s30, 1
      %s426 = smul.addr %s425, 8
      %s427 = scalar_lea.vmem %s0, %s426
      %p428 = pneg %p51
      %p429 = pneg %p48
      %p430 = pneg %p72
      %p431 = pneg %p69
      %p432 = pneg %p93
      %p433 = pneg %p90
      %p434 = pneg %p114
      %p435 = pneg %p111
      %p436 = pneg %p135
      %p437 = pneg %p132
      %p438 = pneg %p156
      %p439 = pneg %p153
      %p440 = pneg %p177
      %p441 = pneg %p174
      %p442 = pneg %p198
      %p443 = pneg %p195
      %p444 = pneg %p219
      %p445 = pneg %p216
      %p446 = pneg %p240
      %p447 = pneg %p237
      %p448 = pneg %p261
      %p449 = pneg %p258
      %p450 = pneg %p282
      %p451 = pneg %p279
      %p452 = pneg %p303
      %p453 = pneg %p300
      %p454 = pneg %p329
      %p455 = pneg %p326
      %p456 = scmp.lt.s32.totalorder %s30, 1
      %s457 = scalar_select %p456, %s30, 1
      %s458 = smul.addr %s457, 8
      %s459 = scalar_lea.vmem %s13, %s458
      %p460 = pneg %p355
      %p461 = pneg %p352
      %p462 = scmp.lt.s32.totalorder %s30, 1
      %s463 = scalar_select %p462, %s30, 1
      %s464 = smul.addr %s463, 8
      %s465 = scalar_lea.vmem %s14, %s464
      %p466 = scmp.lt.s32.totalorder %s30, 1
      %s467 = scalar_select %p466, %s30, 1
      %s468 = smul.addr %s467, 8
      %s469 = scalar_lea.vmem %s0, %s468
      %p470 = scmp.lt.s32.totalorder %s30, 1
      %s471 = scalar_select %p470, %s30, 1
      %s472 = smul.addr %s471, 8
      %s473 = scalar_lea.vmem %s13, %s472
      %p474 = scmp.lt.s32.totalorder %s30, 1
      %s475 = scalar_select %p474, %s30, 1
      %s476 = smul.addr %s475, 8
      %s477 = scalar_lea.vmem %s14, %s476
      %v478 = vld [vmem:[%s469] sm:$0xff]
      %479 = vadd.xlane.f32.xlu0 %v478
      %v480 = vpop.xlane.xlu0 %479
      %v481 = vrcp.pop 128.0
      %v482 = vmul.f32 128.0, %v481
      %v483 = vsub.f32 1.0, %v482
      %v484 = vmul.f32 %v481, %v483
      %v485 = vadd.f32 %v481, %v484
      %vm486 = vweird.f32 %v481
      %v487 = vsel %vm486, %v481, %v485
      %v488 = vmul.f32 %v480, %v487
      %v489 = vsub.f32 %v478, %v488
      %v490 = vmul.f32 %v489, %v489
      %491 = vadd.xlane.f32.xlu0 %v490
      %v492 = vpop.xlane.xlu0 %491
      %v493 = vmul.f32 %v492, %v487
      %v494 = vadd.f32 %v493, 1e-05
      %v495 = vrsqrt.pop %v494
      %v496 = vmul.f32 %v495, %v494
      %v497 = vmul.f32 %v496, %v495
      %v498 = vmul.f32 0.5, %v497
      %v499 = vsub.f32 1.5, %v498
      %v500 = vmul.f32 %v495, %v499
      %vm501 = vweird.f32 %v494
      %vm502 = vweird.f32 %v495
      %vm503 = vmor %vm501, %vm502
      %v504 = vsel %vm503, %v495, %v500
      %v505 = vmul.f32 %v489, %v504
      %v506 = vld [vmem:[%s1] sm:$0xff]
      %v507 = vld [vmem:[%s1 + $0x8] sm:$0xff]
      %v508 = vld [vmem:[%s1 + $0x10] sm:$0xff]
      %v509 = vld [vmem:[%s1 + $0x18] sm:$0xff]
      %v510 = vld [vmem:[%s1 + $0x20] sm:$0xff]
      %v511 = vld [vmem:[%s1 + $0x28] sm:$0xff]
      %v512 = vld [vmem:[%s1 + $0x30] sm:$0xff]
      %v513 = vld [vmem:[%s1 + $0x38] sm:$0xff]
      %v514 = vld [vmem:[%s1 + $0x40] sm:$0xff]
      %v515 = vld [vmem:[%s1 + $0x48] sm:$0xff]
      %v516 = vld [vmem:[%s1 + $0x50] sm:$0xff]
      %v517 = vld [vmem:[%s1 + $0x58] sm:$0xff]
      %v518 = vld [vmem:[%s1 + $0x60] sm:$0xff]
      %v519 = vld [vmem:[%s1 + $0x68] sm:$0xff]
      %v520 = vld [vmem:[%s1 + $0x70] sm:$0xff]
      %v521 = vld [vmem:[%s1 + $0x78] sm:$0xff]
      %v522 = vld [vmem:[%s1 + $0x80] sm:$0xff]
      %v523 = vld [vmem:[%s1 + $0x88] sm:$0xff]
      %v524 = vld [vmem:[%s1 + $0x90] sm:$0xff]
      %v525 = vld [vmem:[%s1 + $0x98] sm:$0xff]
      %v526 = vld [vmem:[%s1 + $0xa0] sm:$0xff]
      %v527 = vld [vmem:[%s1 + $0xa8] sm:$0xff]
      %v528 = vld [vmem:[%s1 + $0xb0] sm:$0xff]
      %v529 = vld [vmem:[%s1 + $0xb8] sm:$0xff]
      %v530 = vld [vmem:[%s1 + $0xc0] sm:$0xff]
      %v531 = vld [vmem:[%s1 + $0xc8] sm:$0xff]
      %v532 = vld [vmem:[%s1 + $0xd0] sm:$0xff]
      %v533 = vld [vmem:[%s1 + $0xd8] sm:$0xff]
      %v534 = vld [vmem:[%s1 + $0xe0] sm:$0xff]
      %v535 = vld [vmem:[%s1 + $0xe8] sm:$0xff]
      %v536 = vld [vmem:[%s1 + $0xf0] sm:$0xff]
      %v537 = vld [vmem:[%s1 + $0xf8] sm:$0xff]
      %v538 = vld [vmem:[%s1 + $0x100] sm:$0xff]
      %v539 = vld [vmem:[%s1 + $0x108] sm:$0xff]
      %v540 = vld [vmem:[%s1 + $0x110] sm:$0xff]
      %v541 = vld [vmem:[%s1 + $0x118] sm:$0xff]
      %v542 = vld [vmem:[%s1 + $0x120] sm:$0xff]
      %v543 = vld [vmem:[%s1 + $0x128] sm:$0xff]
      %v544 = vld [vmem:[%s1 + $0x130] sm:$0xff]
      %v545 = vld [vmem:[%s1 + $0x138] sm:$0xff]
      %v546 = vld [vmem:[%s1 + $0x140] sm:$0xff]
      %v547 = vld [vmem:[%s1 + $0x148] sm:$0xff]
      %v548 = vld [vmem:[%s1 + $0x150] sm:$0xff]
      %v549 = vld [vmem:[%s1 + $0x158] sm:$0xff]
      %v550 = vld [vmem:[%s1 + $0x160] sm:$0xff]
      %v551 = vld [vmem:[%s1 + $0x168] sm:$0xff]
      %v552 = vld [vmem:[%s1 + $0x170] sm:$0xff]
      %v553 = vld [vmem:[%s1 + $0x178] sm:$0xff]
      %v554 = vld [vmem:[%s1 + $0x180] sm:$0xff]
      %v555 = vld [vmem:[%s1 + $0x188] sm:$0xff]
      %v556 = vld [vmem:[%s1 + $0x190] sm:$0xff]
      %v557 = vld [vmem:[%s1 + $0x198] sm:$0xff]
      %v558 = vld [vmem:[%s1 + $0x1a0] sm:$0xff]
      %v559 = vld [vmem:[%s1 + $0x1a8] sm:$0xff]
      %v560 = vld [vmem:[%s1 + $0x1b0] sm:$0xff]
      %v561 = vld [vmem:[%s1 + $0x1b8] sm:$0xff]
      %v562 = vld [vmem:[%s1 + $0x1c0] sm:$0xff]
      %v563 = vld [vmem:[%s1 + $0x1c8] sm:$0xff]
      %v564 = vld [vmem:[%s1 + $0x1d0] sm:$0xff]
      %v565 = vld [vmem:[%s1 + $0x1d8] sm:$0xff]
      %v566 = vld [vmem:[%s1 + $0x1e0] sm:$0xff]
      %v567 = vld [vmem:[%s1 + $0x1e8] sm:$0xff]
      %v568 = vld [vmem:[%s1 + $0x1f0] sm:$0xff]
      %v569 = vld [vmem:[%s1 + $0x1f8] sm:$0xff]
      %v570 = vld [vmem:[%s2] sm:$0xf]
      %v572 = vperm.slane %v570, 0
      %v573 = vperm.slane %v570, 1
      %v574 = vperm.slane %v570, 2
      %v575 = vperm.slane %v570, 3
      %580 = vmatpush.msra.mxu0 %v566
      %581 = vmatpush.msra.mxu0 %v562
      %582 = vmatpush.msra.mxu0 %v558
      %583 = vmatpush.msra.mxu0 %v554
      %584 = vmatpush.msra.mxu0 %v550
      %585 = vmatpush.msra.mxu0 %v546
      %586 = vmatpush.msra.mxu0 %v542
      %587 = vmatpush.msra.mxu0 %v538
      %588 = vmatpush.msra.mxu0 %v534
      %589 = vmatpush.msra.mxu0 %v530
      %590 = vmatpush.msra.mxu0 %v526
      %591 = vmatpush.msra.mxu0 %v522
      %592 = vmatpush.msra.mxu0 %v518
      %593 = vmatpush.msra.mxu0 %v514
      %594 = vmatpush.msra.mxu0 %v510
      %595 = vmatpush.msra.mxu0 %v506
      %596 = vmatmul.f32.gmra.mxu0 %v505
      %v597 = vpop.f32.mrf.mxu0
      %v598 = vadd.f32 %v572, %v597
      %599 = vdwg.mxu0
      %600 = vmatpush.msra.mxu0 %v567
      %601 = vmatpush.msra.mxu0 %v563
      %602 = vmatpush.msra.mxu0 %v559
      %603 = vmatpush.msra.mxu0 %v555
      %604 = vmatpush.msra.mxu0 %v551
      %605 = vmatpush.msra.mxu0 %v547
      %606 = vmatpush.msra.mxu0 %v543
      %607 = vmatpush.msra.mxu0 %v539
      %608 = vmatpush.msra.mxu0 %v535
      %609 = vmatpush.msra.mxu0 %v531
      %610 = vmatpush.msra.mxu0 %v527
      %611 = vmatpush.msra.mxu0 %v523
      %612 = vmatpush.msra.mxu0 %v519
      %613 = vmatpush.msra.mxu0 %v515
      %614 = vmatpush.msra.mxu0 %v511
      %615 = vmatpush.msra.mxu0 %v507
      %616 = vmatmul.f32.gmra.mxu0 %v505
      %v617 = vpop.f32.mrf.mxu0
      %v618 = vadd.f32 %v573, %v617
      %619 = vdwg.mxu0
      %620 = vmatpush.msra.mxu0 %v568
      %621 = vmatpush.msra.mxu0 %v564
      %622 = vmatpush.msra.mxu0 %v560
      %623 = vmatpush.msra.mxu0 %v556
      %624 = vmatpush.msra.mxu0 %v552
      %625 = vmatpush.msra.mxu0 %v548
      %626 = vmatpush.msra.mxu0 %v544
      %627 = vmatpush.msra.mxu0 %v540
      %628 = vmatpush.msra.mxu0 %v536
      %629 = vmatpush.msra.mxu0 %v532
      %630 = vmatpush.msra.mxu0 %v528
      %631 = vmatpush.msra.mxu0 %v524
      %632 = vmatpush.msra.mxu0 %v520
      %633 = vmatpush.msra.mxu0 %v516
      %634 = vmatpush.msra.mxu0 %v512
      %635 = vmatpush.msra.mxu0 %v508
      %636 = vmatmul.f32.gmra.mxu0 %v505
      %v637 = vpop.f32.mrf.mxu0
      %v638 = vadd.f32 %v574, %v637
      %639 = vdwg.mxu0
      %640 = vmatpush.msra.mxu0 %v569
      %641 = vmatpush.msra.mxu0 %v565
      %642 = vmatpush.msra.mxu0 %v561
      %643 = vmatpush.msra.mxu0 %v557
      %644 = vmatpush.msra.mxu0 %v553
      %645 = vmatpush.msra.mxu0 %v549
      %646 = vmatpush.msra.mxu0 %v545
      %647 = vmatpush.msra.mxu0 %v541
      %648 = vmatpush.msra.mxu0 %v537
      %649 = vmatpush.msra.mxu0 %v533
      %650 = vmatpush.msra.mxu0 %v529
      %651 = vmatpush.msra.mxu0 %v525
      %652 = vmatpush.msra.mxu0 %v521
      %653 = vmatpush.msra.mxu0 %v517
      %654 = vmatpush.msra.mxu0 %v513
      %655 = vmatpush.msra.mxu0 %v509
      %656 = vmatmul.f32.gmra.mxu0 %v505
      %v657 = vpop.f32.mrf.mxu0
      %v658 = vadd.f32 %v575, %v657
      %659 = vdwg.mxu0
      %v660 = vmax.f32 %v598, 0.0
      %v661 = vmax.f32 %v618, 0.0
      %v662 = vmax.f32 %v638, 0.0
      %v663 = vmax.f32 %v658, 0.0
      %v664 = vld [vmem:[%s3] sm:$0x1]
      %vm665 = vcmask 64512
      %v667 = vsel %vm665, %v664, 0
      %669 = vmatpush.msra.mxu0 0.0
      %670 = vmatpush.msra.mxu0 0.0
      %671 = vmatpush.msra.mxu0 0.0
      %672 = vmatpush.msra.mxu0 0.0
      %673 = vmatpush.msra.mxu0 0.0
      %674 = vmatpush.msra.mxu0 0.0
      %675 = vmatpush.msra.mxu0 0.0
      %676 = vmatpush.msra.mxu0 0.0
      %677 = vmatpush.msra.mxu0 0.0
      %678 = vmatpush.msra.mxu0 0.0
      %679 = vmatpush.msra.mxu0 0.0
      %680 = vmatpush.msra.mxu0 0.0
      %681 = vmatpush.msra.mxu0 0.0
      %682 = vmatpush.msra.mxu0 0.0
      %683 = vmatpush.msra.mxu0 0.0
      %684 = vmatpush.msra.mxu0 %v660
      %685 = vmatmul.f32.gmra.mxu0 %v667
      %v686 = vpop.f32.mrf.mxu0
      %v687 = vadd.f32 0.0, %v686
      %688 = vdwg.mxu0
      %689 = vmatpush.msra.mxu0 0.0
      %690 = vmatpush.msra.mxu0 0.0
      %691 = vmatpush.msra.mxu0 0.0
      %692 = vmatpush.msra.mxu0 0.0
      %693 = vmatpush.msra.mxu0 0.0
      %694 = vmatpush.msra.mxu0 0.0
      %695 = vmatpush.msra.mxu0 0.0
      %696 = vmatpush.msra.mxu0 0.0
      %697 = vmatpush.msra.mxu0 0.0
      %698 = vmatpush.msra.mxu0 0.0
      %699 = vmatpush.msra.mxu0 0.0
      %700 = vmatpush.msra.mxu0 0.0
      %701 = vmatpush.msra.mxu0 0.0
      %702 = vmatpush.msra.mxu0 0.0
      %703 = vmatpush.msra.mxu0 0.0
      %704 = vmatpush.msra.mxu0 %v661
      %705 = vmatmul.f32.gmra.mxu0 %v667
      %v706 = vpop.f32.mrf.mxu0
      %v707 = vadd.f32 0.0, %v706
      %708 = vdwg.mxu0
      %v709 = vld [vmem:[%s4] sm:$0xff]
      %v710 = vld [vmem:[%s4 + $0x8] sm:$0xff]
      %v711 = vld [vmem:[%s4 + $0x10] sm:$0xff]
      %v712 = vld [vmem:[%s4 + $0x18] sm:$0xff]
      %v713 = vld [vmem:[%s4 + $0x20] sm:$0xff]
      %v714 = vld [vmem:[%s4 + $0x28] sm:$0xff]
      %v715 = vld [vmem:[%s4 + $0x30] sm:$0xff]
      %v716 = vld [vmem:[%s4 + $0x38] sm:$0xff]
      %v717 = vld [vmem:[%s4 + $0x40] sm:$0xff]
      %v718 = vld [vmem:[%s4 + $0x48] sm:$0xff]
      %v719 = vld [vmem:[%s4 + $0x50] sm:$0xff]
      %v720 = vld [vmem:[%s4 + $0x58] sm:$0xff]
      %v721 = vld [vmem:[%s4 + $0x60] sm:$0xff]
      %v722 = vld [vmem:[%s4 + $0x68] sm:$0xff]
      %v723 = vld [vmem:[%s4 + $0x70] sm:$0xff]
      %v724 = vld [vmem:[%s4 + $0x78] sm:$0xff]
      %v725 = vld [vmem:[%s4 + $0x80] sm:$0xff]
      %v726 = vld [vmem:[%s4 + $0x88] sm:$0xff]
      %v727 = vld [vmem:[%s4 + $0x90] sm:$0xff]
      %v728 = vld [vmem:[%s4 + $0x98] sm:$0xff]
      %v729 = vld [vmem:[%s4 + $0xa0] sm:$0xff]
      %v730 = vld [vmem:[%s4 + $0xa8] sm:$0xff]
      %v731 = vld [vmem:[%s4 + $0xb0] sm:$0xff]
      %v732 = vld [vmem:[%s4 + $0xb8] sm:$0xff]
      %v733 = vld [vmem:[%s4 + $0xc0] sm:$0xff]
      %v734 = vld [vmem:[%s4 + $0xc8] sm:$0xff]
      %v735 = vld [vmem:[%s4 + $0xd0] sm:$0xff]
      %v736 = vld [vmem:[%s4 + $0xd8] sm:$0xff]
      %v737 = vld [vmem:[%s4 + $0xe0] sm:$0xff]
      %v738 = vld [vmem:[%s4 + $0xe8] sm:$0xff]
      %v739 = vld [vmem:[%s4 + $0xf0] sm:$0xff]
      %v740 = vld [vmem:[%s4 + $0xf8] sm:$0xff]
      %v741 = vld [vmem:[%s4 + $0x100] sm:$0xff]
      %v742 = vld [vmem:[%s4 + $0x108] sm:$0xff]
      %v743 = vld [vmem:[%s4 + $0x110] sm:$0xff]
      %v744 = vld [vmem:[%s4 + $0x118] sm:$0xff]
      %v745 = vld [vmem:[%s4 + $0x120] sm:$0xff]
      %v746 = vld [vmem:[%s4 + $0x128] sm:$0xff]
      %v747 = vld [vmem:[%s4 + $0x130] sm:$0xff]
      %v748 = vld [vmem:[%s4 + $0x138] sm:$0xff]
      %v749 = vld [vmem:[%s4 + $0x140] sm:$0xff]
      %v750 = vld [vmem:[%s4 + $0x148] sm:$0xff]
      %v751 = vld [vmem:[%s4 + $0x150] sm:$0xff]
      %v752 = vld [vmem:[%s4 + $0x158] sm:$0xff]
      %v753 = vld [vmem:[%s4 + $0x160] sm:$0xff]
      %v754 = vld [vmem:[%s4 + $0x168] sm:$0xff]
      %v755 = vld [vmem:[%s4 + $0x170] sm:$0xff]
      %v756 = vld [vmem:[%s4 + $0x178] sm:$0xff]
      %v757 = vld [vmem:[%s4 + $0x180] sm:$0xff]
      %v758 = vld [vmem:[%s4 + $0x188] sm:$0xff]
      %v759 = vld [vmem:[%s4 + $0x190] sm:$0xff]
      %v760 = vld [vmem:[%s4 + $0x198] sm:$0xff]
      %v761 = vld [vmem:[%s4 + $0x1a0] sm:$0xff]
      %v762 = vld [vmem:[%s4 + $0x1a8] sm:$0xff]
      %v763 = vld [vmem:[%s4 + $0x1b0] sm:$0xff]
      %v764 = vld [vmem:[%s4 + $0x1b8] sm:$0xff]
      %v765 = vld [vmem:[%s4 + $0x1c0] sm:$0xff]
      %v766 = vld [vmem:[%s4 + $0x1c8] sm:$0xff]
      %v767 = vld [vmem:[%s4 + $0x1d0] sm:$0xff]
      %v768 = vld [vmem:[%s4 + $0x1d8] sm:$0xff]
      %v769 = vld [vmem:[%s4 + $0x1e0] sm:$0xff]
      %v770 = vld [vmem:[%s4 + $0x1e8] sm:$0xff]
      %v771 = vld [vmem:[%s4 + $0x1f0] sm:$0xff]
      %v772 = vld [vmem:[%s4 + $0x1f8] sm:$0xff]
      %v773 = vld [vmem:[%s5] sm:$0x3]
      %v775 = vperm.slane %v773, 0
      %v776 = vperm.slane %v773, 1
      %779 = vmatpush.msra.mxu0 %v739
      %780 = vmatpush.msra.mxu0 %v737
      %781 = vmatpush.msra.mxu0 %v735
      %782 = vmatpush.msra.mxu0 %v733
      %783 = vmatpush.msra.mxu0 %v731
      %784 = vmatpush.msra.mxu0 %v729
      %785 = vmatpush.msra.mxu0 %v727
      %786 = vmatpush.msra.mxu0 %v725
      %787 = vmatpush.msra.mxu0 %v723
      %788 = vmatpush.msra.mxu0 %v721
      %789 = vmatpush.msra.mxu0 %v719
      %790 = vmatpush.msra.mxu0 %v717
      %791 = vmatpush.msra.mxu0 %v715
      %792 = vmatpush.msra.mxu0 %v713
      %793 = vmatpush.msra.mxu0 %v711
      %794 = vmatpush.msra.mxu0 %v709
      %795 = vmatmul.f32.gmra.mxu0 %v687
      %v796 = vpop.f32.mrf.mxu0
      %v797 = vadd.f32 %v775, %v796
      %798 = vdwg.mxu0
      %799 = vmatpush.msra.mxu0 %v771
      %800 = vmatpush.msra.mxu0 %v769
      %801 = vmatpush.msra.mxu0 %v767
      %802 = vmatpush.msra.mxu0 %v765
      %803 = vmatpush.msra.mxu0 %v763
      %804 = vmatpush.msra.mxu0 %v761
      %805 = vmatpush.msra.mxu0 %v759
      %806 = vmatpush.msra.mxu0 %v757
      %807 = vmatpush.msra.mxu0 %v755
      %808 = vmatpush.msra.mxu0 %v753
      %809 = vmatpush.msra.mxu0 %v751
      %810 = vmatpush.msra.mxu0 %v749
      %811 = vmatpush.msra.mxu0 %v747
      %812 = vmatpush.msra.mxu0 %v745
      %813 = vmatpush.msra.mxu0 %v743
      %814 = vmatpush.msra.mxu0 %v741
      %815 = vmatmul.f32.gmra.mxu0 %v707
      %v816 = vpop.f32.mrf.mxu0
      %v817 = vadd.f32 %v797, %v816
      %818 = vdwg.mxu0
      %819 = vmatpush.msra.mxu0 %v740
      %820 = vmatpush.msra.mxu0 %v738
      %821 = vmatpush.msra.mxu0 %v736
      %822 = vmatpush.msra.mxu0 %v734
      %823 = vmatpush.msra.mxu0 %v732
      %824 = vmatpush.msra.mxu0 %v730
      %825 = vmatpush.msra.mxu0 %v728
      %826 = vmatpush.msra.mxu0 %v726
      %827 = vmatpush.msra.mxu0 %v724
      %828 = vmatpush.msra.mxu0 %v722
      %829 = vmatpush.msra.mxu0 %v720
      %830 = vmatpush.msra.mxu0 %v718
      %831 = vmatpush.msra.mxu0 %v716
      %832 = vmatpush.msra.mxu0 %v714
      %833 = vmatpush.msra.mxu0 %v712
      %834 = vmatpush.msra.mxu0 %v710
      %835 = vmatmul.f32.gmra.mxu0 %v687
      %v836 = vpop.f32.mrf.mxu0
      %v837 = vadd.f32 %v776, %v836
      %838 = vdwg.mxu0
      %839 = vmatpush.msra.mxu0 %v772
      %840 = vmatpush.msra.mxu0 %v770
      %841 = vmatpush.msra.mxu0 %v768
      %842 = vmatpush.msra.mxu0 %v766
      %843 = vmatpush.msra.mxu0 %v764
      %844 = vmatpush.msra.mxu0 %v762
      %845 = vmatpush.msra.mxu0 %v760
      %846 = vmatpush.msra.mxu0 %v758
      %847 = vmatpush.msra.mxu0 %v756
      %848 = vmatpush.msra.mxu0 %v754
      %849 = vmatpush.msra.mxu0 %v752
      %850 = vmatpush.msra.mxu0 %v750
      %851 = vmatpush.msra.mxu0 %v748
      %852 = vmatpush.msra.mxu0 %v746
      %853 = vmatpush.msra.mxu0 %v744
      %854 = vmatpush.msra.mxu0 %v742
      %855 = vmatmul.f32.gmra.mxu0 %v707
      %v856 = vpop.f32.mrf.mxu0
      %v857 = vadd.f32 %v837, %v856
      %858 = vdwg.mxu0
      %v859 = vld [vmem:[%s6] sm:$0x3]
      %v861 = vperm.slane %v859, 0
      %v862 = vperm.slane %v859, 1
      %v865 = vmul.f32 %v687, %v861
      %v866 = vmul.f32 %v707, %v862
      %vm867 = vcmask 1040384
      %v868 = vsel %vm867, %v865, 0.0
      %v869 = vsel %vm867, %v866, 0.0
      %v870 = vadd.f32 %v868, %v869
      %871 = vadd.xlane.f32.xlu0 %v870
      %v872 = vpop.xlane.xlu0 %871
      %v873 = vld [vmem:[#allocation2] sm:$0x1]
      %v874 = vadd.f32 %v872, %v873
      %v875 = vperm.slane %v817, 0
      %v876 = vperm.slane %v857, 0
      %v877 = vmul.f32 %v660, %v875
      %v878 = vmul.f32 %v661, %v876
      %v879 = vadd.f32 %v877, %v878
      %880 = vadd.xlane.f32.xlu0 %v879
      %v881 = vpop.xlane.xlu0 %880
      %v882 = vperm.slane %v874, 0
      %v883 = vadd.f32 %v881, %v882
      %vm884 = vcmask 7168
      %885 = vst.msk [vmem:[%s473] sm:$0xff] %vm884, %v883
      %v886 = vld [vmem:[%s8] sm:$0x1]
      %v888 = vsel %vm665, %v886, 0
      %890 = vmatpush.msra.mxu0 0.0
      %891 = vmatpush.msra.mxu0 0.0
      %892 = vmatpush.msra.mxu0 0.0
      %893 = vmatpush.msra.mxu0 0.0
      %894 = vmatpush.msra.mxu0 0.0
      %895 = vmatpush.msra.mxu0 0.0
      %896 = vmatpush.msra.mxu0 0.0
      %897 = vmatpush.msra.mxu0 0.0
      %898 = vmatpush.msra.mxu0 0.0
      %899 = vmatpush.msra.mxu0 0.0
      %900 = vmatpush.msra.mxu0 0.0
      %901 = vmatpush.msra.mxu0 0.0
      %902 = vmatpush.msra.mxu0 0.0
      %903 = vmatpush.msra.mxu0 0.0
      %904 = vmatpush.msra.mxu0 0.0
      %905 = vmatpush.msra.mxu0 %v662
      %906 = vmatmul.f32.gmra.mxu0 %v888
      %v907 = vpop.f32.mrf.mxu0
      %v908 = vadd.f32 0.0, %v907
      %909 = vdwg.mxu0
      %910 = vmatpush.msra.mxu0 0.0
      %911 = vmatpush.msra.mxu0 0.0
      %912 = vmatpush.msra.mxu0 0.0
      %913 = vmatpush.msra.mxu0 0.0
      %914 = vmatpush.msra.mxu0 0.0
      %915 = vmatpush.msra.mxu0 0.0
      %916 = vmatpush.msra.mxu0 0.0
      %917 = vmatpush.msra.mxu0 0.0
      %918 = vmatpush.msra.mxu0 0.0
      %919 = vmatpush.msra.mxu0 0.0
      %920 = vmatpush.msra.mxu0 0.0
      %921 = vmatpush.msra.mxu0 0.0
      %922 = vmatpush.msra.mxu0 0.0
      %923 = vmatpush.msra.mxu0 0.0
      %924 = vmatpush.msra.mxu0 0.0
      %925 = vmatpush.msra.mxu0 %v663
      %926 = vmatmul.f32.gmra.mxu0 %v888
      %v927 = vpop.f32.mrf.mxu0
      %v928 = vadd.f32 0.0, %v927
      %929 = vdwg.mxu0
      %v930 = vld [vmem:[%s9] sm:$0xff]
      %v931 = vld [vmem:[%s9 + $0x8] sm:$0xff]
      %v932 = vld [vmem:[%s9 + $0x10] sm:$0xff]
      %v933 = vld [vmem:[%s9 + $0x18] sm:$0xff]
      %v934 = vld [vmem:[%s9 + $0x20] sm:$0xff]
      %v935 = vld [vmem:[%s9 + $0x28] sm:$0xff]
      %v936 = vld [vmem:[%s9 + $0x30] sm:$0xff]
      %v937 = vld [vmem:[%s9 + $0x38] sm:$0xff]
      %v938 = vld [vmem:[%s9 + $0x40] sm:$0xff]
      %v939 = vld [vmem:[%s9 + $0x48] sm:$0xff]
      %v940 = vld [vmem:[%s9 + $0x50] sm:$0xff]
      %v941 = vld [vmem:[%s9 + $0x58] sm:$0xff]
      %v942 = vld [vmem:[%s9 + $0x60] sm:$0xff]
      %v943 = vld [vmem:[%s9 + $0x68] sm:$0xff]
      %v944 = vld [vmem:[%s9 + $0x70] sm:$0xff]
      %v945 = vld [vmem:[%s9 + $0x78] sm:$0xff]
      %v946 = vld [vmem:[%s9 + $0x80] sm:$0xff]
      %v947 = vld [vmem:[%s9 + $0x88] sm:$0xff]
      %v948 = vld [vmem:[%s9 + $0x90] sm:$0xff]
      %v949 = vld [vmem:[%s9 + $0x98] sm:$0xff]
      %v950 = vld [vmem:[%s9 + $0xa0] sm:$0xff]
      %v951 = vld [vmem:[%s9 + $0xa8] sm:$0xff]
      %v952 = vld [vmem:[%s9 + $0xb0] sm:$0xff]
      %v953 = vld [vmem:[%s9 + $0xb8] sm:$0xff]
      %v954 = vld [vmem:[%s9 + $0xc0] sm:$0xff]
      %v955 = vld [vmem:[%s9 + $0xc8] sm:$0xff]
      %v956 = vld [vmem:[%s9 + $0xd0] sm:$0xff]
      %v957 = vld [vmem:[%s9 + $0xd8] sm:$0xff]
      %v958 = vld [vmem:[%s9 + $0xe0] sm:$0xff]
      %v959 = vld [vmem:[%s9 + $0xe8] sm:$0xff]
      %v960 = vld [vmem:[%s9 + $0xf0] sm:$0xff]
      %v961 = vld [vmem:[%s9 + $0xf8] sm:$0xff]
      %v962 = vld [vmem:[%s9 + $0x100] sm:$0xff]
      %v963 = vld [vmem:[%s9 + $0x108] sm:$0xff]
      %v964 = vld [vmem:[%s9 + $0x110] sm:$0xff]
      %v965 = vld [vmem:[%s9 + $0x118] sm:$0xff]
      %v966 = vld [vmem:[%s9 + $0x120] sm:$0xff]
      %v967 = vld [vmem:[%s9 + $0x128] sm:$0xff]
      %v968 = vld [vmem:[%s9 + $0x130] sm:$0xff]
      %v969 = vld [vmem:[%s9 + $0x138] sm:$0xff]
      %v970 = vld [vmem:[%s9 + $0x140] sm:$0xff]
      %v971 = vld [vmem:[%s9 + $0x148] sm:$0xff]
      %v972 = vld [vmem:[%s9 + $0x150] sm:$0xff]
      %v973 = vld [vmem:[%s9 + $0x158] sm:$0xff]
      %v974 = vld [vmem:[%s9 + $0x160] sm:$0xff]
      %v975 = vld [vmem:[%s9 + $0x168] sm:$0xff]
      %v976 = vld [vmem:[%s9 + $0x170] sm:$0xff]
      %v977 = vld [vmem:[%s9 + $0x178] sm:$0xff]
      %v978 = vld [vmem:[%s9 + $0x180] sm:$0xff]
      %v979 = vld [vmem:[%s9 + $0x188] sm:$0xff]
      %v980 = vld [vmem:[%s9 + $0x190] sm:$0xff]
      %v981 = vld [vmem:[%s9 + $0x198] sm:$0xff]
      %v982 = vld [vmem:[%s9 + $0x1a0] sm:$0xff]
      %v983 = vld [vmem:[%s9 + $0x1a8] sm:$0xff]
      %v984 = vld [vmem:[%s9 + $0x1b0] sm:$0xff]
      %v985 = vld [vmem:[%s9 + $0x1b8] sm:$0xff]
      %v986 = vld [vmem:[%s9 + $0x1c0] sm:$0xff]
      %v987 = vld [vmem:[%s9 + $0x1c8] sm:$0xff]
      %v988 = vld [vmem:[%s9 + $0x1d0] sm:$0xff]
      %v989 = vld [vmem:[%s9 + $0x1d8] sm:$0xff]
      %v990 = vld [vmem:[%s9 + $0x1e0] sm:$0xff]
      %v991 = vld [vmem:[%s9 + $0x1e8] sm:$0xff]
      %v992 = vld [vmem:[%s9 + $0x1f0] sm:$0xff]
      %v993 = vld [vmem:[%s9 + $0x1f8] sm:$0xff]
      %v994 = vld [vmem:[%s10] sm:$0x3]
      %v996 = vperm.slane %v994, 0
      %v997 = vperm.slane %v994, 1
      %1000 = vmatpush.msra.mxu0 %v960
      %1001 = vmatpush.msra.mxu0 %v958
      %1002 = vmatpush.msra.mxu0 %v956
      %1003 = vmatpush.msra.mxu0 %v954
      %1004 = vmatpush.msra.mxu0 %v952
      %1005 = vmatpush.msra.mxu0 %v950
      %1006 = vmatpush.msra.mxu0 %v948
      %1007 = vmatpush.msra.mxu0 %v946
      %1008 = vmatpush.msra.mxu0 %v944
      %1009 = vmatpush.msra.mxu0 %v942
      %1010 = vmatpush.msra.mxu0 %v940
      %1011 = vmatpush.msra.mxu0 %v938
      %1012 = vmatpush.msra.mxu0 %v936
      %1013 = vmatpush.msra.mxu0 %v934
      %1014 = vmatpush.msra.mxu0 %v932
      %1015 = vmatpush.msra.mxu0 %v930
      %1016 = vmatmul.f32.gmra.mxu0 %v908
      %v1017 = vpop.f32.mrf.mxu0
      %v1018 = vadd.f32 %v996, %v1017
      %1019 = vdwg.mxu0
      %1020 = vmatpush.msra.mxu0 %v992
      %1021 = vmatpush.msra.mxu0 %v990
      %1022 = vmatpush.msra.mxu0 %v988
      %1023 = vmatpush.msra.mxu0 %v986
      %1024 = vmatpush.msra.mxu0 %v984
      %1025 = vmatpush.msra.mxu0 %v982
      %1026 = vmatpush.msra.mxu0 %v980
      %1027 = vmatpush.msra.mxu0 %v978
      %1028 = vmatpush.msra.mxu0 %v976
      %1029 = vmatpush.msra.mxu0 %v974
      %1030 = vmatpush.msra.mxu0 %v972
      %1031 = vmatpush.msra.mxu0 %v970
      %1032 = vmatpush.msra.mxu0 %v968
      %1033 = vmatpush.msra.mxu0 %v966
      %1034 = vmatpush.msra.mxu0 %v964
      %1035 = vmatpush.msra.mxu0 %v962
      %1036 = vmatmul.f32.gmra.mxu0 %v928
      %v1037 = vpop.f32.mrf.mxu0
      %v1038 = vadd.f32 %v1018, %v1037
      %1039 = vdwg.mxu0
      %1040 = vmatpush.msra.mxu0 %v961
      %1041 = vmatpush.msra.mxu0 %v959
      %1042 = vmatpush.msra.mxu0 %v957
      %1043 = vmatpush.msra.mxu0 %v955
      %1044 = vmatpush.msra.mxu0 %v953
      %1045 = vmatpush.msra.mxu0 %v951
      %1046 = vmatpush.msra.mxu0 %v949
      %1047 = vmatpush.msra.mxu0 %v947
      %1048 = vmatpush.msra.mxu0 %v945
      %1049 = vmatpush.msra.mxu0 %v943
      %1050 = vmatpush.msra.mxu0 %v941
      %1051 = vmatpush.msra.mxu0 %v939
      %1052 = vmatpush.msra.mxu0 %v937
      %1053 = vmatpush.msra.mxu0 %v935
      %1054 = vmatpush.msra.mxu0 %v933
      %1055 = vmatpush.msra.mxu0 %v931
      %1056 = vmatmul.f32.gmra.mxu0 %v908
      %v1057 = vpop.f32.mrf.mxu0
      %v1058 = vadd.f32 %v997, %v1057
      %1059 = vdwg.mxu0
      %1060 = vmatpush.msra.mxu0 %v993
      %1061 = vmatpush.msra.mxu0 %v991
      %1062 = vmatpush.msra.mxu0 %v989
      %1063 = vmatpush.msra.mxu0 %v987
      %1064 = vmatpush.msra.mxu0 %v985
      %1065 = vmatpush.msra.mxu0 %v983
      %1066 = vmatpush.msra.mxu0 %v981
      %1067 = vmatpush.msra.mxu0 %v979
      %1068 = vmatpush.msra.mxu0 %v977
      %1069 = vmatpush.msra.mxu0 %v975
      %1070 = vmatpush.msra.mxu0 %v973
      %1071 = vmatpush.msra.mxu0 %v971
      %1072 = vmatpush.msra.mxu0 %v969
      %1073 = vmatpush.msra.mxu0 %v967
      %1074 = vmatpush.msra.mxu0 %v965
      %1075 = vmatpush.msra.mxu0 %v963
      %1076 = vmatmul.f32.gmra.mxu0 %v928
      %v1077 = vpop.f32.mrf.mxu0
      %v1078 = vadd.f32 %v1058, %v1077
      %1079 = vdwg.mxu0
      %v1080 = vld [vmem:[%s11] sm:$0x3]
      %v1082 = vperm.slane %v1080, 0
      %v1083 = vperm.slane %v1080, 1
      %v1086 = vmul.f32 %v908, %v1082
      %v1087 = vmul.f32 %v928, %v1083
      %v1088 = vsel %vm867, %v1086, 0.0
      %v1089 = vsel %vm867, %v1087, 0.0
      %v1090 = vadd.f32 %v1088, %v1089
      %1091 = vadd.xlane.f32.xlu0 %v1090
      %v1092 = vpop.xlane.xlu0 %1091
      %v1093 = vld [vmem:[#allocation3] sm:$0x1]
      %v1094 = vadd.f32 %v1092, %v1093
      %v1095 = vperm.slane %v1038, 0
      %v1096 = vperm.slane %v1078, 0
      %v1097 = vmul.f32 %v662, %v1095
      %v1098 = vmul.f32 %v663, %v1096
      %v1099 = vadd.f32 %v1097, %v1098
      %1100 = vadd.xlane.f32.xlu0 %v1099
      %v1101 = vpop.xlane.xlu0 %1100
      %v1102 = vperm.slane %v1094, 0
      %v1103 = vadd.f32 %v1101, %v1102
      %1104 = vst.msk [vmem:[%s477] sm:$0xff] %vm884, %v1103
      %p1105 = scmp.lt.s32.totalorder %s30, 1
      %s1106 = scalar_select %p1105, %s30, 1
      %s1107 = smul.addr %s1106, 8
      %s1108 = scalar_lea.vmem %s13, %s1107
      %p1109 = scmp.lt.s32.totalorder %s30, 1
      %s1110 = scalar_select %p1109, %s30, 1
      %s1111 = smul.addr %s1110, 8
      %s1112 = scalar_lea.vmem %s14, %s1111
      // Predicated region
      $region73: #{time_disentangle_forward.4} parent=71 // pred_check
        %p1113 = pneg %p326
      $region74: #{time_disentangle_forward.4} parent=71 // pred_check_branch
        %1115 = sbr.rel (%p1113) target = $region76
      $region75: #{time_disentangle_forward.4} parent=71 // pred_region
        _
      $region76: #{time_disentangle_forward.4} parent=71 // pred_fallthru
        _
      // Predicated region
      $region77: #{time_disentangle_forward.4} parent=71 // pred_check
        %p1116 = pneg %p352
      $region78: #{time_disentangle_forward.4} parent=71 // pred_check_branch
        %1118 = sbr.rel (%p1116) target = $region80
      $region79: #{time_disentangle_forward.4} parent=71 // pred_region
        _
      $region80: #{time_disentangle_forward.4} parent=71 // pred_fallthru
        _
    $region72: #{time_disentangle_forward.4} parent=5 // pred_fallthru
      _
    %p1119 = scmp.le.s32.totalorder 2, %s25
    // Predicated region
    $region81: #{time_disentangle_forward.4} parent=5 // pred_check
      %p1120 = pneg %p1119
    $region82: #{time_disentangle_forward.4} parent=5 // pred_check_branch
      %1122 = sbr.rel (%p1120) target = $region84
    $region83: #{time_disentangle_forward.4} parent=5 // pred_region
      %s1123 = ssub.s32 %s25, 2
      // Predicated region
      $region85: #{time_disentangle_forward.4} parent=83 // pred_check
        %p1124 = pneg %p332
      $region86: #{time_disentangle_forward.4} parent=83 // pred_check_branch
        %1126 = sbr.rel (%p1124) target = $region88
      $region87: #{time_disentangle_forward.4} parent=83 // pred_region
        %p1127 = scmp.lt.s32.totalorder %s31, 1
        %s1128 = scalar_select %p1127, %s31, 1
        %s1129 = smul.addr %s1128, 8
        %s1130 = scalar_lea.vmem %s13, %s1129
      $region88: #{time_disentangle_forward.4} parent=83 // pred_fallthru
        _
      // Predicated region
      $region89: #{time_disentangle_forward.4} parent=83 // pred_check
        %p1131 = pneg %p358
      $region90: #{time_disentangle_forward.4} parent=83 // pred_check_branch
        %1133 = sbr.rel (%p1131) target = $region92
      $region91: #{time_disentangle_forward.4} parent=83 // pred_region
        %p1134 = scmp.lt.s32.totalorder %s31, 1
        %s1135 = scalar_select %p1134, %s31, 1
        %s1136 = smul.addr %s1135, 8
        %s1137 = scalar_lea.vmem %s14, %s1136
      $region92: #{time_disentangle_forward.4} parent=83 // pred_fallthru
        _
    $region84: #{time_disentangle_forward.4} parent=5 // pred_fallthru
      _
  $region6: #{time_disentangle_forward.4} parent=0 // loop_footer
    %s29 = sadd.s32 1, %s25
  $region7: #{time_disentangle_forward.4} parent=0 // loop_footer_branch
    %24 = sbr.rel target = $region3
  $region8: #{time_disentangle_forward.4} parent=0 // loop_exit
    _

// kernel: time_disentangle_forward.5
$region0: #{time_disentangle_forward.5}
  #allocation0 [shape = 'u32[]', space=smem, size = 0x4, offset = 0x4, fixed_abs, tag = 'smem constant byte address 0x4 - core index']
  #allocation1 [shape = 'u32[72,128]{1,0:T(1,128)}', space=vmem, size = 0x9000, scoped, tag = 'internal scratch']
  %s0 = inlined_call_operand.vmem [shape: f32[2,16,64], index: 0, kind: input, shape index: {}]
  %s1 = inlined_call_operand.vmem [shape: f32[2,1,8], index: 1, kind: input, shape index: {}]
  %s2 = inlined_call_operand.vmem [shape: f32[2,1,8], index: 2, kind: input, shape index: {}]
  %s3 = inlined_call_operand.vmem [shape: f32[64,8], index: 3, kind: input, shape index: {}]
  %s4 = inlined_call_operand.hbm [shape: f32[2,16,64], index: 4, kind: output, shape index: {0}]
  %s5 = inlined_call_operand.hbm [shape: f32[2,16,64], index: 5, kind: output, shape index: {1}]
  %6 = xla_tuple %s4, %s5
  %s7 = sld [smem:[#allocation0]]
  $region57: #{time_disentangle_forward.5} parent=0
    _
  %s9 = ssub.s32 1, %s7
  %s10 = scalar_select 0, %s9, %s7
  $region1: #{time_disentangle_forward.5} parent=0
    #allocation2 [shape = 'u8[16384]{0}', space=vmem, size = 0x4000, scoped, tag = 'output window, operand 0']
    #allocation3 [shape = 's32[2]{0}', space=sflag, size = 0x8, scoped, tag = 'scoped memory for time_disentangle_forward.5']
    #allocation4 [shape = 'u8[16384]{0}', space=vmem, size = 0x4000, scoped, tag = 'output window, operand 1']
    #allocation5 [shape = 's32[2]{0}', space=sflag, size = 0x8, scoped, tag = 'scoped memory for time_disentangle_forward.5']
    %11 = vsyncpa [#allocation3], 0
    %s12 = scalar_lea.sflag [#allocation3], 1
    %13 = vsyncpa %s12, 0
    %14 = vsyncpa [#allocation5], 0
    %s15 = scalar_lea.sflag [#allocation5], 1
    %16 = vsyncpa %s15, 0
    loop: start=0, step=1, limit=4
    $region2: #{time_disentangle_forward.5} parent=1 // loop_pre_header
      _
    $region3: #{time_disentangle_forward.5} parent=1 // loop_header
      %s18 = sphi 0, %s22
      %p19 = scmp.ge.s32.totalorder %s18, 4
      %s25 = sphi 0, %s37
      %s26 = sphi 0, %s33
      %s27 = sphi 0, %s25
      %s28 = sphi 0, %s26
      %s29 = sphi 0, %s27
      %s30 = sphi 0, %s28
      %s42 = sphi 0, %s44
      %s45 = sphi 0, %s42
      %s46 = sphi 0, %s45
      %s62 = sphi 0, %s46
      %s68 = sphi 0, %s70
      %s71 = sphi 0, %s68
      %s72 = sphi 0, %s71
      %s88 = sphi 0, %s72
      %s94 = sphi 0, %s96
      %s97 = sphi 0, %s94
      %s98 = sphi 0, %s97
      %s114 = sphi 0, %s98
      %s118 = sphi 0, %s118
      %s120 = sphi 0, %s118
      %s121 = sphi 0, %s120
      %s135 = sphi 0, %s121
      %s143 = sphi 0, %s145
      %s146 = sphi 0, %s143
      %s147 = sphi 0, %s146
      %s163 = sphi 0, %s147
      %s171 = sphi 0, %s173
      %s174 = sphi 0, %s171
      %s175 = sphi 0, %s174
      %s191 = sphi 0, %s175
    $region4: #{time_disentangle_forward.5} parent=1 // loop_header_branch
      %21 = sbr.rel (%p19) target = $region8
    $region5: #{time_disentangle_forward.5} parent=1 // loop_body
      %s23 = ssub.s32 %s18, 1
      %s24 = ssub.s32 %s18, 2
      %s31 = sadd.s32 1, %s26
      %p32 = scmp.ge.s32.totalorder %s31, 1
      %s33 = scalar_select %p32, 0, %s31
      %s34 = sadd.s32 1, %s25
      %s35 = scalar_select %p32, %s34, %s25
      %p36 = scmp.ge.s32.totalorder %s35, 2
      %s37 = scalar_select %p36, 0, %s35
      %s38 = ssub.s32 %s25, %s37
      %s39 = ssub.s32 %s26, %s33
      %s40 = sor.u32 %s38, %s39
      %p41 = scmp.eq.s32.totalorder %s40, 0
      %s43 = sadd.s32 %s42, 1
      %s44 = scalar_select %p41, %s42, %s43
      %p47 = pneg %p41
      %p48 = scmp.eq.s32.totalorder %s18, 1
      %p49 = por %p47, %p48
      %p50 = scmp.ne.s32.totalorder %s42, %s45
      %p51 = scmp.eq.s32.totalorder %s18, 0
      %p52 = por %p50, %p51
      %p53 = scmp.ne.s32.totalorder %s42, %s45
      %p54 = scmp.eq.s32.totalorder %s23, 1
      %p55 = por %p53, %p54
      %p56 = scmp.ne.s32.totalorder %s45, %s46
      %p57 = scmp.eq.s32.totalorder %s23, 0
      %p58 = por %p56, %p57
      %p59 = scmp.ne.s32.totalorder %s45, %s46
      %p60 = scmp.eq.s32.totalorder %s24, 1
      %p61 = por %p59, %p60
      %p63 = scmp.ne.s32.totalorder %s46, %s62
      %p64 = scmp.eq.s32.totalorder %s24, 0
      %p65 = por %p63, %p64
      %s66 = ssub.s32 %s25, %s37
      %p67 = scmp.eq.s32.totalorder %s66, 0
      %s69 = sadd.s32 %s68, 1
      %s70 = scalar_select %p67, %s68, %s69
      %p73 = pneg %p67
      %p74 = scmp.eq.s32.totalorder %s18, 1
      %p75 = por %p73, %p74
      %p76 = scmp.ne.s32.totalorder %s68, %s71
      %p77 = scmp.eq.s32.totalorder %s18, 0
      %p78 = por %p76, %p77
      %p79 = scmp.ne.s32.totalorder %s68, %s71
      %p80 = scmp.eq.s32.totalorder %s23, 1
      %p81 = por %p79, %p80
      %p82 = scmp.ne.s32.totalorder %s71, %s72
      %p83 = scmp.eq.s32.totalorder %s23, 0
      %p84 = por %p82, %p83
      %p85 = scmp.ne.s32.totalorder %s71, %s72
      %p86 = scmp.eq.s32.totalorder %s24, 1
      %p87 = por %p85, %p86
      %p89 = scmp.ne.s32.totalorder %s72, %s88
      %p90 = scmp.eq.s32.totalorder %s24, 0
      %p91 = por %p89, %p90
      %s92 = ssub.s32 %s25, %s37
      %p93 = scmp.eq.s32.totalorder %s92, 0
      %s95 = sadd.s32 %s94, 1
      %s96 = scalar_select %p93, %s94, %s95
      %p99 = pneg %p93
      %p100 = scmp.eq.s32.totalorder %s18, 1
      %p101 = por %p99, %p100
      %p102 = scmp.ne.s32.totalorder %s94, %s97
      %p103 = scmp.eq.s32.totalorder %s18, 0
      %p104 = por %p102, %p103
      %p105 = scmp.ne.s32.totalorder %s94, %s97
      %p106 = scmp.eq.s32.totalorder %s23, 1
      %p107 = por %p105, %p106
      %p108 = scmp.ne.s32.totalorder %s97, %s98
      %p109 = scmp.eq.s32.totalorder %s23, 0
      %p110 = por %p108, %p109
      %p111 = scmp.ne.s32.totalorder %s97, %s98
      %p112 = scmp.eq.s32.totalorder %s24, 1
      %p113 = por %p111, %p112
      %p115 = scmp.ne.s32.totalorder %s98, %s114
      %p116 = scmp.eq.s32.totalorder %s24, 0
      %p117 = por %p115, %p116
      %s119 = sadd.s32 %s118, 1
      %p122 = scmp.eq.s32.totalorder %s18, 1
      %p123 = scmp.ne.s32.totalorder %s118, %s120
      %p124 = scmp.eq.s32.totalorder %s18, 0
      %p125 = por %p123, %p124
      %p126 = scmp.ne.s32.totalorder %s118, %s120
      %p127 = scmp.eq.s32.totalorder %s23, 1
      %p128 = por %p126, %p127
      %p129 = scmp.ne.s32.totalorder %s120, %s121
      %p130 = scmp.eq.s32.totalorder %s23, 0
      %p131 = por %p129, %p130
      %p132 = scmp.ne.s32.totalorder %s120, %s121
      %p133 = scmp.eq.s32.totalorder %s24, 1
      %p134 = por %p132, %p133
      %p136 = scmp.ne.s32.totalorder %s121, %s135
      %p137 = scmp.eq.s32.totalorder %s24, 0
      %p138 = por %p136, %p137
      %s139 = ssub.s32 %s25, %s37
      %s140 = ssub.s32 %s26, %s33
      %s141 = sor.u32 %s139, %s140
      %p142 = scmp.eq.s32.totalorder %s141, 0
      %s144 = sadd.s32 %s143, 1
      %s145 = scalar_select %p142, %s143, %s144
      %p148 = pneg %p142
      %p149 = scmp.eq.s32.totalorder %s18, 1
      %p150 = por %p148, %p149
      %p151 = scmp.ne.s32.totalorder %s143, %s146
      %p152 = scmp.eq.s32.totalorder %s18, 0
      %p153 = por %p151, %p152
      %p154 = scmp.ne.s32.totalorder %s143, %s146
      %p155 = scmp.eq.s32.totalorder %s23, 1
      %p156 = por %p154, %p155
      %p157 = scmp.ne.s32.totalorder %s146, %s147
      %p158 = scmp.eq.s32.totalorder %s23, 0
      %p159 = por %p157, %p158
      %p160 = scmp.ne.s32.totalorder %s146, %s147
      %p161 = scmp.eq.s32.totalorder %s24, 1
      %p162 = por %p160, %p161
      %p164 = scmp.ne.s32.totalorder %s147, %s163
      %p165 = scmp.eq.s32.totalorder %s24, 0
      %p166 = por %p164, %p165
      %s167 = ssub.s32 %s25, %s37
      %s168 = ssub.s32 %s26, %s33
      %s169 = sor.u32 %s167, %s168
      %p170 = scmp.eq.s32.totalorder %s169, 0
      %s172 = sadd.s32 %s171, 1
      %s173 = scalar_select %p170, %s171, %s172
      %p176 = pneg %p170
      %p177 = scmp.eq.s32.totalorder %s18, 1
      %p178 = por %p176, %p177
      %p179 = scmp.ne.s32.totalorder %s171, %s174
      %p180 = scmp.eq.s32.totalorder %s18, 0
      %p181 = por %p179, %p180
      %p182 = scmp.ne.s32.totalorder %s171, %s174
      %p183 = scmp.eq.s32.totalorder %s23, 1
      %p184 = por %p182, %p183
      %p185 = scmp.ne.s32.totalorder %s174, %s175
      %p186 = scmp.eq.s32.totalorder %s23, 0
      %p187 = por %p185, %p186
      %p188 = scmp.ne.s32.totalorder %s174, %s175
      %p189 = scmp.eq.s32.totalorder %s24, 1
      %p190 = por %p188, %p189
      %p192 = scmp.ne.s32.totalorder %s175, %s191
      %p193 = scmp.eq.s32.totalorder %s24, 0
      %p194 = por %p192, %p193
      %p195 = scmp.le.s32.totalorder 1, %s18
      %p196 = scmp.lt.s32.totalorder %s18, 3
      %p197 = pnand %p195, %p196
      %p198 = pneg %p197
      // Predicated region
      $region9: #{time_disentangle_forward.5} parent=5 // pred_check
        _
      $region10: #{time_disentangle_forward.5} parent=5 // pred_check_branch
        %200 = sbr.rel (%p197) target = $region12
      $region11: #{time_disentangle_forward.5} parent=5 // pred_region
        %s201 = ssub.s32 %s18, 1
        // Predicated region
        $region13: #{time_disentangle_forward.5} parent=11 // pred_check
          %p202 = pneg %p131
        $region14: #{time_disentangle_forward.5} parent=11 // pred_check_branch
          %204 = sbr.rel (%p202) target = $region16
        $region15: #{time_disentangle_forward.5} parent=11 // pred_region
          _
        $region16: #{time_disentangle_forward.5} parent=11 // pred_fallthru
          _
      $region12: #{time_disentangle_forward.5} parent=5 // pred_fallthru
        _
      %p205 = scmp.lt.s32.totalorder %s18, 2
      // Predicated region
      $region17: #{time_disentangle_forward.5} parent=5 // pred_check
        %p206 = pneg %p205
      $region18: #{time_disentangle_forward.5} parent=5 // pred_check_branch
        %208 = sbr.rel (%p206) target = $region20
      $region19: #{time_disentangle_forward.5} parent=5 // pred_region
        // Predicated region
        $region21: #{time_disentangle_forward.5} parent=19 // pred_check
          %p209 = pneg %p52
        $region22: #{time_disentangle_forward.5} parent=19 // pred_check_branch
          %211 = sbr.rel (%p209) target = $region24
        $region23: #{time_disentangle_forward.5} parent=19 // pred_region
          %s212 = smul.u32 2, %s26
          %p213 = scmp.lt.s32.totalorder %s25, 1
          %s214 = scalar_select %p213, %s25, 1
          %p215 = scmp.lt.s32.totalorder %s212, 1
          %s216 = scalar_select %p215, %s212, 1
          %s217 = smul.addr %s214, 2
          %s218 = sadd.s32 %s216, %s217
          %s219 = smul.addr %s218, 8
          %s220 = scalar_lea.vmem %s0, %s219
          %s221 = smul.u32 2, %s26
        $region24: #{time_disentangle_forward.5} parent=19 // pred_fallthru
          _
        // Predicated region
        $region25: #{time_disentangle_forward.5} parent=19 // pred_check
          %p222 = pneg %p78
        $region26: #{time_disentangle_forward.5} parent=19 // pred_check_branch
          %224 = sbr.rel (%p222) target = $region28
        $region27: #{time_disentangle_forward.5} parent=19 // pred_region
          %p225 = scmp.lt.s32.totalorder %s25, 1
          %s226 = scalar_select %p225, %s25, 1
          %s227 = scalar_lea.vmem %s1, %s226
        $region28: #{time_disentangle_forward.5} parent=19 // pred_fallthru
          _
        // Predicated region
        $region29: #{time_disentangle_forward.5} parent=19 // pred_check
          %p228 = pneg %p104
        $region30: #{time_disentangle_forward.5} parent=19 // pred_check_branch
          %230 = sbr.rel (%p228) target = $region32
        $region31: #{time_disentangle_forward.5} parent=19 // pred_region
          %p231 = scmp.lt.s32.totalorder %s25, 1
          %s232 = scalar_select %p231, %s25, 1
          %s233 = scalar_lea.vmem %s2, %s232
        $region32: #{time_disentangle_forward.5} parent=19 // pred_fallthru
          _
      $region20: #{time_disentangle_forward.5} parent=5 // pred_fallthru
        _
      %p234 = scmp.le.s32.totalorder 1, %s18
      %p235 = scmp.lt.s32.totalorder %s18, 3
      %p236 = pnand %p234, %p235
      %p237 = pneg %p236
      // Predicated region
      $region33: #{time_disentangle_forward.5} parent=5 // pred_check
        _
      $region34: #{time_disentangle_forward.5} parent=5 // pred_check_branch
        %239 = sbr.rel (%p236) target = $region36
      $region35: #{time_disentangle_forward.5} parent=5 // pred_region
        %s240 = ssub.s32 %s18, 1
        %s241 = smul.u32 2, %s28
        %p242 = scmp.lt.s32.totalorder %s27, 1
        %s243 = scalar_select %p242, %s27, 1
        %p244 = scmp.lt.s32.totalorder %s241, 1
        %s245 = scalar_select %p244, %s241, 1
        %s246 = smul.addr %s243, 2
        %s247 = sadd.s32 %s245, %s246
        %s248 = smul.addr %s247, 8
        %s249 = scalar_lea.vmem %s0, %s248
        %p250 = pneg %p58
        %p251 = pneg %p55
        %p252 = scmp.lt.s32.totalorder %s27, 1
        %s253 = scalar_select %p252, %s27, 1
        %s254 = scalar_lea.vmem %s1, %s253
        %p255 = pneg %p84
        %p256 = pneg %p81
        %p257 = scmp.lt.s32.totalorder %s27, 1
        %s258 = scalar_select %p257, %s27, 1
        %s259 = scalar_lea.vmem %s2, %s258
        %p260 = pneg %p110
        %p261 = pneg %p107
        %p262 = pneg %p131
        %p263 = pneg %p128
        %p264 = pneg %p159
        %p265 = pneg %p156
        %s266 = sand.u32 %s146, 1
        %s267 = scalar_lea.sflag [#allocation3], %s266
        %s268 = sand.u32 %s146, 1
        %s269 = smul.addr %s268, 16
        %s270 = scalar_lea.vmem [#allocation2], %s269
        %p271 = pneg %p187
        %p272 = pneg %p184
        %s273 = sand.u32 %s174, 1
        %s274 = scalar_lea.sflag [#allocation5], %s273
        %s275 = sand.u32 %s174, 1
        %s276 = smul.addr %s275, 16
        %s277 = scalar_lea.vmem [#allocation4], %s276
        %s278 = smul.u32 2, %s28
        %p279 = scmp.lt.s32.totalorder %s27, 1
        %s280 = scalar_select %p279, %s27, 1
        %p281 = scmp.lt.s32.totalorder %s278, 1
        %s282 = scalar_select %p281, %s278, 1
        %s283 = smul.addr %s280, 2
        %s284 = sadd.s32 %s282, %s283
        %s285 = smul.addr %s284, 8
        %s286 = scalar_lea.vmem %s0, %s285
        %s287 = smul.u32 2, %s28
        %p288 = scmp.lt.s32.totalorder %s27, 1
        %s289 = scalar_select %p288, %s27, 1
        %s290 = scalar_lea.vmem %s1, %s289
        %p291 = scmp.lt.s32.totalorder %s27, 1
        %s292 = scalar_select %p291, %s27, 1
        %s293 = scalar_lea.vmem %s2, %s292
        %s294 = smul.u32 2, %s28
        %s295 = smul.u32 2, %s28
        %v296 = vld [vmem:[%s286] sm:$0xff]
        %v297 = vld [vmem:[%s286 + $0x8] sm:$0xff]
        %v298 = vld [vmem:[%s3] sm:$0xff]
        %v299 = vld [vmem:[%s3 + $0x8] sm:$0xff]
        %v300 = vld [vmem:[%s3 + $0x10] sm:$0xff]
        %v301 = vld [vmem:[%s3 + $0x18] sm:$0xff]
        %v302 = vld [vmem:[%s3 + $0x20] sm:$0xff]
        %v303 = vld [vmem:[%s3 + $0x28] sm:$0xff]
        %v304 = vld [vmem:[%s3 + $0x30] sm:$0xff]
        %v305 = vld [vmem:[%s3 + $0x38] sm:$0xff]
        %vm306 = vcmask 523264
        %v308 = vsel %vm306, %v296, 0
        %v311 = vsel %vm306, %v297, 0
        %313 = vmatpush.msra.mxu0 0.0
        %314 = vmatpush.msra.mxu0 0.0
        %315 = vmatpush.msra.mxu0 0.0
        %316 = vmatpush.msra.mxu0 0.0
        %317 = vmatpush.msra.mxu0 0.0
        %318 = vmatpush.msra.mxu0 0.0
        %319 = vmatpush.msra.mxu0 0.0
        %320 = vmatpush.msra.mxu0 0.0
        %v321 = vand.u32 %v305, 4294901760
        %322 = vmatpush.msra.mxu0 %v321
        %v323 = vand.u32 %v304, 4294901760
        %324 = vmatpush.msra.mxu0 %v323
        %v325 = vand.u32 %v303, 4294901760
        %326 = vmatpush.msra.mxu0 %v325
        %v327 = vand.u32 %v302, 4294901760
        %328 = vmatpush.msra.mxu0 %v327
        %v329 = vand.u32 %v301, 4294901760
        %330 = vmatpush.msra.mxu0 %v329
        %v331 = vand.u32 %v300, 4294901760
        %332 = vmatpush.msra.mxu0 %v331
        %v333 = vand.u32 %v299, 4294901760
        %334 = vmatpush.msra.mxu0 %v333
        %v335 = vand.u32 %v298, 4294901760
        %336 = vmatpush.msra.mxu0 %v335
        %v337 = vand.u32 %v308, 4294901760
        %v338 = vsub.f32 %v308, %v337
        %v339 = vand.u32 %v338, 4294901760
        %v340 = vsub.f32 %v338, %v339
        %v341 = vand.u32 %v340, 4294901760
        %342 = vmatmul.f32.gmra.mxu0 %v341
        %v343 = vpop.f32.mrf.mxu0
        %v344 = vadd.f32 0.0, %v343
        %v345 = vand.u32 %v311, 4294901760
        %v346 = vsub.f32 %v311, %v345
        %v347 = vand.u32 %v346, 4294901760
        %v348 = vsub.f32 %v346, %v347
        %v349 = vand.u32 %v348, 4294901760
        %350 = vmatmul.f32.gmra.mxu0 %v349
        %v351 = vpop.f32.mrf.mxu0
        %v352 = vadd.f32 0.0, %v351
        %353 = vdwg.mxu0
        %354 = vmatpush.msra.mxu0 0.0
        %355 = vmatpush.msra.mxu0 0.0
        %356 = vmatpush.msra.mxu0 0.0
        %357 = vmatpush.msra.mxu0 0.0
        %358 = vmatpush.msra.mxu0 0.0
        %359 = vmatpush.msra.mxu0 0.0
        %360 = vmatpush.msra.mxu0 0.0
        %361 = vmatpush.msra.mxu0 0.0
        %v362 = vand.u32 %v305, 4294901760
        %v363 = vsub.f32 %v305, %v362
        %v364 = vand.u32 %v363, 4294901760
        %v365 = vsub.f32 %v363, %v364
        %v366 = vand.u32 %v365, 4294901760
        %367 = vmatpush.msra.mxu0 %v366
        %v368 = vand.u32 %v304, 4294901760
        %v369 = vsub.f32 %v304, %v368
        %v370 = vand.u32 %v369, 4294901760
        %v371 = vsub.f32 %v369, %v370
        %v372 = vand.u32 %v371, 4294901760
        %373 = vmatpush.msra.mxu0 %v372
        %v374 = vand.u32 %v303, 4294901760
        %v375 = vsub.f32 %v303, %v374
        %v376 = vand.u32 %v375, 4294901760
        %v377 = vsub.f32 %v375, %v376
        %v378 = vand.u32 %v377, 4294901760
        %379 = vmatpush.msra.mxu0 %v378
        %v380 = vand.u32 %v302, 4294901760
        %v381 = vsub.f32 %v302, %v380
        %v382 = vand.u32 %v381, 4294901760
        %v383 = vsub.f32 %v381, %v382
        %v384 = vand.u32 %v383, 4294901760
        %385 = vmatpush.msra.mxu0 %v384
        %v386 = vand.u32 %v301, 4294901760
        %v387 = vsub.f32 %v301, %v386
        %v388 = vand.u32 %v387, 4294901760
        %v389 = vsub.f32 %v387, %v388
        %v390 = vand.u32 %v389, 4294901760
        %391 = vmatpush.msra.mxu0 %v390
        %v392 = vand.u32 %v300, 4294901760
        %v393 = vsub.f32 %v300, %v392
        %v394 = vand.u32 %v393, 4294901760
        %v395 = vsub.f32 %v393, %v394
        %v396 = vand.u32 %v395, 4294901760
        %397 = vmatpush.msra.mxu0 %v396
        %v398 = vand.u32 %v299, 4294901760
        %v399 = vsub.f32 %v299, %v398
        %v400 = vand.u32 %v399, 4294901760
        %v401 = vsub.f32 %v399, %v400
        %v402 = vand.u32 %v401, 4294901760
        %403 = vmatpush.msra.mxu0 %v402
        %v404 = vand.u32 %v298, 4294901760
        %v405 = vsub.f32 %v298, %v404
        %v406 = vand.u32 %v405, 4294901760
        %v407 = vsub.f32 %v405, %v406
        %v408 = vand.u32 %v407, 4294901760
        %409 = vmatpush.msra.mxu0 %v408
        %v410 = vand.u32 %v308, 4294901760
        %411 = vmatmul.f32.gmra.mxu0 %v410
        %v412 = vpop.f32.mrf.mxu0
        %v413 = vadd.f32 %v344, %v412
        %v414 = vand.u32 %v311, 4294901760
        %415 = vmatmul.f32.gmra.mxu0 %v414
        %v416 = vpop.f32.mrf.mxu0
        %v417 = vadd.f32 %v352, %v416
        %418 = vdwg.mxu0
        %419 = vmatpush.msra.mxu0 0.0
        %420 = vmatpush.msra.mxu0 0.0
        %421 = vmatpush.msra.mxu0 0.0
        %422 = vmatpush.msra.mxu0 0.0
        %423 = vmatpush.msra.mxu0 0.0
        %424 = vmatpush.msra.mxu0 0.0
        %425 = vmatpush.msra.mxu0 0.0
        %426 = vmatpush.msra.mxu0 0.0
        %v427 = vand.u32 %v305, 4294901760
        %v428 = vsub.f32 %v305, %v427
        %429 = vmatpush.msra.mxu0 %v428
        %v430 = vand.u32 %v304, 4294901760
        %v431 = vsub.f32 %v304, %v430
        %432 = vmatpush.msra.mxu0 %v431
        %v433 = vand.u32 %v303, 4294901760
        %v434 = vsub.f32 %v303, %v433
        %435 = vmatpush.msra.mxu0 %v434
        %v436 = vand.u32 %v302, 4294901760
        %v437 = vsub.f32 %v302, %v436
        %438 = vmatpush.msra.mxu0 %v437
        %v439 = vand.u32 %v301, 4294901760
        %v440 = vsub.f32 %v301, %v439
        %441 = vmatpush.msra.mxu0 %v440
        %v442 = vand.u32 %v300, 4294901760
        %v443 = vsub.f32 %v300, %v442
        %444 = vmatpush.msra.mxu0 %v443
        %v445 = vand.u32 %v299, 4294901760
        %v446 = vsub.f32 %v299, %v445
        %447 = vmatpush.msra.mxu0 %v446
        %v448 = vand.u32 %v298, 4294901760
        %v449 = vsub.f32 %v298, %v448
        %450 = vmatpush.msra.mxu0 %v449
        %v451 = vand.u32 %v308, 4294901760
        %v452 = vsub.f32 %v308, %v451
        %453 = vmatmul.f32.gmra.mxu0 %v452
        %v454 = vpop.f32.mrf.mxu0
        %v455 = vadd.f32 %v413, %v454
        %v456 = vand.u32 %v311, 4294901760
        %v457 = vsub.f32 %v311, %v456
        %458 = vmatmul.f32.gmra.mxu0 %v457
        %v459 = vpop.f32.mrf.mxu0
        %v460 = vadd.f32 %v417, %v459
        %461 = vdwg.mxu0
        %462 = vmatpush.msra.mxu0 0.0
        %463 = vmatpush.msra.mxu0 0.0
        %464 = vmatpush.msra.mxu0 0.0
        %465 = vmatpush.msra.mxu0 0.0
        %466 = vmatpush.msra.mxu0 0.0
        %467 = vmatpush.msra.mxu0 0.0
        %468 = vmatpush.msra.mxu0 0.0
        %469 = vmatpush.msra.mxu0 0.0
        %v470 = vand.u32 %v305, 4294901760
        %471 = vmatpush.msra.mxu0 %v470
        %v472 = vand.u32 %v304, 4294901760
        %473 = vmatpush.msra.mxu0 %v472
        %v474 = vand.u32 %v303, 4294901760
        %475 = vmatpush.msra.mxu0 %v474
        %v476 = vand.u32 %v302, 4294901760
        %477 = vmatpush.msra.mxu0 %v476
        %v478 = vand.u32 %v301, 4294901760
        %479 = vmatpush.msra.mxu0 %v478
        %v480 = vand.u32 %v300, 4294901760
        %481 = vmatpush.msra.mxu0 %v480
        %v482 = vand.u32 %v299, 4294901760
        %483 = vmatpush.msra.mxu0 %v482
        %v484 = vand.u32 %v298, 4294901760
        %485 = vmatpush.msra.mxu0 %v484
        %v486 = vand.u32 %v308, 4294901760
        %v487 = vsub.f32 %v308, %v486
        %v488 = vand.u32 %v487, 4294901760
        %489 = vmatmul.f32.gmra.mxu0 %v488
        %v490 = vpop.f32.mrf.mxu0
        %v491 = vadd.f32 %v455, %v490
        %v492 = vand.u32 %v311, 4294901760
        %v493 = vsub.f32 %v311, %v492
        %v494 = vand.u32 %v493, 4294901760
        %495 = vmatmul.f32.gmra.mxu0 %v494
        %v496 = vpop.f32.mrf.mxu0
        %v497 = vadd.f32 %v460, %v496
        %498 = vdwg.mxu0
        %499 = vmatpush.msra.mxu0 0.0
        %500 = vmatpush.msra.mxu0 0.0
        %501 = vmatpush.msra.mxu0 0.0
        %502 = vmatpush.msra.mxu0 0.0
        %503 = vmatpush.msra.mxu0 0.0
        %504 = vmatpush.msra.mxu0 0.0
        %505 = vmatpush.msra.mxu0 0.0
        %506 = vmatpush.msra.mxu0 0.0
        %v507 = vand.u32 %v305, 4294901760
        %v508 = vsub.f32 %v305, %v507
        %v509 = vand.u32 %v508, 4294901760
        %510 = vmatpush.msra.mxu0 %v509
        %v511 = vand.u32 %v304, 4294901760
        %v512 = vsub.f32 %v304, %v511
        %v513 = vand.u32 %v512, 4294901760
        %514 = vmatpush.msra.mxu0 %v513
        %v515 = vand.u32 %v303, 4294901760
        %v516 = vsub.f32 %v303, %v515
        %v517 = vand.u32 %v516, 4294901760
        %518 = vmatpush.msra.mxu0 %v517
        %v519 = vand.u32 %v302, 4294901760
        %v520 = vsub.f32 %v302, %v519
        %v521 = vand.u32 %v520, 4294901760
        %522 = vmatpush.msra.mxu0 %v521
        %v523 = vand.u32 %v301, 4294901760
        %v524 = vsub.f32 %v301, %v523
        %v525 = vand.u32 %v524, 4294901760
        %526 = vmatpush.msra.mxu0 %v525
        %v527 = vand.u32 %v300, 4294901760
        %v528 = vsub.f32 %v300, %v527
        %v529 = vand.u32 %v528, 4294901760
        %530 = vmatpush.msra.mxu0 %v529
        %v531 = vand.u32 %v299, 4294901760
        %v532 = vsub.f32 %v299, %v531
        %v533 = vand.u32 %v532, 4294901760
        %534 = vmatpush.msra.mxu0 %v533
        %v535 = vand.u32 %v298, 4294901760
        %v536 = vsub.f32 %v298, %v535
        %v537 = vand.u32 %v536, 4294901760
        %538 = vmatpush.msra.mxu0 %v537
        %v539 = vand.u32 %v308, 4294901760
        %540 = vmatmul.f32.gmra.mxu0 %v539
        %v541 = vpop.f32.mrf.mxu0
        %v542 = vadd.f32 %v491, %v541
        %v543 = vand.u32 %v311, 4294901760
        %544 = vmatmul.f32.gmra.mxu0 %v543
        %v545 = vpop.f32.mrf.mxu0
        %v546 = vadd.f32 %v497, %v545
        %547 = vdwg.mxu0
        %548 = vmatpush.msra.mxu0 0.0
        %549 = vmatpush.msra.mxu0 0.0
        %550 = vmatpush.msra.mxu0 0.0
        %551 = vmatpush.msra.mxu0 0.0
        %552 = vmatpush.msra.mxu0 0.0
        %553 = vmatpush.msra.mxu0 0.0
        %554 = vmatpush.msra.mxu0 0.0
        %555 = vmatpush.msra.mxu0 0.0
        %v556 = vand.u32 %v305, 4294901760
        %557 = vmatpush.msra.mxu0 %v556
        %v558 = vand.u32 %v304, 4294901760
        %559 = vmatpush.msra.mxu0 %v558
        %v560 = vand.u32 %v303, 4294901760
        %561 = vmatpush.msra.mxu0 %v560
        %v562 = vand.u32 %v302, 4294901760
        %563 = vmatpush.msra.mxu0 %v562
        %v564 = vand.u32 %v301, 4294901760
        %565 = vmatpush.msra.mxu0 %v564
        %v566 = vand.u32 %v300, 4294901760
        %567 = vmatpush.msra.mxu0 %v566
        %v568 = vand.u32 %v299, 4294901760
        %569 = vmatpush.msra.mxu0 %v568
        %v570 = vand.u32 %v298, 4294901760
        %571 = vmatpush.msra.mxu0 %v570
        %v572 = vand.u32 %v308, 4294901760
        %573 = vmatmul.f32.gmra.mxu0 %v572
        %v574 = vpop.f32.mrf.mxu0
        %v575 = vadd.f32 %v542, %v574
        %v576 = vand.u32 %v311, 4294901760
        %577 = vmatmul.f32.gmra.mxu0 %v576
        %v578 = vpop.f32.mrf.mxu0
        %v579 = vadd.f32 %v546, %v578
        %580 = vdwg.mxu0
        %v581 = vmul.f32 %v575, 0.125
        %v582 = vmul.f32 %v579, 0.125
        %vm583 = vcmask 64512
        %v585 = vsel %vm583, %v581, 0
        %v588 = vsel %vm583, %v582, 0
        %v591 = vsel %vm583, %v298, 0
        %v594 = vsel %vm583, %v299, 0
        %v597 = vsel %vm583, %v300, 0
        %v600 = vsel %vm583, %v301, 0
        %v603 = vsel %vm583, %v302, 0
        %v606 = vsel %vm583, %v303, 0
        %v609 = vsel %vm583, %v304, 0
        %v612 = vsel %vm583, %v305, 0
        %614 = vmatpush.xpose.msra.mxu0 0.0
        %615 = vmatpush.xpose.msra.mxu0 0.0
        %616 = vmatpush.xpose.msra.mxu0 0.0
        %617 = vmatpush.xpose.msra.mxu0 0.0
        %618 = vmatpush.xpose.msra.mxu0 0.0
        %619 = vmatpush.xpose.msra.mxu0 0.0
        %620 = vmatpush.xpose.msra.mxu0 0.0
        %621 = vmatpush.xpose.msra.mxu0 0.0
        %v622 = vand.u32 %v612, 4294901760
        %623 = vmatpush.xpose.msra.mxu0 %v622
        %v624 = vand.u32 %v609, 4294901760
        %625 = vmatpush.xpose.msra.mxu0 %v624
        %v626 = vand.u32 %v606, 4294901760
        %627 = vmatpush.xpose.msra.mxu0 %v626
        %v628 = vand.u32 %v603, 4294901760
        %629 = vmatpush.xpose.msra.mxu0 %v628
        %v630 = vand.u32 %v600, 4294901760
        %631 = vmatpush.xpose.msra.mxu0 %v630
        %v632 = vand.u32 %v597, 4294901760
        %633 = vmatpush.xpose.msra.mxu0 %v632
        %v634 = vand.u32 %v594, 4294901760
        %635 = vmatpush.xpose.msra.mxu0 %v634
        %v636 = vand.u32 %v591, 4294901760
        %637 = vmatpush.xpose.msra.mxu0 %v636
        %v638 = vand.u32 %v585, 4294901760
        %v639 = vsub.f32 %v585, %v638
        %v640 = vand.u32 %v639, 4294901760
        %v641 = vsub.f32 %v639, %v640
        %v642 = vand.u32 %v641, 4294901760
        %643 = vmatmul.f32.gmra.mxu0 %v642
        %v644 = vpop.f32.mrf.mxu0
        %v645 = vadd.f32 0.0, %v644
        %v646 = vand.u32 %v588, 4294901760
        %v647 = vsub.f32 %v588, %v646
        %v648 = vand.u32 %v647, 4294901760
        %v649 = vsub.f32 %v647, %v648
        %v650 = vand.u32 %v649, 4294901760
        %651 = vmatmul.f32.gmra.mxu0 %v650
        %v652 = vpop.f32.mrf.mxu0
        %v653 = vadd.f32 0.0, %v652
        %654 = vdwg.mxu0
        %655 = vmatpush.xpose.msra.mxu0 0.0
        %656 = vmatpush.xpose.msra.mxu0 0.0
        %657 = vmatpush.xpose.msra.mxu0 0.0
        %658 = vmatpush.xpose.msra.mxu0 0.0
        %659 = vmatpush.xpose.msra.mxu0 0.0
        %660 = vmatpush.xpose.msra.mxu0 0.0
        %661 = vmatpush.xpose.msra.mxu0 0.0
        %662 = vmatpush.xpose.msra.mxu0 0.0
        %v663 = vand.u32 %v612, 4294901760
        %v664 = vsub.f32 %v612, %v663
        %v665 = vand.u32 %v664, 4294901760
        %v666 = vsub.f32 %v664, %v665
        %v667 = vand.u32 %v666, 4294901760
        %668 = vmatpush.xpose.msra.mxu0 %v667
        %v669 = vand.u32 %v609, 4294901760
        %v670 = vsub.f32 %v609, %v669
        %v671 = vand.u32 %v670, 4294901760
        %v672 = vsub.f32 %v670, %v671
        %v673 = vand.u32 %v672, 4294901760
        %674 = vmatpush.xpose.msra.mxu0 %v673
        %v675 = vand.u32 %v606, 4294901760
        %v676 = vsub.f32 %v606, %v675
        %v677 = vand.u32 %v676, 4294901760
        %v678 = vsub.f32 %v676, %v677
        %v679 = vand.u32 %v678, 4294901760
        %680 = vmatpush.xpose.msra.mxu0 %v679
        %v681 = vand.u32 %v603, 4294901760
        %v682 = vsub.f32 %v603, %v681
        %v683 = vand.u32 %v682, 4294901760
        %v684 = vsub.f32 %v682, %v683
        %v685 = vand.u32 %v684, 4294901760
        %686 = vmatpush.xpose.msra.mxu0 %v685
        %v687 = vand.u32 %v600, 4294901760
        %v688 = vsub.f32 %v600, %v687
        %v689 = vand.u32 %v688, 4294901760
        %v690 = vsub.f32 %v688, %v689
        %v691 = vand.u32 %v690, 4294901760
        %692 = vmatpush.xpose.msra.mxu0 %v691
        %v693 = vand.u32 %v597, 4294901760
        %v694 = vsub.f32 %v597, %v693
        %v695 = vand.u32 %v694, 4294901760
        %v696 = vsub.f32 %v694, %v695
        %v697 = vand.u32 %v696, 4294901760
        %698 = vmatpush.xpose.msra.mxu0 %v697
        %v699 = vand.u32 %v594, 4294901760
        %v700 = vsub.f32 %v594, %v699
        %v701 = vand.u32 %v700, 4294901760
        %v702 = vsub.f32 %v700, %v701
        %v703 = vand.u32 %v702, 4294901760
        %704 = vmatpush.xpose.msra.mxu0 %v703
        %v705 = vand.u32 %v591, 4294901760
        %v706 = vsub.f32 %v591, %v705
        %v707 = vand.u32 %v706, 4294901760
        %v708 = vsub.f32 %v706, %v707
        %v709 = vand.u32 %v708, 4294901760
        %710 = vmatpush.xpose.msra.mxu0 %v709
        %v711 = vand.u32 %v585, 4294901760
        %712 = vmatmul.f32.gmra.mxu0 %v711
        %v713 = vpop.f32.mrf.mxu0
        %v714 = vadd.f32 %v645, %v713
        %v715 = vand.u32 %v588, 4294901760
        %716 = vmatmul.f32.gmra.mxu0 %v715
        %v717 = vpop.f32.mrf.mxu0
        %v718 = vadd.f32 %v653, %v717
        %719 = vdwg.mxu0
        %720 = vmatpush.xpose.msra.mxu0 0.0
        %721 = vmatpush.xpose.msra.mxu0 0.0
        %722 = vmatpush.xpose.msra.mxu0 0.0
        %723 = vmatpush.xpose.msra.mxu0 0.0
        %724 = vmatpush.xpose.msra.mxu0 0.0
        %725 = vmatpush.xpose.msra.mxu0 0.0
        %726 = vmatpush.xpose.msra.mxu0 0.0
        %727 = vmatpush.xpose.msra.mxu0 0.0
        %v728 = vand.u32 %v612, 4294901760
        %v729 = vsub.f32 %v612, %v728
        %730 = vmatpush.xpose.msra.mxu0 %v729
        %v731 = vand.u32 %v609, 4294901760
        %v732 = vsub.f32 %v609, %v731
        %733 = vmatpush.xpose.msra.mxu0 %v732
        %v734 = vand.u32 %v606, 4294901760
        %v735 = vsub.f32 %v606, %v734
        %736 = vmatpush.xpose.msra.mxu0 %v735
        %v737 = vand.u32 %v603, 4294901760
        %v738 = vsub.f32 %v603, %v737
        %739 = vmatpush.xpose.msra.mxu0 %v738
        %v740 = vand.u32 %v600, 4294901760
        %v741 = vsub.f32 %v600, %v740
        %742 = vmatpush.xpose.msra.mxu0 %v741
        %v743 = vand.u32 %v597, 4294901760
        %v744 = vsub.f32 %v597, %v743
        %745 = vmatpush.xpose.msra.mxu0 %v744
        %v746 = vand.u32 %v594, 4294901760
        %v747 = vsub.f32 %v594, %v746
        %748 = vmatpush.xpose.msra.mxu0 %v747
        %v749 = vand.u32 %v591, 4294901760
        %v750 = vsub.f32 %v591, %v749
        %751 = vmatpush.xpose.msra.mxu0 %v750
        %v752 = vand.u32 %v585, 4294901760
        %v753 = vsub.f32 %v585, %v752
        %754 = vmatmul.f32.gmra.mxu0 %v753
        %v755 = vpop.f32.mrf.mxu0
        %v756 = vadd.f32 %v714, %v755
        %v757 = vand.u32 %v588, 4294901760
        %v758 = vsub.f32 %v588, %v757
        %759 = vmatmul.f32.gmra.mxu0 %v758
        %v760 = vpop.f32.mrf.mxu0
        %v761 = vadd.f32 %v718, %v760
        %762 = vdwg.mxu0
        %763 = vmatpush.xpose.msra.mxu0 0.0
        %764 = vmatpush.xpose.msra.mxu0 0.0
        %765 = vmatpush.xpose.msra.mxu0 0.0
        %766 = vmatpush.xpose.msra.mxu0 0.0
        %767 = vmatpush.xpose.msra.mxu0 0.0
        %768 = vmatpush.xpose.msra.mxu0 0.0
        %769 = vmatpush.xpose.msra.mxu0 0.0
        %770 = vmatpush.xpose.msra.mxu0 0.0
        %v771 = vand.u32 %v612, 4294901760
        %772 = vmatpush.xpose.msra.mxu0 %v771
        %v773 = vand.u32 %v609, 4294901760
        %774 = vmatpush.xpose.msra.mxu0 %v773
        %v775 = vand.u32 %v606, 4294901760
        %776 = vmatpush.xpose.msra.mxu0 %v775
        %v777 = vand.u32 %v603, 4294901760
        %778 = vmatpush.xpose.msra.mxu0 %v777
        %v779 = vand.u32 %v600, 4294901760
        %780 = vmatpush.xpose.msra.mxu0 %v779
        %v781 = vand.u32 %v597, 4294901760
        %782 = vmatpush.xpose.msra.mxu0 %v781
        %v783 = vand.u32 %v594, 4294901760
        %784 = vmatpush.xpose.msra.mxu0 %v783
        %v785 = vand.u32 %v591, 4294901760
        %786 = vmatpush.xpose.msra.mxu0 %v785
        %v787 = vand.u32 %v585, 4294901760
        %v788 = vsub.f32 %v585, %v787
        %v789 = vand.u32 %v788, 4294901760
        %790 = vmatmul.f32.gmra.mxu0 %v789
        %v791 = vpop.f32.mrf.mxu0
        %v792 = vadd.f32 %v756, %v791
        %v793 = vand.u32 %v588, 4294901760
        %v794 = vsub.f32 %v588, %v793
        %v795 = vand.u32 %v794, 4294901760
        %796 = vmatmul.f32.gmra.mxu0 %v795
        %v797 = vpop.f32.mrf.mxu0
        %v798 = vadd.f32 %v761, %v797
        %799 = vdwg.mxu0
        %800 = vmatpush.xpose.msra.mxu0 0.0
        %801 = vmatpush.xpose.msra.mxu0 0.0
        %802 = vmatpush.xpose.msra.mxu0 0.0
        %803 = vmatpush.xpose.msra.mxu0 0.0
        %804 = vmatpush.xpose.msra.mxu0 0.0
        %805 = vmatpush.xpose.msra.mxu0 0.0
        %806 = vmatpush.xpose.msra.mxu0 0.0
        %807 = vmatpush.xpose.msra.mxu0 0.0
        %v808 = vand.u32 %v612, 4294901760
        %v809 = vsub.f32 %v612, %v808
        %v810 = vand.u32 %v809, 4294901760
        %811 = vmatpush.xpose.msra.mxu0 %v810
        %v812 = vand.u32 %v609, 4294901760
        %v813 = vsub.f32 %v609, %v812
        %v814 = vand.u32 %v813, 4294901760
        %815 = vmatpush.xpose.msra.mxu0 %v814
        %v816 = vand.u32 %v606, 4294901760
        %v817 = vsub.f32 %v606, %v816
        %v818 = vand.u32 %v817, 4294901760
        %819 = vmatpush.xpose.msra.mxu0 %v818
        %v820 = vand.u32 %v603, 4294901760
        %v821 = vsub.f32 %v603, %v820
        %v822 = vand.u32 %v821, 4294901760
        %823 = vmatpush.xpose.msra.mxu0 %v822
        %v824 = vand.u32 %v600, 4294901760
        %v825 = vsub.f32 %v600, %v824
        %v826 = vand.u32 %v825, 4294901760
        %827 = vmatpush.xpose.msra.mxu0 %v826
        %v828 = vand.u32 %v597, 4294901760
        %v829 = vsub.f32 %v597, %v828
        %v830 = vand.u32 %v829, 4294901760
        %831 = vmatpush.xpose.msra.mxu0 %v830
        %v832 = vand.u32 %v594, 4294901760
        %v833 = vsub.f32 %v594, %v832
        %v834 = vand.u32 %v833, 4294901760
        %835 = vmatpush.xpose.msra.mxu0 %v834
        %v836 = vand.u32 %v591, 4294901760
        %v837 = vsub.f32 %v591, %v836
        %v838 = vand.u32 %v837, 4294901760
        %839 = vmatpush.xpose.msra.mxu0 %v838
        %v840 = vand.u32 %v585, 4294901760
        %841 = vmatmul.f32.gmra.mxu0 %v840
        %v842 = vpop.f32.mrf.mxu0
        %v843 = vadd.f32 %v792, %v842
        %v844 = vand.u32 %v588, 4294901760
        %845 = vmatmul.f32.gmra.mxu0 %v844
        %v846 = vpop.f32.mrf.mxu0
        %v847 = vadd.f32 %v798, %v846
        %848 = vdwg.mxu0
        %849 = vmatpush.xpose.msra.mxu0 0.0
        %850 = vmatpush.xpose.msra.mxu0 0.0
        %851 = vmatpush.xpose.msra.mxu0 0.0
        %852 = vmatpush.xpose.msra.mxu0 0.0
        %853 = vmatpush.xpose.msra.mxu0 0.0
        %854 = vmatpush.xpose.msra.mxu0 0.0
        %855 = vmatpush.xpose.msra.mxu0 0.0
        %856 = vmatpush.xpose.msra.mxu0 0.0
        %v857 = vand.u32 %v612, 4294901760
        %858 = vmatpush.xpose.msra.mxu0 %v857
        %v859 = vand.u32 %v609, 4294901760
        %860 = vmatpush.xpose.msra.mxu0 %v859
        %v861 = vand.u32 %v606, 4294901760
        %862 = vmatpush.xpose.msra.mxu0 %v861
        %v863 = vand.u32 %v603, 4294901760
        %864 = vmatpush.xpose.msra.mxu0 %v863
        %v865 = vand.u32 %v600, 4294901760
        %866 = vmatpush.xpose.msra.mxu0 %v865
        %v867 = vand.u32 %v597, 4294901760
        %868 = vmatpush.xpose.msra.mxu0 %v867
        %v869 = vand.u32 %v594, 4294901760
        %870 = vmatpush.xpose.msra.mxu0 %v869
        %v871 = vand.u32 %v591, 4294901760
        %872 = vmatpush.xpose.msra.mxu0 %v871
        %v873 = vand.u32 %v585, 4294901760
        %874 = vmatmul.f32.gmra.mxu0 %v873
        %v875 = vpop.f32.mrf.mxu0
        %v876 = vadd.f32 %v843, %v875
        %v877 = vand.u32 %v588, 4294901760
        %878 = vmatmul.f32.gmra.mxu0 %v877
        %v879 = vpop.f32.mrf.mxu0
        %v880 = vadd.f32 %v847, %v879
        %881 = vdwg.mxu0
        %v882 = vld [vmem:[%s290] sm:$0x1]
        %vm883 = vcmp.gt.f32.partialorder %v882, 0.5
        %v884 = vsel %vm883, 1, 0
        %v885 = vcvt.s32.f32 %v884
        %v887 = vsel %vm583, %v885, 0
        %889 = vmatpush.xpose.msra.mxu0 0.0
        %890 = vmatpush.xpose.msra.mxu0 0.0
        %891 = vmatpush.xpose.msra.mxu0 0.0
        %892 = vmatpush.xpose.msra.mxu0 0.0
        %893 = vmatpush.xpose.msra.mxu0 0.0
        %894 = vmatpush.xpose.msra.mxu0 0.0
        %895 = vmatpush.xpose.msra.mxu0 0.0
        %896 = vmatpush.xpose.msra.mxu0 0.0
        %897 = vmatpush.xpose.msra.mxu0 %v612
        %898 = vmatpush.xpose.msra.mxu0 %v609
        %899 = vmatpush.xpose.msra.mxu0 %v606
        %900 = vmatpush.xpose.msra.mxu0 %v603
        %901 = vmatpush.xpose.msra.mxu0 %v600
        %902 = vmatpush.xpose.msra.mxu0 %v597
        %903 = vmatpush.xpose.msra.mxu0 %v594
        %904 = vmatpush.xpose.msra.mxu0 %v591
        %905 = vmatmul.f32.gmra.mxu0 %v887
        %v906 = vpop.f32.mrf.mxu0
        %v907 = vadd.f32 0.0, %v906
        %908 = vdwg.mxu0
        %vm909 = vcmp.gt.f32.partialorder %v907, 0.5
        %v910 = vsel %vm909, 1, 0
        %v911 = vperm.slane %v910, 0
        %vm912 = vcmp.eq.s32.totalorder %v911, 1
        %v913 = vsel %vm912, %v296, %v876
        %v914 = vsel %vm912, %v297, %v880
        %v915 = vsel %vm306, %v913, 0.0
        %916 = vadd.xlane.f32.xlu0 %v915
        %v917 = vpop.xlane.xlu0 %916
        %v918 = vsel %vm306, %v914, 0.0
        %919 = vadd.xlane.f32.xlu0 %v918
        %v920 = vpop.xlane.xlu0 %919
        %v921 = vrcp.pop 64.0
        %v922 = vmul.f32 64.0, %v921
        %v923 = vsub.f32 1.0, %v922
        %v924 = vmul.f32 %v921, %v923
        %v925 = vadd.f32 %v921, %v924
        %vm926 = vweird.f32 %v921
        %v927 = vsel %vm926, %v921, %v925
        %v928 = vmul.f32 %v917, %v927
        %v929 = vmul.f32 %v920, %v927
        %v930 = vsub.f32 %v913, %v928
        %v931 = vsub.f32 %v914, %v929
        %v932 = vmul.f32 %v930, %v930
        %v933 = vmul.f32 %v931, %v931
        %v934 = vsel %vm306, %v932, 0.0
        %935 = vadd.xlane.f32.xlu0 %v934
        %v936 = vpop.xlane.xlu0 %935
        %v937 = vsel %vm306, %v933, 0.0
        %938 = vadd.xlane.f32.xlu0 %v937
        %v939 = vpop.xlane.xlu0 %938
        %v940 = vmul.f32 %v936, %v927
        %v941 = vmul.f32 %v939, %v927
        %v942 = vadd.f32 %v940, 1e-05
        %v943 = vadd.f32 %v941, 1e-05
        %v944 = vrsqrt.pop %v942
        %v945 = vmul.f32 %v944, %v942
        %v946 = vmul.f32 %v945, %v944
        %v947 = vmul.f32 0.5, %v946
        %v948 = vsub.f32 1.5, %v947
        %v949 = vmul.f32 %v944, %v948
        %vm950 = vweird.f32 %v942
        %vm951 = vweird.f32 %v944
        %vm952 = vmor %vm950, %vm951
        %v953 = vsel %vm952, %v944, %v949
        %v954 = vrsqrt.pop %v943
        %v955 = vmul.f32 %v954, %v943
        %v956 = vmul.f32 %v955, %v954
        %v957 = vmul.f32 0.5, %v956
        %v958 = vsub.f32 1.5, %v957
        %v959 = vmul.f32 %v954, %v958
        %vm960 = vweird.f32 %v943
        %vm961 = vweird.f32 %v954
        %vm962 = vmor %vm960, %vm961
        %v963 = vsel %vm962, %v954, %v959
        %v964 = vmul.f32 %v930, %v953
        %v965 = vmul.f32 %v931, %v963
        %966 = vst.msk [vmem:[%s270] sm:$0xff] %vm306, %v964
        %967 = vst.msk [vmem:[%s270 + $0x8] sm:$0xff] %vm306, %v965
        %v968 = vld [vmem:[%s293] sm:$0x1]
        %vm969 = vcmp.gt.f32.partialorder %v968, 0.5
        %v970 = vsel %vm969, 1, 0
        %v971 = vcvt.s32.f32 %v970
        %v973 = vsel %vm583, %v971, 0
        %975 = vmatpush.xpose.msra.mxu0 0.0
        %976 = vmatpush.xpose.msra.mxu0 0.0
        %977 = vmatpush.xpose.msra.mxu0 0.0
        %978 = vmatpush.xpose.msra.mxu0 0.0
        %979 = vmatpush.xpose.msra.mxu0 0.0
        %980 = vmatpush.xpose.msra.mxu0 0.0
        %981 = vmatpush.xpose.msra.mxu0 0.0
        %982 = vmatpush.xpose.msra.mxu0 0.0
        %983 = vmatpush.xpose.msra.mxu0 %v612
        %984 = vmatpush.xpose.msra.mxu0 %v609
        %985 = vmatpush.xpose.msra.mxu0 %v606
        %986 = vmatpush.xpose.msra.mxu0 %v603
        %987 = vmatpush.xpose.msra.mxu0 %v600
        %988 = vmatpush.xpose.msra.mxu0 %v597
        %989 = vmatpush.xpose.msra.mxu0 %v594
        %990 = vmatpush.xpose.msra.mxu0 %v591
        %991 = vmatmul.f32.gmra.mxu0 %v973
        %v992 = vpop.f32.mrf.mxu0
        %v993 = vadd.f32 0.0, %v992
        %994 = vdwg.mxu0
        %vm995 = vcmp.gt.f32.partialorder %v993, 0.5
        %v996 = vsel %vm995, 1, 0
        %v997 = vperm.slane %v996, 0
        %vm998 = vcmp.eq.s32.totalorder %v997, 1
        %v999 = vsel %vm998, %v296, %v876
        %v1000 = vsel %vm998, %v297, %v880
        %v1001 = vsel %vm306, %v999, 0.0
        %1002 = vadd.xlane.f32.xlu0 %v1001
        %v1003 = vpop.xlane.xlu0 %1002
        %v1004 = vsel %vm306, %v1000, 0.0
        %1005 = vadd.xlane.f32.xlu0 %v1004
        %v1006 = vpop.xlane.xlu0 %1005
        %v1007 = vmul.f32 %v1003, %v927
        %v1008 = vmul.f32 %v1006, %v927
        %v1009 = vsub.f32 %v999, %v1007
        %v1010 = vsub.f32 %v1000, %v1008
        %v1011 = vmul.f32 %v1009, %v1009
        %v1012 = vmul.f32 %v1010, %v1010
        %v1013 = vsel %vm306, %v1011, 0.0
        %1014 = vadd.xlane.f32.xlu0 %v1013
        %v1015 = vpop.xlane.xlu0 %1014
        %v1016 = vsel %vm306, %v1012, 0.0
        %1017 = vadd.xlane.f32.xlu0 %v1016
        %v1018 = vpop.xlane.xlu0 %1017
        %v1019 = vmul.f32 %v1015, %v927
        %v1020 = vmul.f32 %v1018, %v927
        %v1021 = vadd.f32 %v1019, 1e-05
        %v1022 = vadd.f32 %v1020, 1e-05
        %v1023 = vrsqrt.pop %v1021
        %v1024 = vmul.f32 %v1023, %v1021
        %v1025 = vmul.f32 %v1024, %v1023
        %v1026 = vmul.f32 0.5, %v1025
        %v1027 = vsub.f32 1.5, %v1026
        %v1028 = vmul.f32 %v1023, %v1027
        %vm1029 = vweird.f32 %v1021
        %vm1030 = vweird.f32 %v1023
        %vm1031 = vmor %vm1029, %vm1030
        %v1032 = vsel %vm1031, %v1023, %v1028
        %v1033 = vrsqrt.pop %v1022
        %v1034 = vmul.f32 %v1033, %v1022
        %v1035 = vmul.f32 %v1034, %v1033
        %v1036 = vmul.f32 0.5, %v1035
        %v1037 = vsub.f32 1.5, %v1036
        %v1038 = vmul.f32 %v1033, %v1037
        %vm1039 = vweird.f32 %v1022
        %vm1040 = vweird.f32 %v1033
        %vm1041 = vmor %vm1039, %vm1040
        %v1042 = vsel %vm1041, %v1033, %v1038
        %v1043 = vmul.f32 %v1009, %v1032
        %v1044 = vmul.f32 %v1010, %v1042
        %1045 = vst.msk [vmem:[%s277] sm:$0xff] %vm306, %v1043
        %1046 = vst.msk [vmem:[%s277 + $0x8] sm:$0xff] %vm306, %v1044
        %s1047 = sand.u32 %s146, 1
        %s1048 = scalar_lea.sflag [#allocation3], %s1047
        %s1049 = sand.u32 %s146, 1
        %s1050 = smul.addr %s1049, 16
        %s1051 = scalar_lea.vmem [#allocation2], %s1050
        %s1052 = sand.u32 %s174, 1
        %s1053 = scalar_lea.sflag [#allocation5], %s1052
        %s1054 = sand.u32 %s174, 1
        %s1055 = smul.addr %s1054, 16
        %s1056 = scalar_lea.vmem [#allocation4], %s1055
        // Predicated region
        $region37: #{time_disentangle_forward.5} parent=35 // pred_check
          %p1057 = pneg %p156
        $region38: #{time_disentangle_forward.5} parent=35 // pred_check_branch
          %1059 = sbr.rel (%p1057) target = $region40
        $region39: #{time_disentangle_forward.5} parent=35 // pred_region
          %s1060 = smul.u32 2, %s28
          %1062 = vsyncadd %s1048, 0
          %s1063 = smul.addr %s27, 2
          %s1064 = sadd.s32 %s1060, %s1063
          %s1065 = smul.addr %s1064, 8
          %s1066 = scalar_lea.hbm %s4, %s1065
          %s1067 = sshll.u32 %s1051, 4
          %s1068 = int_to_ptr.vmem [resolvable:$true] %s1067
          %s1069 = sshll.u32 %s1066, 4
          %s1070 = int_to_ptr.hbm [resolvable:$true] %s1069
          %1075 = dma.vmem_to_hbm [thread:$0]  %s1068, 256, %s1070, %s1048, 128, 128, 8
        $region40: #{time_disentangle_forward.5} parent=35 // pred_fallthru
          _
        // Predicated region
        $region41: #{time_disentangle_forward.5} parent=35 // pred_check
          %p1076 = pneg %p184
        $region42: #{time_disentangle_forward.5} parent=35 // pred_check_branch
          %1078 = sbr.rel (%p1076) target = $region44
        $region43: #{time_disentangle_forward.5} parent=35 // pred_region
          %s1079 = smul.u32 2, %s28
          %1081 = vsyncadd %s1053, 0
          %s1082 = smul.addr %s27, 2
          %s1083 = sadd.s32 %s1079, %s1082
          %s1084 = smul.addr %s1083, 8
          %s1085 = scalar_lea.hbm %s5, %s1084
          %s1086 = sshll.u32 %s1056, 4
          %s1087 = int_to_ptr.vmem [resolvable:$true] %s1086
          %s1088 = sshll.u32 %s1085, 4
          %s1089 = int_to_ptr.hbm [resolvable:$true] %s1088
          %1094 = dma.vmem_to_hbm [thread:$0]  %s1087, 256, %s1089, %s1053, 128, 128, 8
        $region44: #{time_disentangle_forward.5} parent=35 // pred_fallthru
          _
      $region36: #{time_disentangle_forward.5} parent=5 // pred_fallthru
        _
      %p1095 = scmp.le.s32.totalorder 2, %s18
      // Predicated region
      $region45: #{time_disentangle_forward.5} parent=5 // pred_check
        %p1096 = pneg %p1095
      $region46: #{time_disentangle_forward.5} parent=5 // pred_check_branch
        %1098 = sbr.rel (%p1096) target = $region48
      $region47: #{time_disentangle_forward.5} parent=5 // pred_region
        %s1099 = ssub.s32 %s18, 2
        // Predicated region
        $region49: #{time_disentangle_forward.5} parent=47 // pred_check
          %p1100 = pneg %p162
        $region50: #{time_disentangle_forward.5} parent=47 // pred_check_branch
          %1102 = sbr.rel (%p1100) target = $region52
        $region51: #{time_disentangle_forward.5} parent=47 // pred_region
          %s1103 = sand.u32 %s147, 1
          %s1104 = scalar_lea.sflag [#allocation3], %s1103
          %s1105 = sand.u32 %s147, 1
          %s1106 = smul.addr %s1105, 16
          %s1107 = scalar_lea.vmem [#allocation2], %s1106
          %1109 = dma.done %s1104, 256
        $region52: #{time_disentangle_forward.5} parent=47 // pred_fallthru
          _
        // Predicated region
        $region53: #{time_disentangle_forward.5} parent=47 // pred_check
          %p1110 = pneg %p190
        $region54: #{time_disentangle_forward.5} parent=47 // pred_check_branch
          %1112 = sbr.rel (%p1110) target = $region56
        $region55: #{time_disentangle_forward.5} parent=47 // pred_region
          %s1113 = sand.u32 %s175, 1
          %s1114 = scalar_lea.sflag [#allocation5], %s1113
          %s1115 = sand.u32 %s175, 1
          %s1116 = smul.addr %s1115, 16
          %s1117 = scalar_lea.vmem [#allocation4], %s1116
          %1119 = dma.done %s1114, 256
        $region56: #{time_disentangle_forward.5} parent=47 // pred_fallthru
          _
      $region48: #{time_disentangle_forward.5} parent=5 // pred_fallthru
        _
    $region6: #{time_disentangle_forward.5} parent=1 // loop_footer
      %s22 = sadd.s32 1, %s18
    $region7: #{time_disentangle_forward.5} parent=1 // loop_footer_branch
      %17 = sbr.rel target = $region3
    $region8: #{time_disentangle_forward.5} parent=1 // loop_exit
      _
    %1120 = vsyncpa [#allocation3], 1
    %s1121 = scalar_lea.sflag [#allocation3], 1
    %1122 = vsyncpa %s1121, 1
    %1123 = vsyncpa [#allocation5], 1
    %s1124 = scalar_lea.sflag [#allocation5], 1
    %1125 = vsyncpa %s1124, 1

</llo_original>
